<compile_context>
chip_gen: v7x
topology: tpu7x:2x2x1
jax: 0.10.0
libtpu: 0.0.40
codegen_flags: <defaults>
</compile_context>

<pallas_src>
import functools

import jax
import jax.numpy as jnp
from jax import lax
from jax.experimental import pallas as pl
from jax.experimental.pallas import tpu as pltpu


# ---------------------------------------------------------------------------
# Fused encoder kernel: one grid step == BT samples, fully VMEM-resident.
# ---------------------------------------------------------------------------
def _fused_encoder_kernel(
    x_ref,    # (BT*LP, 2)   padded raw input, per-sample stride LP
    m1_ref,   # (BT*LP-8, 1) validity mask for conv1 output rows (local < L1)
    m2_ref,   # (BT*LP-8, 1) validity mask for conv2 output rows (local < L2)
    m3_ref,   # (BT*LP, 1)   validity mask for conv3 output rows (local < L3)
    w1_ref,   # (3, 2, 32)
    b1_ref,   # (1, 32)
    w2_ref,   # (3, 32, 64)
    b2_ref,   # (1, 64)
    w3_ref,   # (3, 64, 128)
    b3_ref,   # (1, 128)
    wl_ref,   # (128, EP)    linear weight padded to EP (multiple of 128) lanes
    bl_ref,   # (1, EP)
    o_ref,    # (BT, EP)
    s1_ref,   # VMEM scratch (BT*LP, 32)      conv2 padded input
    s2_ref,   # VMEM scratch (BT*LP + 8, 64)  conv3 padded input
    *,
    bt, lp, l1, l2, l3,
):
    f32 = jnp.float32
    n_flat = bt * lp
    m12 = n_flat - 8

    # Rows that must read back as zero padding this step.  Done unconditionally
    # (not @pl.when(pid==0)) so correctness holds when grid steps are sharded
    # across TensorCores; it is a handful of vregs per step.
    s1_ref[pl.ds(0, 8), :] = jnp.zeros((8, 32), f32)
    s1_ref[pl.ds(m12, 8), :] = jnp.zeros((8, 32), f32)
    s2_ref[pl.ds(0, 8), :] = jnp.zeros((8, 64), f32)
    s2_ref[pl.ds(n_flat, 8), :] = jnp.zeros((8, 64), f32)

    # conv1 (2->32, k=3, pad=2, dil=1): 3 tap-accumulated matmuls over the flat
    # batch-stacked rows.  Garbage rows (local index >= L1) are masked to zero
    # so they become the zero padding of conv2 when stored at row offset 4.
    acc1 = jnp.dot(x_ref[pl.ds(0, m12), :], w1_ref[0], preferred_element_type=f32)
    for k in (1, 2):
        acc1 = acc1 + jnp.dot(x_ref[pl.ds(k, m12), :], w1_ref[k],
                              preferred_element_type=f32)
    h1 = jnp.maximum(acc1 + b1_ref[...], 0.0) * m1_ref[...]
    s1_ref[pl.ds(4, m12), :] = h1

    # conv2 (32->64, k=3, pad=4, dil=2): taps at row offsets 0/2/4 of s1.
    acc2 = jnp.dot(s1_ref[pl.ds(0, m12), :], w2_ref[0], preferred_element_type=f32)
    for k in (1, 2):
        acc2 = acc2 + jnp.dot(s1_ref[pl.ds(2 * k, m12), :], w2_ref[k],
                              preferred_element_type=f32)
    h2 = jnp.maximum(acc2 + b2_ref[...], 0.0) * m2_ref[...]
    s2_ref[pl.ds(8, m12), :] = h2

    # conv3 (64->128, k=3, pad=8, dil=4): taps at row offsets 0/4/8 of s2.
    acc3 = jnp.dot(s2_ref[pl.ds(0, n_flat), :], w3_ref[0], preferred_element_type=f32)
    for k in (1, 2):
        acc3 = acc3 + jnp.dot(s2_ref[pl.ds(4 * k, n_flat), :], w3_ref[k],
                              preferred_element_type=f32)
    h3 = jnp.maximum(acc3 + b3_ref[...], 0.0) * m3_ref[...]      # (n_flat, 128)

    # AdaptiveMaxPool1d(1) per sample.  Invalid rows were masked to 0 and valid
    # rows are >= 0 after ReLU, so the per-sample max over the full LP window
    # equals the exact max over the valid L3 rows.
    pooled = jnp.max(h3.reshape(bt, lp, 128), axis=1)             # (bt, 128)

    # F.normalize(dim=1, eps=1e-12) == x * rsqrt(max(sum(x^2), 1e-24)).
    ssq = jnp.sum(pooled * pooled, axis=1, keepdims=True)
    normed = pooled * lax.rsqrt(jnp.maximum(ssq, 1e-24))

    out = jnp.dot(normed, wl_ref[...], preferred_element_type=f32) + bl_ref[...]
    o_ref[...] = out.astype(o_ref.dtype)


# ---------------------------------------------------------------------------
# Wrapper: tiny input-side prep + single pallas_call
# ---------------------------------------------------------------------------
def wf_encoder_encode(x_ncl, params, *, bt=8):
    """x_ncl: (B, 2, L) NCL input (like PyTorch). Returns (B, encoding_size)."""
    batch, cin, length = x_ncl.shape
    assert cin == 2, "WFEncoder expects 2 input channels"
    l1, l2, l3 = length + 2, length + 6, length + 14
    lp = ((length + 22 + 7) // 8) * 8           # per-sample row stride (>= L+22)
    enc = params["wl"].shape[1]
    ep = ((enc + 127) // 128) * 128             # lane-dense output width

    bt = max(8, (bt // 8) * 8)                  # BT multiple of 8
    bp = ((batch + bt - 1) // bt) * bt          # padded batch
    n_flat = bt * lp
    m12 = n_flat - 8

    # Input prep: NCL -> NLC, place each sample in rows [2, 2+L) of its LP-row
    # window (conv1 left/right zero padding), flatten batch into the row axis.
    x = x_ncl.astype(jnp.float32)
    if bp != batch:
        x = jnp.pad(x, ((0, bp - batch), (0, 0), (0, 0)))
    xt = jnp.transpose(x, (0, 2, 1))                                  # (bp, L, 2)
    xp = jnp.pad(xt, ((0, 0), (2, lp - length - 2), (0, 0)))          # (bp, lp, 2)
    x_flat = xp.reshape(bp * lp, 2)

    # Per-sample validity masks (resident in VMEM, constant index map).
    rows12 = jnp.arange(m12, dtype=jnp.int32) % lp
    rows3 = jnp.arange(n_flat, dtype=jnp.int32) % lp
    m1 = (rows12 < l1).astype(jnp.float32)[:, None]
    m2 = (rows12 < l2).astype(jnp.float32)[:, None]
    m3 = (rows3 < l3).astype(jnp.float32)[:, None]

    wl, bl = params["wl"], params["bl"]
    if ep != enc:
        wl = jnp.pad(wl, ((0, 0), (0, ep - enc)))
        bl = jnp.pad(bl, ((0, ep - enc),))

    kern = functools.partial(_fused_encoder_kernel, bt=bt, lp=lp, l1=l1, l2=l2, l3=l3)

    flops = int(2 * bp * lp * (3 * 2 * 32 + 3 * 32 * 64 + 3 * 64 * 128)
                + 2 * bp * 128 * ep)
    bytes_accessed = int(4 * (x_flat.size + m1.size + m2.size + m3.size
                              + params["w1"].size + params["b1"].size
                              + params["w2"].size + params["b2"].size
                              + params["w3"].size + params["b3"].size
                              + wl.size + bl.size + bp * ep))

    out = pl.pallas_call(
        kern,
        out_shape=jax.ShapeDtypeStruct((bp, ep), jnp.float32),
        grid=(bp // bt,),
        in_specs=[
            pl.BlockSpec((n_flat, 2), lambda i: (i, 0)),
            pl.BlockSpec((m12, 1), lambda i: (0, 0)),
            pl.BlockSpec((m12, 1), lambda i: (0, 0)),
            pl.BlockSpec((n_flat, 1), lambda i: (0, 0)),
            pl.BlockSpec((3, 2, 32), lambda i: (0, 0, 0)),
            pl.BlockSpec((1, 32), lambda i: (0, 0)),
            pl.BlockSpec((3, 32, 64), lambda i: (0, 0, 0)),
            pl.BlockSpec((1, 64), lambda i: (0, 0)),
            pl.BlockSpec((3, 64, 128), lambda i: (0, 0, 0)),
            pl.BlockSpec((1, 128), lambda i: (0, 0)),
            pl.BlockSpec((128, ep), lambda i: (0, 0)),
            pl.BlockSpec((1, ep), lambda i: (0, 0)),
        ],
        out_specs=pl.BlockSpec((bt, ep), lambda i: (i, 0)),
        scratch_shapes=[
            pltpu.VMEM((n_flat, 32), jnp.float32),
            pltpu.VMEM((n_flat + 8, 64), jnp.float32),
        ],
        compiler_params=pltpu.CompilerParams(
            dimension_semantics=("parallel",),
            vmem_limit_bytes=16 * 1024 * 1024,
        ),
        cost_estimate=pl.CostEstimate(
            flops=flops, transcendentals=int(bp), bytes_accessed=bytes_accessed),
    )(x_flat, m1, m2, m3,
      params["w1"], params["b1"].reshape(1, 32),
      params["w2"], params["b2"].reshape(1, 64),
      params["w3"], params["b3"].reshape(1, 128),
      wl, bl.reshape(1, ep))
    return out[:batch, :enc]


def pca_fit_transform(x, n_components):
    # TODO(synk): sklearn PCA.fit_transform (SVD) has no clean Pallas/Mosaic
    # equivalent; computed with jnp.linalg.svd on the tiny (B, E) encoding.
    xc = x - jnp.mean(x, axis=0, keepdims=True)
    u, s, _ = jnp.linalg.svd(xc, full_matrices=False)
    # sklearn-style deterministic sign flip (svd_flip, U-based).
    col = jnp.arange(u.shape[1])
    signs = jnp.sign(u[jnp.argmax(jnp.abs(u), axis=0), col])
    signs = jnp.where(signs == 0, 1.0, signs)
    u = u * signs[None, :]
    return u[:, :n_components] * s[None, :n_components]


def wf_pca_encoder_forward(x_ncl, params, num_pca_components=3):
    """Full WFPcaEncoder forward: Pallas encoder + PCA head (classify=False)."""
    encoding = wf_encoder_encode(x_ncl, params)
    return pca_fit_transform(encoding, num_pca_components)


# ---------------------------------------------------------------------------
# Deterministic parameter init (PyTorch-default-style uniform bounds).
# Layout: conv (ksize, cin, cout) = torch.weight.permute(2,1,0); linear (in,out).
# ---------------------------------------------------------------------------
def init_params(key, encoding_size=64):
    keys = jax.random.split(key, 8)

    def conv_init(kw, kb, ksize, cin, cout):
        bound = 1.0 / (cin * ksize) ** 0.5
        w = jax.random.uniform(kw, (ksize, cin, cout), jnp.float32, -bound, bound)
        b = jax.random.uniform(kb, (cout,), jnp.float32, -bound, bound)
        return w, b

    w1, b1 = conv_init(keys[0], keys[1], 3, 2, 32)
    w2, b2 = conv_init(keys[2], keys[3], 3, 32, 64)
    w3, b3 = conv_init(keys[4], keys[5], 3, 64, 128)
    lb = 1.0 / 128.0 ** 0.5
    wl = jax.random.uniform(keys[6], (128, encoding_size), jnp.float32, -lb, lb)
    bl = jax.random.uniform(keys[7], (encoding_size,), jnp.float32, -lb, lb)
    return dict(w1=w1, b1=b1, w2=w2, b2=b2, w3=w3, b3=b3, wl=wl, bl=bl)


# ---------------------------------------------------------------------------
# Pure-JAX reference (same math, no Pallas) for the correctness check
# ---------------------------------------------------------------------------
def ref_encoder(x_ncl, params):
    x = jnp.transpose(x_ncl, (0, 2, 1)).astype(jnp.float32)
    for w, b, pad, dil in [
        (params["w1"], params["b1"], 2, 1),
        (params["w2"], params["b2"], 4, 2),
        (params["w3"], params["b3"], 8, 4),
    ]:
        xp = jnp.pad(x, ((0, 0), (pad, pad), (0, 0)))
        ksize = w.shape[0]
        l_out = xp.shape[1] - dil * (ksize - 1)
        acc = b[None, None, :]
        for k in range(ksize):
            acc = acc + jnp.einsum(
                "blc,co->blo", xp[:, k * dil:k * dil + l_out, :], w[k])
        x = jnp.maximum(acc, 0.0)
    pooled = jnp.max(x, axis=1)
    norm = jnp.sqrt(jnp.sum(pooled * pooled, axis=1, keepdims=True))
    normed = pooled / jnp.maximum(norm, 1e-12)
    return normed @ params["wl"] + params["bl"]


# ---------------------------------------------------------------------------
if __name__ == "__main__":
    key = jax.random.PRNGKey(0)
    k_x, k_p = jax.random.split(key)

    B, C_IN, L = 16, 2, 16          # B padded to a multiple of BT=8; grid = 2
    x = jax.random.normal(k_x, (B, C_IN, L), jnp.float32)
    params = init_params(k_p, encoding_size=64)

    # Pallas encoder vs pure-JAX reference.
    enc = jax.block_until_ready(wf_encoder_encode(x, params))
    assert enc.shape == (B, 64), enc.shape
    ref = jax.block_until_ready(ref_encoder(x, params))
    max_err = float(jnp.max(jnp.abs(enc - ref)))
    assert jnp.allclose(enc, ref, atol=1e-4, rtol=1e-4), max_err

    # Batch size not a multiple of BT (exercises batch padding path).
    enc_small = jax.block_until_ready(wf_encoder_encode(x[:5], params))
    ref_small = jax.block_until_ready(ref_encoder(x[:5], params))
    assert jnp.allclose(enc_small, ref_small, atol=1e-4, rtol=1e-4)

    # Full WFPcaEncoder forward (encoder kernel + PCA head).
    pca_out = jax.block_until_ready(wf_pca_encoder_forward(x, params, 3))
    assert pca_out.shape == (B, 3), pca_out.shape
    assert bool(jnp.all(jnp.isfinite(pca_out)))

    print("KERNEL_OK")
</pallas_src>

<mosaic_0001>
module attributes {stable_mosaic.version = 11 : i64} {
  func.func @_fused_encoder_kernel(%arg0: i32, %arg1: memref<320x2xf32, #tpu.memory_space<vmem>>, %arg2: memref<312x1xf32, #tpu.memory_space<vmem>>, %arg3: memref<312x1xf32, #tpu.memory_space<vmem>>, %arg4: memref<320x1xf32, #tpu.memory_space<vmem>>, %arg5: memref<3x2x32xf32, #tpu.memory_space<vmem>>, %arg6: memref<1x32xf32, #tpu.memory_space<vmem>>, %arg7: memref<3x32x64xf32, #tpu.memory_space<vmem>>, %arg8: memref<1x64xf32, #tpu.memory_space<vmem>>, %arg9: memref<3x64x128xf32, #tpu.memory_space<vmem>>, %arg10: memref<1x128xf32, #tpu.memory_space<vmem>>, %arg11: memref<128x128xf32, #tpu.memory_space<vmem>>, %arg12: memref<1x128xf32, #tpu.memory_space<vmem>>, %arg13: memref<8x128xf32, #tpu.memory_space<vmem>>, %arg14: memref<320x32xf32, #tpu.memory_space<vmem>>, %arg15: memref<328x64xf32, #tpu.memory_space<vmem>>) attributes {dimension_semantics = [#tpu.dimension_semantics<parallel>], iteration_bounds = array<i64: 2>, scalar_prefetch = 0 : i64, scratch_operands = 2 : i64, tpu.core_type = #tpu.core_type<tc>, window_params = [{transform_indices = @transform_0, window_bounds = array<i64: 320, 2>}, {pipeline_mode = #tpu.pipeline_mode<synchronous>, transform_indices = @transform_1, window_bounds = array<i64: 312, 1>}, {pipeline_mode = #tpu.pipeline_mode<synchronous>, transform_indices = @transform_2, window_bounds = array<i64: 312, 1>}, {pipeline_mode = #tpu.pipeline_mode<synchronous>, transform_indices = @transform_3, window_bounds = array<i64: 320, 1>}, {pipeline_mode = #tpu.pipeline_mode<synchronous>, transform_indices = @transform_4, window_bounds = array<i64: 3, 2, 32>}, {pipeline_mode = #tpu.pipeline_mode<synchronous>, transform_indices = @transform_5, window_bounds = array<i64: 1, 32>}, {pipeline_mode = #tpu.pipeline_mode<synchronous>, transform_indices = @transform_6, window_bounds = array<i64: 3, 32, 64>}, {pipeline_mode = #tpu.pipeline_mode<synchronous>, transform_indices = @transform_7, window_bounds = array<i64: 1, 64>}, {pipeline_mode = #tpu.pipeline_mode<synchronous>, transform_indices = @transform_8, window_bounds = array<i64: 3, 64, 128>}, {pipeline_mode = #tpu.pipeline_mode<synchronous>, transform_indices = @transform_9, window_bounds = array<i64: 1, 128>}, {pipeline_mode = #tpu.pipeline_mode<synchronous>, transform_indices = @transform_10, window_bounds = array<i64: 128, 128>}, {pipeline_mode = #tpu.pipeline_mode<synchronous>, transform_indices = @transform_11, window_bounds = array<i64: 1, 128>}, {transform_indices = @transform_12, window_bounds = array<i64: 8, 128>}]} {
    %cst = arith.constant 0.000000e+00 : f32
    %0 = vector.broadcast %cst : f32 to vector<8x32xf32>
    %c0 = arith.constant 0 : index
    %c0_0 = arith.constant 0 : index
    %1 = vector.load %arg14[%c0, %c0_0] : memref<320x32xf32, #tpu.memory_space<vmem>>, vector<8x32xf32>
    tpu.vector_store %arg14[%c0, %c0_0], %0 {strides = array<i32>} : memref<320x32xf32, #tpu.memory_space<vmem>>, vector<8x32xf32>,
    %cst_1 = arith.constant 0.000000e+00 : f32
    %2 = vector.broadcast %cst_1 : f32 to vector<8x32xf32>
    %c312 = arith.constant 312 : index
    %c0_2 = arith.constant 0 : index
    %3 = vector.load %arg14[%c312, %c0_2] : memref<320x32xf32, #tpu.memory_space<vmem>>, vector<8x32xf32>
    tpu.vector_store %arg14[%c312, %c0_2], %2 {strides = array<i32>} : memref<320x32xf32, #tpu.memory_space<vmem>>, vector<8x32xf32>,
    %cst_3 = arith.constant 0.000000e+00 : f32
    %4 = vector.broadcast %cst_3 : f32 to vector<8x64xf32>
    %c0_4 = arith.constant 0 : index
    %c0_5 = arith.constant 0 : index
    %5 = vector.load %arg15[%c0_4, %c0_5] : memref<328x64xf32, #tpu.memory_space<vmem>>, vector<8x64xf32>
    tpu.vector_store %arg15[%c0_4, %c0_5], %4 {strides = array<i32>} : memref<328x64xf32, #tpu.memory_space<vmem>>, vector<8x64xf32>,
    %cst_6 = arith.constant 0.000000e+00 : f32
    %6 = vector.broadcast %cst_6 : f32 to vector<8x64xf32>
    %c320 = arith.constant 320 : index
    %c0_7 = arith.constant 0 : index
    %7 = vector.load %arg15[%c320, %c0_7] : memref<328x64xf32, #tpu.memory_space<vmem>>, vector<8x64xf32>
    tpu.vector_store %arg15[%c320, %c0_7], %6 {strides = array<i32>} : memref<328x64xf32, #tpu.memory_space<vmem>>, vector<8x64xf32>,
    %c0_8 = arith.constant 0 : index
    %c0_9 = arith.constant 0 : index
    %8 = vector.load %arg1[%c0_8, %c0_9] : memref<320x2xf32, #tpu.memory_space<vmem>>, vector<312x2xf32>
    %c0_10 = arith.constant 0 : index
    %c0_11 = arith.constant 0 : index
    %c0_12 = arith.constant 0 : index
    %9 = vector.load %arg5[%c0_10, %c0_11, %c0_12] : memref<3x2x32xf32, #tpu.memory_space<vmem>>, vector<1x2x32xf32>
    %10 = vector.shape_cast %9 : vector<1x2x32xf32> to vector<2x32xf32>
    %cst_13 = arith.constant dense<0.000000e+00> : vector<312x32xf32>
    %11 = tpu.matmul %8, %10, %cst_13 {dimension_numbers = #tpu.dot_dimension_numbers<[1], [0], [0], [1], [0, 0, 1, 1], [], []>} : vector<312x2xf32>, vector<2x32xf32>, vector<312x32xf32> -> vector<312x32xf32>
    %c1 = arith.constant 1 : index
    %c0_14 = arith.constant 0 : index
    %12 = vector.load %arg1[%c1, %c0_14] : memref<320x2xf32, #tpu.memory_space<vmem>>, vector<312x2xf32>
    %c1_15 = arith.constant 1 : index
    %c0_16 = arith.constant 0 : index
    %c0_17 = arith.constant 0 : index
    %13 = vector.load %arg5[%c1_15, %c0_16, %c0_17] : memref<3x2x32xf32, #tpu.memory_space<vmem>>, vector<1x2x32xf32>
    %14 = vector.shape_cast %13 : vector<1x2x32xf32> to vector<2x32xf32>
    %cst_18 = arith.constant dense<0.000000e+00> : vector<312x32xf32>
    %15 = tpu.matmul %12, %14, %cst_18 {dimension_numbers = #tpu.dot_dimension_numbers<[1], [0], [0], [1], [0, 0, 1, 1], [], []>} : vector<312x2xf32>, vector<2x32xf32>, vector<312x32xf32> -> vector<312x32xf32>
    %16 = arith.addf %11, %15 : vector<312x32xf32>
    %c2 = arith.constant 2 : index
    %c0_19 = arith.constant 0 : index
    %17 = vector.load %arg1[%c2, %c0_19] : memref<320x2xf32, #tpu.memory_space<vmem>>, vector<312x2xf32>
    %c2_20 = arith.constant 2 : index
    %c0_21 = arith.constant 0 : index
    %c0_22 = arith.constant 0 : index
    %18 = vector.load %arg5[%c2_20, %c0_21, %c0_22] : memref<3x2x32xf32, #tpu.memory_space<vmem>>, vector<1x2x32xf32>
    %19 = vector.shape_cast %18 : vector<1x2x32xf32> to vector<2x32xf32>
    %cst_23 = arith.constant dense<0.000000e+00> : vector<312x32xf32>
    %20 = tpu.matmul %17, %19, %cst_23 {dimension_numbers = #tpu.dot_dimension_numbers<[1], [0], [0], [1], [0, 0, 1, 1], [], []>} : vector<312x2xf32>, vector<2x32xf32>, vector<312x32xf32> -> vector<312x32xf32>
    %21 = arith.addf %16, %20 : vector<312x32xf32>
    %c0_24 = arith.constant 0 : index
    %c0_25 = arith.constant 0 : index
    %22 = vector.load %arg6[%c0_24, %c0_25] : memref<1x32xf32, #tpu.memory_space<vmem>>, vector<1x32xf32>
    %23 = vector.broadcast %22 : vector<1x32xf32> to vector<312x32xf32>
    %24 = arith.addf %21, %23 : vector<312x32xf32>
    %cst_26 = arith.constant 0.000000e+00 : f32
    %25 = vector.broadcast %cst_26 : f32 to vector<312x32xf32>
    %26 = arith.maximumf %24, %25 : vector<312x32xf32>
    %c0_27 = arith.constant 0 : index
    %c0_28 = arith.constant 0 : index
    %27 = vector.load %arg2[%c0_27, %c0_28] : memref<312x1xf32, #tpu.memory_space<vmem>>, vector<312x1xf32>
    %28 = vector.broadcast %27 : vector<312x1xf32> to vector<312x32xf32>
    %29 = arith.mulf %26, %28 : vector<312x32xf32>
    %c4 = arith.constant 4 : index
    %c0_29 = arith.constant 0 : index
    %30 = vector.load %arg14[%c4, %c0_29] : memref<320x32xf32, #tpu.memory_space<vmem>>, vector<312x32xf32>
    tpu.vector_store %arg14[%c4, %c0_29], %29 {strides = array<i32>} : memref<320x32xf32, #tpu.memory_space<vmem>>, vector<312x32xf32>,
    %c0_30 = arith.constant 0 : index
    %c0_31 = arith.constant 0 : index
    %31 = vector.load %arg14[%c0_30, %c0_31] : memref<320x32xf32, #tpu.memory_space<vmem>>, vector<312x32xf32>
    %c0_32 = arith.constant 0 : index
    %c0_33 = arith.constant 0 : index
    %c0_34 = arith.constant 0 : index
    %32 = vector.load %arg7[%c0_32, %c0_33, %c0_34] : memref<3x32x64xf32, #tpu.memory_space<vmem>>, vector<1x32x64xf32>
    %33 = vector.shape_cast %32 : vector<1x32x64xf32> to vector<32x64xf32>
    %cst_35 = arith.constant dense<0.000000e+00> : vector<312x64xf32>
    %34 = tpu.matmul %31, %33, %cst_35 {dimension_numbers = #tpu.dot_dimension_numbers<[1], [0], [0], [1], [0, 0, 1, 1], [], []>} : vector<312x32xf32>, vector<32x64xf32>, vector<312x64xf32> -> vector<312x64xf32>
    %c2_36 = arith.constant 2 : index
    %c0_37 = arith.constant 0 : index
    %35 = vector.load %arg14[%c2_36, %c0_37] : memref<320x32xf32, #tpu.memory_space<vmem>>, vector<312x32xf32>
    %c1_38 = arith.constant 1 : index
    %c0_39 = arith.constant 0 : index
    %c0_40 = arith.constant 0 : index
    %36 = vector.load %arg7[%c1_38, %c0_39, %c0_40] : memref<3x32x64xf32, #tpu.memory_space<vmem>>, vector<1x32x64xf32>
    %37 = vector.shape_cast %36 : vector<1x32x64xf32> to vector<32x64xf32>
    %cst_41 = arith.constant dense<0.000000e+00> : vector<312x64xf32>
    %38 = tpu.matmul %35, %37, %cst_41 {dimension_numbers = #tpu.dot_dimension_numbers<[1], [0], [0], [1], [0, 0, 1, 1], [], []>} : vector<312x32xf32>, vector<32x64xf32>, vector<312x64xf32> -> vector<312x64xf32>
    %39 = arith.addf %34, %38 : vector<312x64xf32>
    %c4_42 = arith.constant 4 : index
    %c0_43 = arith.constant 0 : index
    %40 = vector.load %arg14[%c4_42, %c0_43] : memref<320x32xf32, #tpu.memory_space<vmem>>, vector<312x32xf32>
    %c2_44 = arith.constant 2 : index
    %c0_45 = arith.constant 0 : index
    %c0_46 = arith.constant 0 : index
    %41 = vector.load %arg7[%c2_44, %c0_45, %c0_46] : memref<3x32x64xf32, #tpu.memory_space<vmem>>, vector<1x32x64xf32>
    %42 = vector.shape_cast %41 : vector<1x32x64xf32> to vector<32x64xf32>
    %cst_47 = arith.constant dense<0.000000e+00> : vector<312x64xf32>
    %43 = tpu.matmul %40, %42, %cst_47 {dimension_numbers = #tpu.dot_dimension_numbers<[1], [0], [0], [1], [0, 0, 1, 1], [], []>} : vector<312x32xf32>, vector<32x64xf32>, vector<312x64xf32> -> vector<312x64xf32>
    %44 = arith.addf %39, %43 : vector<312x64xf32>
    %c0_48 = arith.constant 0 : index
    %c0_49 = arith.constant 0 : index
    %45 = vector.load %arg8[%c0_48, %c0_49] : memref<1x64xf32, #tpu.memory_space<vmem>>, vector<1x64xf32>
    %46 = vector.broadcast %45 : vector<1x64xf32> to vector<312x64xf32>
    %47 = arith.addf %44, %46 : vector<312x64xf32>
    %cst_50 = arith.constant 0.000000e+00 : f32
    %48 = vector.broadcast %cst_50 : f32 to vector<312x64xf32>
    %49 = arith.maximumf %47, %48 : vector<312x64xf32>
    %c0_51 = arith.constant 0 : index
    %c0_52 = arith.constant 0 : index
    %50 = vector.load %arg3[%c0_51, %c0_52] : memref<312x1xf32, #tpu.memory_space<vmem>>, vector<312x1xf32>
    %51 = vector.broadcast %50 : vector<312x1xf32> to vector<312x64xf32>
    %52 = arith.mulf %49, %51 : vector<312x64xf32>
    %c8 = arith.constant 8 : index
    %c0_53 = arith.constant 0 : index
    %53 = vector.load %arg15[%c8, %c0_53] : memref<328x64xf32, #tpu.memory_space<vmem>>, vector<312x64xf32>
    tpu.vector_store %arg15[%c8, %c0_53], %52 {strides = array<i32>} : memref<328x64xf32, #tpu.memory_space<vmem>>, vector<312x64xf32>,
    %c0_54 = arith.constant 0 : index
    %c0_55 = arith.constant 0 : index
    %54 = vector.load %arg15[%c0_54, %c0_55] : memref<328x64xf32, #tpu.memory_space<vmem>>, vector<320x64xf32>
    %c0_56 = arith.constant 0 : index
    %c0_57 = arith.constant 0 : index
    %c0_58 = arith.constant 0 : index
    %55 = vector.load %arg9[%c0_56, %c0_57, %c0_58] : memref<3x64x128xf32, #tpu.memory_space<vmem>>, vector<1x64x128xf32>
    %56 = vector.shape_cast %55 : vector<1x64x128xf32> to vector<64x128xf32>
    %cst_59 = arith.constant dense<0.000000e+00> : vector<320x128xf32>
    %57 = tpu.matmul %54, %56, %cst_59 {dimension_numbers = #tpu.dot_dimension_numbers<[1], [0], [0], [1], [0, 0, 1, 1], [], []>} : vector<320x64xf32>, vector<64x128xf32>, vector<320x128xf32> -> vector<320x128xf32>
    %c4_60 = arith.constant 4 : index
    %c0_61 = arith.constant 0 : index
    %58 = vector.load %arg15[%c4_60, %c0_61] : memref<328x64xf32, #tpu.memory_space<vmem>>, vector<320x64xf32>
    %c1_62 = arith.constant 1 : index
    %c0_63 = arith.constant 0 : index
    %c0_64 = arith.constant 0 : index
    %59 = vector.load %arg9[%c1_62, %c0_63, %c0_64] : memref<3x64x128xf32, #tpu.memory_space<vmem>>, vector<1x64x128xf32>
    %60 = vector.shape_cast %59 : vector<1x64x128xf32> to vector<64x128xf32>
    %cst_65 = arith.constant dense<0.000000e+00> : vector<320x128xf32>
    %61 = tpu.matmul %58, %60, %cst_65 {dimension_numbers = #tpu.dot_dimension_numbers<[1], [0], [0], [1], [0, 0, 1, 1], [], []>} : vector<320x64xf32>, vector<64x128xf32>, vector<320x128xf32> -> vector<320x128xf32>
    %62 = arith.addf %57, %61 : vector<320x128xf32>
    %c8_66 = arith.constant 8 : index
    %c0_67 = arith.constant 0 : index
    %63 = vector.load %arg15[%c8_66, %c0_67] : memref<328x64xf32, #tpu.memory_space<vmem>>, vector<320x64xf32>
    %c2_68 = arith.constant 2 : index
    %c0_69 = arith.constant 0 : index
    %c0_70 = arith.constant 0 : index
    %64 = vector.load %arg9[%c2_68, %c0_69, %c0_70] : memref<3x64x128xf32, #tpu.memory_space<vmem>>, vector<1x64x128xf32>
    %65 = vector.shape_cast %64 : vector<1x64x128xf32> to vector<64x128xf32>
    %cst_71 = arith.constant dense<0.000000e+00> : vector<320x128xf32>
    %66 = tpu.matmul %63, %65, %cst_71 {dimension_numbers = #tpu.dot_dimension_numbers<[1], [0], [0], [1], [0, 0, 1, 1], [], []>} : vector<320x64xf32>, vector<64x128xf32>, vector<320x128xf32> -> vector<320x128xf32>
    %67 = arith.addf %62, %66 : vector<320x128xf32>
    %c0_72 = arith.constant 0 : index
    %c0_73 = arith.constant 0 : index
    %68 = vector.load %arg10[%c0_72, %c0_73] : memref<1x128xf32, #tpu.memory_space<vmem>>, vector<1x128xf32>
    %69 = vector.broadcast %68 : vector<1x128xf32> to vector<320x128xf32>
    %70 = arith.addf %67, %69 : vector<320x128xf32>
    %cst_74 = arith.constant 0.000000e+00 : f32
    %71 = vector.broadcast %cst_74 : f32 to vector<320x128xf32>
    %72 = arith.maximumf %70, %71 : vector<320x128xf32>
    %c0_75 = arith.constant 0 : index
    %c0_76 = arith.constant 0 : index
    %73 = vector.load %arg4[%c0_75, %c0_76] : memref<320x1xf32, #tpu.memory_space<vmem>>, vector<320x1xf32>
    %74 = vector.broadcast %73 : vector<320x1xf32> to vector<320x128xf32>
    %75 = arith.mulf %72, %74 : vector<320x128xf32>
    %76 = vector.shape_cast %75 : vector<320x128xf32> to vector<8x40x128xf32>
    %cst_77 = arith.constant dense<0xFF800000> : vector<8x128xf32>
    %77 = vector.multi_reduction <maximumf>, %76, %cst_77 [1] : vector<8x40x128xf32> to vector<8x128xf32>
    %78 = arith.mulf %77, %77 : vector<8x128xf32>
    %cst_78 = arith.constant dense<0.000000e+00> : vector<8xf32>
    %79 = vector.multi_reduction <add>, %78, %cst_78 [1] : vector<8x128xf32> to vector<8xf32>
    %80 = vector.shape_cast %79 : vector<8xf32> to vector<8x1xf32>
    %cst_79 = arith.constant 1.000000e-24 : f32
    %81 = vector.broadcast %cst_79 : f32 to vector<8x1xf32>
    %82 = arith.maximumf %80, %81 : vector<8x1xf32>
    %83 = math.rsqrt %82 : vector<8x1xf32>
    %84 = vector.broadcast %83 : vector<8x1xf32> to vector<8x128xf32>
    %85 = arith.mulf %77, %84 : vector<8x128xf32>
    %c0_80 = arith.constant 0 : index
    %c0_81 = arith.constant 0 : index
    %86 = vector.load %arg11[%c0_80, %c0_81] : memref<128x128xf32, #tpu.memory_space<vmem>>, vector<128x128xf32>
    %cst_82 = arith.constant dense<0.000000e+00> : vector<8x128xf32>
    %87 = tpu.matmul %85, %86, %cst_82 {dimension_numbers = #tpu.dot_dimension_numbers<[1], [0], [0], [1], [0, 0, 1, 1], [], []>} : vector<8x128xf32>, vector<128x128xf32>, vector<8x128xf32> -> vector<8x128xf32>
    %c0_83 = arith.constant 0 : index
    %c0_84 = arith.constant 0 : index
    %88 = vector.load %arg12[%c0_83, %c0_84] : memref<1x128xf32, #tpu.memory_space<vmem>>, vector<1x128xf32>
    %89 = vector.broadcast %88 : vector<1x128xf32> to vector<8x128xf32>
    %90 = arith.addf %87, %89 : vector<8x128xf32>
    %c0_85 = arith.constant 0 : index
    %c0_86 = arith.constant 0 : index
    %91 = vector.load %arg13[%c0_85, %c0_86] : memref<8x128xf32, #tpu.memory_space<vmem>>, vector<8x128xf32>
    tpu.vector_store %arg13[%c0_85, %c0_86], %90 {strides = array<i32>} : memref<8x128xf32, #tpu.memory_space<vmem>>, vector<8x128xf32>,
    return
  }
  func.func @transform_0(%arg0: i32) -> (i32, i32) {
    %c0_i32 = arith.constant 0 : i32
    %c0_i32_0 = arith.constant 0 : i32
    return %arg0, %c0_i32 : i32, i32
  }
  func.func @transform_1(%arg0: i32) -> (i32, i32) {
    %c0_i32 = arith.constant 0 : i32
    %c0_i32_0 = arith.constant 0 : i32
    %c0_i32_1 = arith.constant 0 : i32
    return %c0_i32, %c0_i32_0 : i32, i32
  }
  func.func @transform_2(%arg0: i32) -> (i32, i32) {
    %c0_i32 = arith.constant 0 : i32
    %c0_i32_0 = arith.constant 0 : i32
    %c0_i32_1 = arith.constant 0 : i32
    return %c0_i32, %c0_i32_0 : i32, i32
  }
  func.func @transform_3(%arg0: i32) -> (i32, i32) {
    %c0_i32 = arith.constant 0 : i32
    %c0_i32_0 = arith.constant 0 : i32
    %c0_i32_1 = arith.constant 0 : i32
    return %c0_i32, %c0_i32_0 : i32, i32
  }
  func.func @transform_4(%arg0: i32) -> (i32, i32, i32) {
    %c0_i32 = arith.constant 0 : i32
    %c0_i32_0 = arith.constant 0 : i32
    %c0_i32_1 = arith.constant 0 : i32
    %c0_i32_2 = arith.constant 0 : i32
    return %c0_i32, %c0_i32_0, %c0_i32_1 : i32, i32, i32
  }
  func.func @transform_5(%arg0: i32) -> (i32, i32) {
    %c0_i32 = arith.constant 0 : i32
    %c0_i32_0 = arith.constant 0 : i32
    %c0_i32_1 = arith.constant 0 : i32
    return %c0_i32, %c0_i32_0 : i32, i32
  }
  func.func @transform_6(%arg0: i32) -> (i32, i32, i32) {
    %c0_i32 = arith.constant 0 : i32
    %c0_i32_0 = arith.constant 0 : i32
    %c0_i32_1 = arith.constant 0 : i32
    %c0_i32_2 = arith.constant 0 : i32
    return %c0_i32, %c0_i32_0, %c0_i32_1 : i32, i32, i32
  }
  func.func @transform_7(%arg0: i32) -> (i32, i32) {
    %c0_i32 = arith.constant 0 : i32
    %c0_i32_0 = arith.constant 0 : i32
    %c0_i32_1 = arith.constant 0 : i32
    return %c0_i32, %c0_i32_0 : i32, i32
  }
  func.func @transform_8(%arg0: i32) -> (i32, i32, i32) {
    %c0_i32 = arith.constant 0 : i32
    %c0_i32_0 = arith.constant 0 : i32
    %c0_i32_1 = arith.constant 0 : i32
    %c0_i32_2 = arith.constant 0 : i32
    return %c0_i32, %c0_i32_0, %c0_i32_1 : i32, i32, i32
  }
  func.func @transform_9(%arg0: i32) -> (i32, i32) {
    %c0_i32 = arith.constant 0 : i32
    %c0_i32_0 = arith.constant 0 : i32
    %c0_i32_1 = arith.constant 0 : i32
    return %c0_i32, %c0_i32_0 : i32, i32
  }
  func.func @transform_10(%arg0: i32) -> (i32, i32) {
    %c0_i32 = arith.constant 0 : i32
    %c0_i32_0 = arith.constant 0 : i32
    %c0_i32_1 = arith.constant 0 : i32
    return %c0_i32, %c0_i32_0 : i32, i32
  }
  func.func @transform_11(%arg0: i32) -> (i32, i32) {
    %c0_i32 = arith.constant 0 : i32
    %c0_i32_0 = arith.constant 0 : i32
    %c0_i32_1 = arith.constant 0 : i32
    return %c0_i32, %c0_i32_0 : i32, i32
  }
  func.func @transform_12(%arg0: i32) -> (i32, i32) {
    %c0_i32 = arith.constant 0 : i32
    %c0_i32_0 = arith.constant 0 : i32
    return %arg0, %c0_i32 : i32, i32
  }
}

</mosaic_0001>

<llo_original>
// kernel: tpu_custom_call.1
$region0: #{tpu_custom_call.1}
  #allocation0 [shape = 'u32[]', space=smem, size = 0x4, offset = 0x4, fixed_abs, tag = 'smem constant byte address 0x4 - core index']
  #allocation1 [shape = 'u32[144,128]{1,0:T(1,128)}', space=vmem, size = 0x12000, scoped, tag = 'internal scratch']
  #allocation2 [shape = 'f32[320,32]{1,0:T(8,128)}', space=vmem, size = 0x28000, scoped, tag = 'scratch operand']
  #allocation3 [shape = 'f32[328,64]{1,0:T(8,128)}', space=vmem, size = 0x29000, scoped, tag = 'scratch operand']
  %s0 = inlined_call_operand.vmem [shape: f32[640,2], index: 0, kind: input, shape index: {}]
  %s1 = inlined_call_operand.vmem [shape: f32[312,1], index: 1, kind: input, shape index: {}]
  %s2 = inlined_call_operand.vmem [shape: f32[312,1], index: 2, kind: input, shape index: {}]
  %s3 = inlined_call_operand.vmem [shape: f32[320,1], index: 3, kind: input, shape index: {}]
  %s4 = inlined_call_operand.vmem [shape: f32[3,2,32], index: 4, kind: input, shape index: {}]
  %s5 = inlined_call_operand.vmem [shape: f32[1,32], index: 5, kind: input, shape index: {}]
  %s6 = inlined_call_operand.vmem [shape: f32[3,32,64], index: 6, kind: input, shape index: {}]
  %s7 = inlined_call_operand.vmem [shape: f32[1,64], index: 7, kind: input, shape index: {}]
  %s8 = inlined_call_operand.vmem [shape: f32[3,64,128], index: 8, kind: input, shape index: {}]
  %s9 = inlined_call_operand.vmem [shape: f32[1,128], index: 9, kind: input, shape index: {}]
  %s10 = inlined_call_operand.vmem [shape: f32[128,128], index: 10, kind: input, shape index: {}]
  %s11 = inlined_call_operand.vmem [shape: f32[1,128], index: 11, kind: input, shape index: {}]
  %s12 = inlined_call_operand.hbm [shape: f32[16,128], index: 12, kind: output, shape index: {}]
  %s13 = sld [smem:[#allocation0]]
  $region81: #{tpu_custom_call.1} parent=0
    _
  %s15 = ssub.s32 1, %s13
  %s16 = scalar_select 0, %s15, %s13
  $region1: #{tpu_custom_call.1} parent=0
    #allocation4 [shape = 'u8[8192]{0}', space=vmem, size = 0x2000, scoped, tag = 'output window, operand 0']
    #allocation5 [shape = 's32[2]{0}', space=sflag, size = 0x8, scoped, tag = 'scoped memory for tpu_custom_call.1']
    %17 = vsyncpa [#allocation5], 0
    %s18 = scalar_lea.sflag [#allocation5], 1
    %19 = vsyncpa %s18, 0
    loop: start=0, step=1, limit=4
    $region2: #{tpu_custom_call.1} parent=1 // loop_pre_header
      _
    $region3: #{tpu_custom_call.1} parent=1 // loop_header
      %s21 = sphi 0, %s25
      %p22 = scmp.ge.s32.totalorder %s21, 4
      %s31 = sphi 0, %s33
      %s34 = sphi 0, %s31
      %s35 = sphi 0, %s34
      %s51 = sphi 0, %s35
      %s55 = sphi 0, %s55
      %s57 = sphi 0, %s55
      %s58 = sphi 0, %s57
      %s72 = sphi 0, %s58
      %s76 = sphi 0, %s76
      %s78 = sphi 0, %s76
      %s79 = sphi 0, %s78
      %s93 = sphi 0, %s79
      %s97 = sphi 0, %s97
      %s99 = sphi 0, %s97
      %s100 = sphi 0, %s99
      %s114 = sphi 0, %s100
      %s118 = sphi 0, %s118
      %s120 = sphi 0, %s118
      %s121 = sphi 0, %s120
      %s135 = sphi 0, %s121
      %s139 = sphi 0, %s139
      %s141 = sphi 0, %s139
      %s142 = sphi 0, %s141
      %s156 = sphi 0, %s142
      %s160 = sphi 0, %s160
      %s162 = sphi 0, %s160
      %s163 = sphi 0, %s162
      %s177 = sphi 0, %s163
      %s181 = sphi 0, %s181
      %s183 = sphi 0, %s181
      %s184 = sphi 0, %s183
      %s198 = sphi 0, %s184
      %s202 = sphi 0, %s202
      %s204 = sphi 0, %s202
      %s205 = sphi 0, %s204
      %s219 = sphi 0, %s205
      %s223 = sphi 0, %s223
      %s225 = sphi 0, %s223
      %s226 = sphi 0, %s225
      %s240 = sphi 0, %s226
      %s244 = sphi 0, %s244
      %s246 = sphi 0, %s244
      %s247 = sphi 0, %s246
      %s261 = sphi 0, %s247
      %s265 = sphi 0, %s265
      %s267 = sphi 0, %s265
      %s268 = sphi 0, %s267
      %s282 = sphi 0, %s268
      %s288 = sphi 0, %s290
      %s291 = sphi 0, %s288
      %s292 = sphi 0, %s291
      %s308 = sphi 0, %s292
    $region4: #{tpu_custom_call.1} parent=1 // loop_header_branch
      %24 = sbr.rel (%p22) target = $region8
    $region5: #{tpu_custom_call.1} parent=1 // loop_body
      %s26 = ssub.s32 %s21, 1
      %s27 = ssub.s32 %s21, 2
      %s28 = sadd.s32 %s21, 1
      %s29 = ssub.s32 %s21, %s28
      %p30 = scmp.eq.s32.totalorder %s29, 0
      %s32 = sadd.s32 %s31, 1
      %s33 = scalar_select %p30, %s31, %s32
      %p36 = pneg %p30
      %p37 = scmp.eq.s32.totalorder %s21, 1
      %p38 = por %p36, %p37
      %p39 = scmp.ne.s32.totalorder %s31, %s34
      %p40 = scmp.eq.s32.totalorder %s21, 0
      %p41 = por %p39, %p40
      %p42 = scmp.ne.s32.totalorder %s31, %s34
      %p43 = scmp.eq.s32.totalorder %s26, 1
      %p44 = por %p42, %p43
      %p45 = scmp.ne.s32.totalorder %s34, %s35
      %p46 = scmp.eq.s32.totalorder %s26, 0
      %p47 = por %p45, %p46
      %p48 = scmp.ne.s32.totalorder %s34, %s35
      %p49 = scmp.eq.s32.totalorder %s27, 1
      %p50 = por %p48, %p49
      %p52 = scmp.ne.s32.totalorder %s35, %s51
      %p53 = scmp.eq.s32.totalorder %s27, 0
      %p54 = por %p52, %p53
      %s56 = sadd.s32 %s55, 1
      %p59 = scmp.eq.s32.totalorder %s21, 1
      %p60 = scmp.ne.s32.totalorder %s55, %s57
      %p61 = scmp.eq.s32.totalorder %s21, 0
      %p62 = por %p60, %p61
      %p63 = scmp.ne.s32.totalorder %s55, %s57
      %p64 = scmp.eq.s32.totalorder %s26, 1
      %p65 = por %p63, %p64
      %p66 = scmp.ne.s32.totalorder %s57, %s58
      %p67 = scmp.eq.s32.totalorder %s26, 0
      %p68 = por %p66, %p67
      %p69 = scmp.ne.s32.totalorder %s57, %s58
      %p70 = scmp.eq.s32.totalorder %s27, 1
      %p71 = por %p69, %p70
      %p73 = scmp.ne.s32.totalorder %s58, %s72
      %p74 = scmp.eq.s32.totalorder %s27, 0
      %p75 = por %p73, %p74
      %s77 = sadd.s32 %s76, 1
      %p80 = scmp.eq.s32.totalorder %s21, 1
      %p81 = scmp.ne.s32.totalorder %s76, %s78
      %p82 = scmp.eq.s32.totalorder %s21, 0
      %p83 = por %p81, %p82
      %p84 = scmp.ne.s32.totalorder %s76, %s78
      %p85 = scmp.eq.s32.totalorder %s26, 1
      %p86 = por %p84, %p85
      %p87 = scmp.ne.s32.totalorder %s78, %s79
      %p88 = scmp.eq.s32.totalorder %s26, 0
      %p89 = por %p87, %p88
      %p90 = scmp.ne.s32.totalorder %s78, %s79
      %p91 = scmp.eq.s32.totalorder %s27, 1
      %p92 = por %p90, %p91
      %p94 = scmp.ne.s32.totalorder %s79, %s93
      %p95 = scmp.eq.s32.totalorder %s27, 0
      %p96 = por %p94, %p95
      %s98 = sadd.s32 %s97, 1
      %p101 = scmp.eq.s32.totalorder %s21, 1
      %p102 = scmp.ne.s32.totalorder %s97, %s99
      %p103 = scmp.eq.s32.totalorder %s21, 0
      %p104 = por %p102, %p103
      %p105 = scmp.ne.s32.totalorder %s97, %s99
      %p106 = scmp.eq.s32.totalorder %s26, 1
      %p107 = por %p105, %p106
      %p108 = scmp.ne.s32.totalorder %s99, %s100
      %p109 = scmp.eq.s32.totalorder %s26, 0
      %p110 = por %p108, %p109
      %p111 = scmp.ne.s32.totalorder %s99, %s100
      %p112 = scmp.eq.s32.totalorder %s27, 1
      %p113 = por %p111, %p112
      %p115 = scmp.ne.s32.totalorder %s100, %s114
      %p116 = scmp.eq.s32.totalorder %s27, 0
      %p117 = por %p115, %p116
      %s119 = sadd.s32 %s118, 1
      %p122 = scmp.eq.s32.totalorder %s21, 1
      %p123 = scmp.ne.s32.totalorder %s118, %s120
      %p124 = scmp.eq.s32.totalorder %s21, 0
      %p125 = por %p123, %p124
      %p126 = scmp.ne.s32.totalorder %s118, %s120
      %p127 = scmp.eq.s32.totalorder %s26, 1
      %p128 = por %p126, %p127
      %p129 = scmp.ne.s32.totalorder %s120, %s121
      %p130 = scmp.eq.s32.totalorder %s26, 0
      %p131 = por %p129, %p130
      %p132 = scmp.ne.s32.totalorder %s120, %s121
      %p133 = scmp.eq.s32.totalorder %s27, 1
      %p134 = por %p132, %p133
      %p136 = scmp.ne.s32.totalorder %s121, %s135
      %p137 = scmp.eq.s32.totalorder %s27, 0
      %p138 = por %p136, %p137
      %s140 = sadd.s32 %s139, 1
      %p143 = scmp.eq.s32.totalorder %s21, 1
      %p144 = scmp.ne.s32.totalorder %s139, %s141
      %p145 = scmp.eq.s32.totalorder %s21, 0
      %p146 = por %p144, %p145
      %p147 = scmp.ne.s32.totalorder %s139, %s141
      %p148 = scmp.eq.s32.totalorder %s26, 1
      %p149 = por %p147, %p148
      %p150 = scmp.ne.s32.totalorder %s141, %s142
      %p151 = scmp.eq.s32.totalorder %s26, 0
      %p152 = por %p150, %p151
      %p153 = scmp.ne.s32.totalorder %s141, %s142
      %p154 = scmp.eq.s32.totalorder %s27, 1
      %p155 = por %p153, %p154
      %p157 = scmp.ne.s32.totalorder %s142, %s156
      %p158 = scmp.eq.s32.totalorder %s27, 0
      %p159 = por %p157, %p158
      %s161 = sadd.s32 %s160, 1
      %p164 = scmp.eq.s32.totalorder %s21, 1
      %p165 = scmp.ne.s32.totalorder %s160, %s162
      %p166 = scmp.eq.s32.totalorder %s21, 0
      %p167 = por %p165, %p166
      %p168 = scmp.ne.s32.totalorder %s160, %s162
      %p169 = scmp.eq.s32.totalorder %s26, 1
      %p170 = por %p168, %p169
      %p171 = scmp.ne.s32.totalorder %s162, %s163
      %p172 = scmp.eq.s32.totalorder %s26, 0
      %p173 = por %p171, %p172
      %p174 = scmp.ne.s32.totalorder %s162, %s163
      %p175 = scmp.eq.s32.totalorder %s27, 1
      %p176 = por %p174, %p175
      %p178 = scmp.ne.s32.totalorder %s163, %s177
      %p179 = scmp.eq.s32.totalorder %s27, 0
      %p180 = por %p178, %p179
      %s182 = sadd.s32 %s181, 1
      %p185 = scmp.eq.s32.totalorder %s21, 1
      %p186 = scmp.ne.s32.totalorder %s181, %s183
      %p187 = scmp.eq.s32.totalorder %s21, 0
      %p188 = por %p186, %p187
      %p189 = scmp.ne.s32.totalorder %s181, %s183
      %p190 = scmp.eq.s32.totalorder %s26, 1
      %p191 = por %p189, %p190
      %p192 = scmp.ne.s32.totalorder %s183, %s184
      %p193 = scmp.eq.s32.totalorder %s26, 0
      %p194 = por %p192, %p193
      %p195 = scmp.ne.s32.totalorder %s183, %s184
      %p196 = scmp.eq.s32.totalorder %s27, 1
      %p197 = por %p195, %p196
      %p199 = scmp.ne.s32.totalorder %s184, %s198
      %p200 = scmp.eq.s32.totalorder %s27, 0
      %p201 = por %p199, %p200
      %s203 = sadd.s32 %s202, 1
      %p206 = scmp.eq.s32.totalorder %s21, 1
      %p207 = scmp.ne.s32.totalorder %s202, %s204
      %p208 = scmp.eq.s32.totalorder %s21, 0
      %p209 = por %p207, %p208
      %p210 = scmp.ne.s32.totalorder %s202, %s204
      %p211 = scmp.eq.s32.totalorder %s26, 1
      %p212 = por %p210, %p211
      %p213 = scmp.ne.s32.totalorder %s204, %s205
      %p214 = scmp.eq.s32.totalorder %s26, 0
      %p215 = por %p213, %p214
      %p216 = scmp.ne.s32.totalorder %s204, %s205
      %p217 = scmp.eq.s32.totalorder %s27, 1
      %p218 = por %p216, %p217
      %p220 = scmp.ne.s32.totalorder %s205, %s219
      %p221 = scmp.eq.s32.totalorder %s27, 0
      %p222 = por %p220, %p221
      %s224 = sadd.s32 %s223, 1
      %p227 = scmp.eq.s32.totalorder %s21, 1
      %p228 = scmp.ne.s32.totalorder %s223, %s225
      %p229 = scmp.eq.s32.totalorder %s21, 0
      %p230 = por %p228, %p229
      %p231 = scmp.ne.s32.totalorder %s223, %s225
      %p232 = scmp.eq.s32.totalorder %s26, 1
      %p233 = por %p231, %p232
      %p234 = scmp.ne.s32.totalorder %s225, %s226
      %p235 = scmp.eq.s32.totalorder %s26, 0
      %p236 = por %p234, %p235
      %p237 = scmp.ne.s32.totalorder %s225, %s226
      %p238 = scmp.eq.s32.totalorder %s27, 1
      %p239 = por %p237, %p238
      %p241 = scmp.ne.s32.totalorder %s226, %s240
      %p242 = scmp.eq.s32.totalorder %s27, 0
      %p243 = por %p241, %p242
      %s245 = sadd.s32 %s244, 1
      %p248 = scmp.eq.s32.totalorder %s21, 1
      %p249 = scmp.ne.s32.totalorder %s244, %s246
      %p250 = scmp.eq.s32.totalorder %s21, 0
      %p251 = por %p249, %p250
      %p252 = scmp.ne.s32.totalorder %s244, %s246
      %p253 = scmp.eq.s32.totalorder %s26, 1
      %p254 = por %p252, %p253
      %p255 = scmp.ne.s32.totalorder %s246, %s247
      %p256 = scmp.eq.s32.totalorder %s26, 0
      %p257 = por %p255, %p256
      %p258 = scmp.ne.s32.totalorder %s246, %s247
      %p259 = scmp.eq.s32.totalorder %s27, 1
      %p260 = por %p258, %p259
      %p262 = scmp.ne.s32.totalorder %s247, %s261
      %p263 = scmp.eq.s32.totalorder %s27, 0
      %p264 = por %p262, %p263
      %s266 = sadd.s32 %s265, 1
      %p269 = scmp.eq.s32.totalorder %s21, 1
      %p270 = scmp.ne.s32.totalorder %s265, %s267
      %p271 = scmp.eq.s32.totalorder %s21, 0
      %p272 = por %p270, %p271
      %p273 = scmp.ne.s32.totalorder %s265, %s267
      %p274 = scmp.eq.s32.totalorder %s26, 1
      %p275 = por %p273, %p274
      %p276 = scmp.ne.s32.totalorder %s267, %s268
      %p277 = scmp.eq.s32.totalorder %s26, 0
      %p278 = por %p276, %p277
      %p279 = scmp.ne.s32.totalorder %s267, %s268
      %p280 = scmp.eq.s32.totalorder %s27, 1
      %p281 = por %p279, %p280
      %p283 = scmp.ne.s32.totalorder %s268, %s282
      %p284 = scmp.eq.s32.totalorder %s27, 0
      %p285 = por %p283, %p284
      %s286 = ssub.s32 %s21, %s28
      %p287 = scmp.eq.s32.totalorder %s286, 0
      %s289 = sadd.s32 %s288, 1
      %s290 = scalar_select %p287, %s288, %s289
      %p293 = pneg %p287
      %p294 = scmp.eq.s32.totalorder %s21, 1
      %p295 = por %p293, %p294
      %p296 = scmp.ne.s32.totalorder %s288, %s291
      %p297 = scmp.eq.s32.totalorder %s21, 0
      %p298 = por %p296, %p297
      %p299 = scmp.ne.s32.totalorder %s288, %s291
      %p300 = scmp.eq.s32.totalorder %s26, 1
      %p301 = por %p299, %p300
      %p302 = scmp.ne.s32.totalorder %s291, %s292
      %p303 = scmp.eq.s32.totalorder %s26, 0
      %p304 = por %p302, %p303
      %p305 = scmp.ne.s32.totalorder %s291, %s292
      %p306 = scmp.eq.s32.totalorder %s27, 1
      %p307 = por %p305, %p306
      %p309 = scmp.ne.s32.totalorder %s292, %s308
      %p310 = scmp.eq.s32.totalorder %s27, 0
      %p311 = por %p309, %p310
      %p312 = scmp.le.s32.totalorder 1, %s21
      %p313 = scmp.lt.s32.totalorder %s21, 3
      %p314 = pnand %p312, %p313
      %p315 = pneg %p314
      // Predicated region
      $region9: #{tpu_custom_call.1} parent=5 // pred_check
        _
      $region10: #{tpu_custom_call.1} parent=5 // pred_check_branch
        %317 = sbr.rel (%p314) target = $region12
      $region11: #{tpu_custom_call.1} parent=5 // pred_region
        %s318 = ssub.s32 %s21, 1
        // Predicated region
        $region13: #{tpu_custom_call.1} parent=11 // pred_check
          %p319 = pneg %p68
        $region14: #{tpu_custom_call.1} parent=11 // pred_check_branch
          %321 = sbr.rel (%p319) target = $region16
        $region15: #{tpu_custom_call.1} parent=11 // pred_region
          _
        $region16: #{tpu_custom_call.1} parent=11 // pred_fallthru
          _
        // Predicated region
        $region17: #{tpu_custom_call.1} parent=11 // pred_check
          %p322 = pneg %p89
        $region18: #{tpu_custom_call.1} parent=11 // pred_check_branch
          %324 = sbr.rel (%p322) target = $region20
        $region19: #{tpu_custom_call.1} parent=11 // pred_region
          _
        $region20: #{tpu_custom_call.1} parent=11 // pred_fallthru
          _
        // Predicated region
        $region21: #{tpu_custom_call.1} parent=11 // pred_check
          %p325 = pneg %p110
        $region22: #{tpu_custom_call.1} parent=11 // pred_check_branch
          %327 = sbr.rel (%p325) target = $region24
        $region23: #{tpu_custom_call.1} parent=11 // pred_region
          _
        $region24: #{tpu_custom_call.1} parent=11 // pred_fallthru
          _
        // Predicated region
        $region25: #{tpu_custom_call.1} parent=11 // pred_check
          %p328 = pneg %p131
        $region26: #{tpu_custom_call.1} parent=11 // pred_check_branch
          %330 = sbr.rel (%p328) target = $region28
        $region27: #{tpu_custom_call.1} parent=11 // pred_region
          _
        $region28: #{tpu_custom_call.1} parent=11 // pred_fallthru
          _
        // Predicated region
        $region29: #{tpu_custom_call.1} parent=11 // pred_check
          %p331 = pneg %p152
        $region30: #{tpu_custom_call.1} parent=11 // pred_check_branch
          %333 = sbr.rel (%p331) target = $region32
        $region31: #{tpu_custom_call.1} parent=11 // pred_region
          _
        $region32: #{tpu_custom_call.1} parent=11 // pred_fallthru
          _
        // Predicated region
        $region33: #{tpu_custom_call.1} parent=11 // pred_check
          %p334 = pneg %p173
        $region34: #{tpu_custom_call.1} parent=11 // pred_check_branch
          %336 = sbr.rel (%p334) target = $region36
        $region35: #{tpu_custom_call.1} parent=11 // pred_region
          _
        $region36: #{tpu_custom_call.1} parent=11 // pred_fallthru
          _
        // Predicated region
        $region37: #{tpu_custom_call.1} parent=11 // pred_check
          %p337 = pneg %p194
        $region38: #{tpu_custom_call.1} parent=11 // pred_check_branch
          %339 = sbr.rel (%p337) target = $region40
        $region39: #{tpu_custom_call.1} parent=11 // pred_region
          _
        $region40: #{tpu_custom_call.1} parent=11 // pred_fallthru
          _
        // Predicated region
        $region41: #{tpu_custom_call.1} parent=11 // pred_check
          %p340 = pneg %p215
        $region42: #{tpu_custom_call.1} parent=11 // pred_check_branch
          %342 = sbr.rel (%p340) target = $region44
        $region43: #{tpu_custom_call.1} parent=11 // pred_region
          _
        $region44: #{tpu_custom_call.1} parent=11 // pred_fallthru
          _
        // Predicated region
        $region45: #{tpu_custom_call.1} parent=11 // pred_check
          %p343 = pneg %p236
        $region46: #{tpu_custom_call.1} parent=11 // pred_check_branch
          %345 = sbr.rel (%p343) target = $region48
        $region47: #{tpu_custom_call.1} parent=11 // pred_region
          _
        $region48: #{tpu_custom_call.1} parent=11 // pred_fallthru
          _
        // Predicated region
        $region49: #{tpu_custom_call.1} parent=11 // pred_check
          %p346 = pneg %p257
        $region50: #{tpu_custom_call.1} parent=11 // pred_check_branch
          %348 = sbr.rel (%p346) target = $region52
        $region51: #{tpu_custom_call.1} parent=11 // pred_region
          _
        $region52: #{tpu_custom_call.1} parent=11 // pred_fallthru
          _
        // Predicated region
        $region53: #{tpu_custom_call.1} parent=11 // pred_check
          %p349 = pneg %p278
        $region54: #{tpu_custom_call.1} parent=11 // pred_check_branch
          %351 = sbr.rel (%p349) target = $region56
        $region55: #{tpu_custom_call.1} parent=11 // pred_region
          _
        $region56: #{tpu_custom_call.1} parent=11 // pred_fallthru
          _
      $region12: #{tpu_custom_call.1} parent=5 // pred_fallthru
        _
      %p352 = scmp.lt.s32.totalorder %s21, 2
      // Predicated region
      $region57: #{tpu_custom_call.1} parent=5 // pred_check
        %p353 = pneg %p352
      $region58: #{tpu_custom_call.1} parent=5 // pred_check_branch
        %355 = sbr.rel (%p353) target = $region60
      $region59: #{tpu_custom_call.1} parent=5 // pred_region
        // Predicated region
        $region61: #{tpu_custom_call.1} parent=59 // pred_check
          %p356 = pneg %p41
        $region62: #{tpu_custom_call.1} parent=59 // pred_check_branch
          %358 = sbr.rel (%p356) target = $region64
        $region63: #{tpu_custom_call.1} parent=59 // pred_region
          %s359 = smul.u32 40, %s21
          %p360 = scmp.lt.s32.totalorder %s359, 79
          %s361 = scalar_select %p360, %s359, 79
          %s362 = smul.addr %s361, 8
          %s363 = scalar_lea.vmem %s0, %s362
          %s364 = smul.u32 40, %s21
        $region64: #{tpu_custom_call.1} parent=59 // pred_fallthru
          _
      $region60: #{tpu_custom_call.1} parent=5 // pred_fallthru
        _
      %p365 = scmp.le.s32.totalorder 1, %s21
      %p366 = scmp.lt.s32.totalorder %s21, 3
      %p367 = pnand %p365, %p366
      %p368 = pneg %p367
      // Predicated region
      $region65: #{tpu_custom_call.1} parent=5 // pred_check
        _
      $region66: #{tpu_custom_call.1} parent=5 // pred_check_branch
        %370 = sbr.rel (%p367) target = $region68
      $region67: #{tpu_custom_call.1} parent=5 // pred_region
        %s371 = ssub.s32 %s21, 1
        %s372 = smul.u32 40, %s26
        %p373 = scmp.lt.s32.totalorder %s372, 79
        %s374 = scalar_select %p373, %s372, 79
        %s375 = smul.addr %s374, 8
        %s376 = scalar_lea.vmem %s0, %s375
        %p377 = pneg %p47
        %p378 = pneg %p44
        %p379 = pneg %p68
        %p380 = pneg %p65
        %p381 = pneg %p89
        %p382 = pneg %p86
        %p383 = pneg %p110
        %p384 = pneg %p107
        %p385 = pneg %p131
        %p386 = pneg %p128
        %p387 = pneg %p152
        %p388 = pneg %p149
        %p389 = pneg %p173
        %p390 = pneg %p170
        %p391 = pneg %p194
        %p392 = pneg %p191
        %p393 = pneg %p215
        %p394 = pneg %p212
        %p395 = pneg %p236
        %p396 = pneg %p233
        %p397 = pneg %p257
        %p398 = pneg %p254
        %p399 = pneg %p278
        %p400 = pneg %p275
        %p401 = pneg %p304
        %p402 = pneg %p301
        %s403 = sand.u32 %s291, 1
        %s404 = scalar_lea.sflag [#allocation5], %s403
        %s405 = sand.u32 %s291, 1
        %s406 = smul.addr %s405, 8
        %s407 = scalar_lea.vmem [#allocation4], %s406
        %s408 = smul.u32 40, %s26
        %p409 = scmp.lt.s32.totalorder %s408, 79
        %s410 = scalar_select %p409, %s408, 79
        %s411 = smul.addr %s410, 8
        %s412 = scalar_lea.vmem %s0, %s411
        %s413 = smul.u32 40, %s26
        %vm414 = vcmask 261120
        %415 = vst.msk [vmem:[#allocation2] sm:$0xff] %vm414, 0.0
        %416 = vst.msk [vmem:[#allocation2 + $0x138] sm:$0xff] %vm414, 0.0
        %vm417 = vcmask 523264
        %418 = vst.msk [vmem:[#allocation3] sm:$0xff] %vm417, 0.0
        %419 = vst.msk [vmem:[#allocation3 + $0x140] sm:$0xff] %vm417, 0.0
        %v420 = vld [vmem:[%s412] sm:$0xff]
        %v421 = vld [vmem:[%s412 + $0x8] sm:$0xff]
        %v422 = vld [vmem:[%s412 + $0x10] sm:$0xff]
        %v423 = vld [vmem:[%s412 + $0x18] sm:$0xff]
        %v424 = vld [vmem:[%s412 + $0x20] sm:$0xff]
        %v425 = vld [vmem:[%s412 + $0x28] sm:$0xff]
        %v426 = vld [vmem:[%s412 + $0x30] sm:$0xff]
        %v427 = vld [vmem:[%s412 + $0x38] sm:$0xff]
        %v428 = vld [vmem:[%s412 + $0x40] sm:$0xff]
        %v429 = vld [vmem:[%s412 + $0x48] sm:$0xff]
        %v430 = vld [vmem:[%s412 + $0x50] sm:$0xff]
        %v431 = vld [vmem:[%s412 + $0x58] sm:$0xff]
        %v432 = vld [vmem:[%s412 + $0x60] sm:$0xff]
        %v433 = vld [vmem:[%s412 + $0x68] sm:$0xff]
        %v434 = vld [vmem:[%s412 + $0x70] sm:$0xff]
        %v435 = vld [vmem:[%s412 + $0x78] sm:$0xff]
        %v436 = vld [vmem:[%s412 + $0x80] sm:$0xff]
        %v437 = vld [vmem:[%s412 + $0x88] sm:$0xff]
        %v438 = vld [vmem:[%s412 + $0x90] sm:$0xff]
        %v439 = vld [vmem:[%s412 + $0x98] sm:$0xff]
        %v440 = vld [vmem:[%s412 + $0xa0] sm:$0xff]
        %v441 = vld [vmem:[%s412 + $0xa8] sm:$0xff]
        %v442 = vld [vmem:[%s412 + $0xb0] sm:$0xff]
        %v443 = vld [vmem:[%s412 + $0xb8] sm:$0xff]
        %v444 = vld [vmem:[%s412 + $0xc0] sm:$0xff]
        %v445 = vld [vmem:[%s412 + $0xc8] sm:$0xff]
        %v446 = vld [vmem:[%s412 + $0xd0] sm:$0xff]
        %v447 = vld [vmem:[%s412 + $0xd8] sm:$0xff]
        %v448 = vld [vmem:[%s412 + $0xe0] sm:$0xff]
        %v449 = vld [vmem:[%s412 + $0xe8] sm:$0xff]
        %v450 = vld [vmem:[%s412 + $0xf0] sm:$0xff]
        %v451 = vld [vmem:[%s412 + $0xf8] sm:$0xff]
        %v452 = vld [vmem:[%s412 + $0x100] sm:$0xff]
        %v453 = vld [vmem:[%s412 + $0x108] sm:$0xff]
        %v454 = vld [vmem:[%s412 + $0x110] sm:$0xff]
        %v455 = vld [vmem:[%s412 + $0x118] sm:$0xff]
        %v456 = vld [vmem:[%s412 + $0x120] sm:$0xff]
        %v457 = vld [vmem:[%s412 + $0x128] sm:$0xff]
        %v458 = vld [vmem:[%s412 + $0x130] sm:$0xff]
        %v459 = vld [vmem:[%s4] sm:$0x3]
        %v460 = vld [vmem:[%s412 + $0x1] sm:$0xff]
        %v461 = vld [vmem:[%s412 + $0x9] sm:$0xff]
        %v462 = vld [vmem:[%s412 + $0x11] sm:$0xff]
        %v463 = vld [vmem:[%s412 + $0x19] sm:$0xff]
        %v464 = vld [vmem:[%s412 + $0x21] sm:$0xff]
        %v465 = vld [vmem:[%s412 + $0x29] sm:$0xff]
        %v466 = vld [vmem:[%s412 + $0x31] sm:$0xff]
        %v467 = vld [vmem:[%s412 + $0x39] sm:$0xff]
        %v468 = vld [vmem:[%s412 + $0x41] sm:$0xff]
        %v469 = vld [vmem:[%s412 + $0x49] sm:$0xff]
        %v470 = vld [vmem:[%s412 + $0x51] sm:$0xff]
        %v471 = vld [vmem:[%s412 + $0x59] sm:$0xff]
        %v472 = vld [vmem:[%s412 + $0x61] sm:$0xff]
        %v473 = vld [vmem:[%s412 + $0x69] sm:$0xff]
        %v474 = vld [vmem:[%s412 + $0x71] sm:$0xff]
        %v475 = vld [vmem:[%s412 + $0x79] sm:$0xff]
        %v476 = vld [vmem:[%s412 + $0x81] sm:$0xff]
        %v477 = vld [vmem:[%s412 + $0x89] sm:$0xff]
        %v478 = vld [vmem:[%s412 + $0x91] sm:$0xff]
        %v479 = vld [vmem:[%s412 + $0x99] sm:$0xff]
        %v480 = vld [vmem:[%s412 + $0xa1] sm:$0xff]
        %v481 = vld [vmem:[%s412 + $0xa9] sm:$0xff]
        %v482 = vld [vmem:[%s412 + $0xb1] sm:$0xff]
        %v483 = vld [vmem:[%s412 + $0xb9] sm:$0xff]
        %v484 = vld [vmem:[%s412 + $0xc1] sm:$0xff]
        %v485 = vld [vmem:[%s412 + $0xc9] sm:$0xff]
        %v486 = vld [vmem:[%s412 + $0xd1] sm:$0xff]
        %v487 = vld [vmem:[%s412 + $0xd9] sm:$0xff]
        %v488 = vld [vmem:[%s412 + $0xe1] sm:$0xff]
        %v489 = vld [vmem:[%s412 + $0xe9] sm:$0xff]
        %v490 = vld [vmem:[%s412 + $0xf1] sm:$0xff]
        %v491 = vld [vmem:[%s412 + $0xf9] sm:$0xff]
        %v492 = vld [vmem:[%s412 + $0x101] sm:$0xff]
        %v493 = vld [vmem:[%s412 + $0x109] sm:$0xff]
        %v494 = vld [vmem:[%s412 + $0x111] sm:$0xff]
        %v495 = vld [vmem:[%s412 + $0x119] sm:$0xff]
        %v496 = vld [vmem:[%s412 + $0x121] sm:$0xff]
        %v497 = vld [vmem:[%s412 + $0x129] sm:$0xff]
        %v498 = vld [vmem:[%s412 + $0x131] sm:$0xff]
        %s499 = scalar_lea.vmem %s4, 2
        %v500 = vld [vmem:[%s499] sm:$0x3]
        %vm501 = vcmask 15360
        %v503 = vsel %vm501, %v460, 0
        %v506 = vsel %vm501, %v461, 0
        %v509 = vsel %vm501, %v462, 0
        %v512 = vsel %vm501, %v463, 0
        %v515 = vsel %vm501, %v464, 0
        %v518 = vsel %vm501, %v465, 0
        %v521 = vsel %vm501, %v466, 0
        %v524 = vsel %vm501, %v467, 0
        %v527 = vsel %vm501, %v468, 0
        %v530 = vsel %vm501, %v469, 0
        %v533 = vsel %vm501, %v470, 0
        %v536 = vsel %vm501, %v471, 0
        %v539 = vsel %vm501, %v472, 0
        %v542 = vsel %vm501, %v473, 0
        %v545 = vsel %vm501, %v474, 0
        %v548 = vsel %vm501, %v475, 0
        %v551 = vsel %vm501, %v476, 0
        %v554 = vsel %vm501, %v477, 0
        %v557 = vsel %vm501, %v478, 0
        %v560 = vsel %vm501, %v479, 0
        %v563 = vsel %vm501, %v480, 0
        %v566 = vsel %vm501, %v481, 0
        %v569 = vsel %vm501, %v482, 0
        %v572 = vsel %vm501, %v483, 0
        %v575 = vsel %vm501, %v484, 0
        %v578 = vsel %vm501, %v485, 0
        %v581 = vsel %vm501, %v486, 0
        %v584 = vsel %vm501, %v487, 0
        %v587 = vsel %vm501, %v488, 0
        %v590 = vsel %vm501, %v489, 0
        %v593 = vsel %vm501, %v490, 0
        %v596 = vsel %vm501, %v491, 0
        %v599 = vsel %vm501, %v492, 0
        %v602 = vsel %vm501, %v493, 0
        %v605 = vsel %vm501, %v494, 0
        %v608 = vsel %vm501, %v495, 0
        %v611 = vsel %vm501, %v496, 0
        %v614 = vsel %vm501, %v497, 0
        %v617 = vsel %vm501, %v498, 0
        %vm619 = vcmask 1041408
        %v621 = vsel %vm619, %v500, 0
        %623 = vmatprep.subr.mxu0 0.0
        %624 = vmatpush1.msra.mxu0 %v621
        %625 = vmatprep.subr.mxu0 0.0
        %626 = vmatpush1.msra.mxu0 0.0
        %627 = vmatprep.subr.mxu0 0.0
        %628 = vmatpush1.msra.mxu0 0.0
        %629 = vmatprep.subr.mxu0 0.0
        %630 = vmatpush1.msra.mxu0 0.0
        %631 = vmatprep.subr.mxu0 0.0
        %632 = vmatpush1.msra.mxu0 0.0
        %633 = vmatprep.subr.mxu0 0.0
        %634 = vmatpush1.msra.mxu0 0.0
        %635 = vmatprep.subr.mxu0 0.0
        %636 = vmatpush1.msra.mxu0 0.0
        %637 = vmatprep.subr.mxu0 0.0
        %638 = vmatpush1.msra.mxu0 0.0
        %639 = vmatprep.subr.mxu0 0.0
        %640 = vmatpush1.msra.mxu0 0.0
        %641 = vmatprep.subr.mxu0 0.0
        %642 = vmatpush1.msra.mxu0 0.0
        %643 = vmatprep.subr.mxu0 0.0
        %644 = vmatpush1.msra.mxu0 0.0
        %645 = vmatprep.subr.mxu0 0.0
        %646 = vmatpush1.msra.mxu0 0.0
        %647 = vmatprep.subr.mxu0 0.0
        %648 = vmatpush1.msra.mxu0 0.0
        %649 = vmatprep.subr.mxu0 0.0
        %650 = vmatpush1.msra.mxu0 0.0
        %651 = vmatprep.subr.mxu0 0.0
        %652 = vmatpush1.msra.mxu0 0.0
        %653 = vmatprep.subr.mxu0 0.0
        %654 = vmatpush1.msra.mxu0 0.0
        %655 = vmatprep.subr.mxu0 0.0
        %656 = vmatpush1.msra.mxu0 0.0
        %657 = vmatprep.subr.mxu0 0.0
        %658 = vmatpush1.msra.mxu0 0.0
        %659 = vmatprep.subr.mxu0 0.0
        %660 = vmatpush1.msra.mxu0 0.0
        %661 = vmatprep.subr.mxu0 0.0
        %662 = vmatpush1.msra.mxu0 0.0
        %663 = vmatprep.subr.mxu0 0.0
        %664 = vmatpush1.msra.mxu0 0.0
        %665 = vmatprep.subr.mxu0 0.0
        %666 = vmatpush1.msra.mxu0 0.0
        %667 = vmatprep.subr.mxu0 0.0
        %668 = vmatpush1.msra.mxu0 0.0
        %669 = vmatprep.subr.mxu0 0.0
        %670 = vmatpush1.msra.mxu0 0.0
        %671 = vmatprep.subr.mxu0 0.0
        %672 = vmatpush1.msra.mxu0 0.0
        %673 = vmatprep.subr.mxu0 0.0
        %674 = vmatpush1.msra.mxu0 0.0
        %675 = vmatprep.subr.mxu0 0.0
        %676 = vmatpush1.msra.mxu0 0.0
        %677 = vmatprep.subr.mxu0 0.0
        %678 = vmatpush1.msra.mxu0 0.0
        %679 = vmatprep.subr.mxu0 0.0
        %680 = vmatpush1.msra.mxu0 0.0
        %681 = vmatprep.subr.mxu0 0.0
        %682 = vmatpush1.msra.mxu0 0.0
        %683 = vmatprep.subr.mxu0 0.0
        %684 = vmatpush1.msra.mxu0 0.0
        %685 = vmatprep.subr.mxu0 0.0
        %686 = vmatpush1.msra.mxu0 0.0
        %687 = vmatprep.mubr.f32.mxu0 0.0
        %688 = vmatmul.mubr.f32.gmra.mrb[0].mxu0 %v503
        %v689 = vpop.f32.mrb[0].mxu0
        %v690 = vadd.f32 0.0, %v689
        %v691 = vpop.f32.mrb[0].mxu0
        %692 = vmatprep.mubr.f32.mxu0 0.0
        %693 = vmatmul.mubr.f32.gmra.mrb[0].mxu0 %v506
        %v694 = vpop.f32.mrb[0].mxu0
        %v695 = vadd.f32 0.0, %v694
        %v696 = vpop.f32.mrb[0].mxu0
        %697 = vmatprep.mubr.f32.mxu0 0.0
        %698 = vmatmul.mubr.f32.gmra.mrb[0].mxu0 %v509
        %v699 = vpop.f32.mrb[0].mxu0
        %v700 = vadd.f32 0.0, %v699
        %v701 = vpop.f32.mrb[0].mxu0
        %702 = vmatprep.mubr.f32.mxu0 0.0
        %703 = vmatmul.mubr.f32.gmra.mrb[0].mxu0 %v512
        %v704 = vpop.f32.mrb[0].mxu0
        %v705 = vadd.f32 0.0, %v704
        %v706 = vpop.f32.mrb[0].mxu0
        %707 = vmatprep.mubr.f32.mxu0 0.0
        %708 = vmatmul.mubr.f32.gmra.mrb[0].mxu0 %v515
        %v709 = vpop.f32.mrb[0].mxu0
        %v710 = vadd.f32 0.0, %v709
        %v711 = vpop.f32.mrb[0].mxu0
        %712 = vmatprep.mubr.f32.mxu0 0.0
        %713 = vmatmul.mubr.f32.gmra.mrb[0].mxu0 %v518
        %v714 = vpop.f32.mrb[0].mxu0
        %v715 = vadd.f32 0.0, %v714
        %v716 = vpop.f32.mrb[0].mxu0
        %717 = vmatprep.mubr.f32.mxu0 0.0
        %718 = vmatmul.mubr.f32.gmra.mrb[0].mxu0 %v521
        %v719 = vpop.f32.mrb[0].mxu0
        %v720 = vadd.f32 0.0, %v719
        %v721 = vpop.f32.mrb[0].mxu0
        %722 = vmatprep.mubr.f32.mxu0 0.0
        %723 = vmatmul.mubr.f32.gmra.mrb[0].mxu0 %v524
        %v724 = vpop.f32.mrb[0].mxu0
        %v725 = vadd.f32 0.0, %v724
        %v726 = vpop.f32.mrb[0].mxu0
        %727 = vmatprep.mubr.f32.mxu0 0.0
        %728 = vmatmul.mubr.f32.gmra.mrb[0].mxu0 %v527
        %v729 = vpop.f32.mrb[0].mxu0
        %v730 = vadd.f32 0.0, %v729
        %v731 = vpop.f32.mrb[0].mxu0
        %732 = vmatprep.mubr.f32.mxu0 0.0
        %733 = vmatmul.mubr.f32.gmra.mrb[0].mxu0 %v530
        %v734 = vpop.f32.mrb[0].mxu0
        %v735 = vadd.f32 0.0, %v734
        %v736 = vpop.f32.mrb[0].mxu0
        %737 = vmatprep.mubr.f32.mxu0 0.0
        %738 = vmatmul.mubr.f32.gmra.mrb[0].mxu0 %v533
        %v739 = vpop.f32.mrb[0].mxu0
        %v740 = vadd.f32 0.0, %v739
        %v741 = vpop.f32.mrb[0].mxu0
        %742 = vmatprep.mubr.f32.mxu0 0.0
        %743 = vmatmul.mubr.f32.gmra.mrb[0].mxu0 %v536
        %v744 = vpop.f32.mrb[0].mxu0
        %v745 = vadd.f32 0.0, %v744
        %v746 = vpop.f32.mrb[0].mxu0
        %747 = vmatprep.mubr.f32.mxu0 0.0
        %748 = vmatmul.mubr.f32.gmra.mrb[0].mxu0 %v539
        %v749 = vpop.f32.mrb[0].mxu0
        %v750 = vadd.f32 0.0, %v749
        %v751 = vpop.f32.mrb[0].mxu0
        %752 = vmatprep.mubr.f32.mxu0 0.0
        %753 = vmatmul.mubr.f32.gmra.mrb[0].mxu0 %v542
        %v754 = vpop.f32.mrb[0].mxu0
        %v755 = vadd.f32 0.0, %v754
        %v756 = vpop.f32.mrb[0].mxu0
        %757 = vmatprep.mubr.f32.mxu0 0.0
        %758 = vmatmul.mubr.f32.gmra.mrb[0].mxu0 %v545
        %v759 = vpop.f32.mrb[0].mxu0
        %v760 = vadd.f32 0.0, %v759
        %v761 = vpop.f32.mrb[0].mxu0
        %762 = vmatprep.mubr.f32.mxu0 0.0
        %763 = vmatmul.mubr.f32.gmra.mrb[0].mxu0 %v548
        %v764 = vpop.f32.mrb[0].mxu0
        %v765 = vadd.f32 0.0, %v764
        %v766 = vpop.f32.mrb[0].mxu0
        %767 = vmatprep.mubr.f32.mxu0 0.0
        %768 = vmatmul.mubr.f32.gmra.mrb[0].mxu0 %v551
        %v769 = vpop.f32.mrb[0].mxu0
        %v770 = vadd.f32 0.0, %v769
        %v771 = vpop.f32.mrb[0].mxu0
        %772 = vmatprep.mubr.f32.mxu0 0.0
        %773 = vmatmul.mubr.f32.gmra.mrb[0].mxu0 %v554
        %v774 = vpop.f32.mrb[0].mxu0
        %v775 = vadd.f32 0.0, %v774
        %v776 = vpop.f32.mrb[0].mxu0
        %777 = vmatprep.mubr.f32.mxu0 0.0
        %778 = vmatmul.mubr.f32.gmra.mrb[0].mxu0 %v557
        %v779 = vpop.f32.mrb[0].mxu0
        %v780 = vadd.f32 0.0, %v779
        %v781 = vpop.f32.mrb[0].mxu0
        %782 = vmatprep.mubr.f32.mxu0 0.0
        %783 = vmatmul.mubr.f32.gmra.mrb[0].mxu0 %v560
        %v784 = vpop.f32.mrb[0].mxu0
        %v785 = vadd.f32 0.0, %v784
        %v786 = vpop.f32.mrb[0].mxu0
        %787 = vmatprep.mubr.f32.mxu0 0.0
        %788 = vmatmul.mubr.f32.gmra.mrb[0].mxu0 %v563
        %v789 = vpop.f32.mrb[0].mxu0
        %v790 = vadd.f32 0.0, %v789
        %v791 = vpop.f32.mrb[0].mxu0
        %792 = vmatprep.mubr.f32.mxu0 0.0
        %793 = vmatmul.mubr.f32.gmra.mrb[0].mxu0 %v566
        %v794 = vpop.f32.mrb[0].mxu0
        %v795 = vadd.f32 0.0, %v794
        %v796 = vpop.f32.mrb[0].mxu0
        %797 = vmatprep.mubr.f32.mxu0 0.0
        %798 = vmatmul.mubr.f32.gmra.mrb[0].mxu0 %v569
        %v799 = vpop.f32.mrb[0].mxu0
        %v800 = vadd.f32 0.0, %v799
        %v801 = vpop.f32.mrb[0].mxu0
        %802 = vmatprep.mubr.f32.mxu0 0.0
        %803 = vmatmul.mubr.f32.gmra.mrb[0].mxu0 %v572
        %v804 = vpop.f32.mrb[0].mxu0
        %v805 = vadd.f32 0.0, %v804
        %v806 = vpop.f32.mrb[0].mxu0
        %807 = vmatprep.mubr.f32.mxu0 0.0
        %808 = vmatmul.mubr.f32.gmra.mrb[0].mxu0 %v575
        %v809 = vpop.f32.mrb[0].mxu0
        %v810 = vadd.f32 0.0, %v809
        %v811 = vpop.f32.mrb[0].mxu0
        %812 = vmatprep.mubr.f32.mxu0 0.0
        %813 = vmatmul.mubr.f32.gmra.mrb[0].mxu0 %v578
        %v814 = vpop.f32.mrb[0].mxu0
        %v815 = vadd.f32 0.0, %v814
        %v816 = vpop.f32.mrb[0].mxu0
        %817 = vmatprep.mubr.f32.mxu0 0.0
        %818 = vmatmul.mubr.f32.gmra.mrb[0].mxu0 %v581
        %v819 = vpop.f32.mrb[0].mxu0
        %v820 = vadd.f32 0.0, %v819
        %v821 = vpop.f32.mrb[0].mxu0
        %822 = vmatprep.mubr.f32.mxu0 0.0
        %823 = vmatmul.mubr.f32.gmra.mrb[0].mxu0 %v584
        %v824 = vpop.f32.mrb[0].mxu0
        %v825 = vadd.f32 0.0, %v824
        %v826 = vpop.f32.mrb[0].mxu0
        %827 = vmatprep.mubr.f32.mxu0 0.0
        %828 = vmatmul.mubr.f32.gmra.mrb[0].mxu0 %v587
        %v829 = vpop.f32.mrb[0].mxu0
        %v830 = vadd.f32 0.0, %v829
        %v831 = vpop.f32.mrb[0].mxu0
        %832 = vmatprep.mubr.f32.mxu0 0.0
        %833 = vmatmul.mubr.f32.gmra.mrb[0].mxu0 %v590
        %v834 = vpop.f32.mrb[0].mxu0
        %v835 = vadd.f32 0.0, %v834
        %v836 = vpop.f32.mrb[0].mxu0
        %837 = vmatprep.mubr.f32.mxu0 0.0
        %838 = vmatmul.mubr.f32.gmra.mrb[0].mxu0 %v593
        %v839 = vpop.f32.mrb[0].mxu0
        %v840 = vadd.f32 0.0, %v839
        %v841 = vpop.f32.mrb[0].mxu0
        %842 = vmatprep.mubr.f32.mxu0 0.0
        %843 = vmatmul.mubr.f32.gmra.mrb[0].mxu0 %v596
        %v844 = vpop.f32.mrb[0].mxu0
        %v845 = vadd.f32 0.0, %v844
        %v846 = vpop.f32.mrb[0].mxu0
        %847 = vmatprep.mubr.f32.mxu0 0.0
        %848 = vmatmul.mubr.f32.gmra.mrb[0].mxu0 %v599
        %v849 = vpop.f32.mrb[0].mxu0
        %v850 = vadd.f32 0.0, %v849
        %v851 = vpop.f32.mrb[0].mxu0
        %852 = vmatprep.mubr.f32.mxu0 0.0
        %853 = vmatmul.mubr.f32.gmra.mrb[0].mxu0 %v602
        %v854 = vpop.f32.mrb[0].mxu0
        %v855 = vadd.f32 0.0, %v854
        %v856 = vpop.f32.mrb[0].mxu0
        %857 = vmatprep.mubr.f32.mxu0 0.0
        %858 = vmatmul.mubr.f32.gmra.mrb[0].mxu0 %v605
        %v859 = vpop.f32.mrb[0].mxu0
        %v860 = vadd.f32 0.0, %v859
        %v861 = vpop.f32.mrb[0].mxu0
        %862 = vmatprep.mubr.f32.mxu0 0.0
        %863 = vmatmul.mubr.f32.gmra.mrb[0].mxu0 %v608
        %v864 = vpop.f32.mrb[0].mxu0
        %v865 = vadd.f32 0.0, %v864
        %v866 = vpop.f32.mrb[0].mxu0
        %867 = vmatprep.mubr.f32.mxu0 0.0
        %868 = vmatmul.mubr.f32.gmra.mrb[0].mxu0 %v611
        %v869 = vpop.f32.mrb[0].mxu0
        %v870 = vadd.f32 0.0, %v869
        %v871 = vpop.f32.mrb[0].mxu0
        %872 = vmatprep.mubr.f32.mxu0 0.0
        %873 = vmatmul.mubr.f32.gmra.mrb[0].mxu0 %v614
        %v874 = vpop.f32.mrb[0].mxu0
        %v875 = vadd.f32 0.0, %v874
        %v876 = vpop.f32.mrb[0].mxu0
        %877 = vmatprep.mubr.f32.mxu0 0.0
        %878 = vmatmul.mubr.f32.gmra.mrb[0].mxu0 %v617
        %v879 = vpop.f32.mrb[0].mxu0
        %v880 = vadd.f32 0.0, %v879
        %v881 = vpop.f32.mrb[0].mxu0
        %882 = vdwg.mxu0
        %v884 = vsel %vm501, %v420, 0
        %v887 = vsel %vm501, %v421, 0
        %v890 = vsel %vm501, %v422, 0
        %v893 = vsel %vm501, %v423, 0
        %v896 = vsel %vm501, %v424, 0
        %v899 = vsel %vm501, %v425, 0
        %v902 = vsel %vm501, %v426, 0
        %v905 = vsel %vm501, %v427, 0
        %v908 = vsel %vm501, %v428, 0
        %v911 = vsel %vm501, %v429, 0
        %v914 = vsel %vm501, %v430, 0
        %v917 = vsel %vm501, %v431, 0
        %v920 = vsel %vm501, %v432, 0
        %v923 = vsel %vm501, %v433, 0
        %v926 = vsel %vm501, %v434, 0
        %v929 = vsel %vm501, %v435, 0
        %v932 = vsel %vm501, %v436, 0
        %v935 = vsel %vm501, %v437, 0
        %v938 = vsel %vm501, %v438, 0
        %v941 = vsel %vm501, %v439, 0
        %v944 = vsel %vm501, %v440, 0
        %v947 = vsel %vm501, %v441, 0
        %v950 = vsel %vm501, %v442, 0
        %v953 = vsel %vm501, %v443, 0
        %v956 = vsel %vm501, %v444, 0
        %v959 = vsel %vm501, %v445, 0
        %v962 = vsel %vm501, %v446, 0
        %v965 = vsel %vm501, %v447, 0
        %v968 = vsel %vm501, %v448, 0
        %v971 = vsel %vm501, %v449, 0
        %v974 = vsel %vm501, %v450, 0
        %v977 = vsel %vm501, %v451, 0
        %v980 = vsel %vm501, %v452, 0
        %v983 = vsel %vm501, %v453, 0
        %v986 = vsel %vm501, %v454, 0
        %v989 = vsel %vm501, %v455, 0
        %v992 = vsel %vm501, %v456, 0
        %v995 = vsel %vm501, %v457, 0
        %v998 = vsel %vm501, %v458, 0
        %v1001 = vsel %vm619, %v459, 0
        %1003 = vmatprep.subr.mxu0 0.0
        %1004 = vmatpush1.msra.mxu0 %v1001
        %1005 = vmatprep.subr.mxu0 0.0
        %1006 = vmatpush1.msra.mxu0 0.0
        %1007 = vmatprep.subr.mxu0 0.0
        %1008 = vmatpush1.msra.mxu0 0.0
        %1009 = vmatprep.subr.mxu0 0.0
        %1010 = vmatpush1.msra.mxu0 0.0
        %1011 = vmatprep.subr.mxu0 0.0
        %1012 = vmatpush1.msra.mxu0 0.0
        %1013 = vmatprep.subr.mxu0 0.0
        %1014 = vmatpush1.msra.mxu0 0.0
        %1015 = vmatprep.subr.mxu0 0.0
        %1016 = vmatpush1.msra.mxu0 0.0
        %1017 = vmatprep.subr.mxu0 0.0
        %1018 = vmatpush1.msra.mxu0 0.0
        %1019 = vmatprep.subr.mxu0 0.0
        %1020 = vmatpush1.msra.mxu0 0.0
        %1021 = vmatprep.subr.mxu0 0.0
        %1022 = vmatpush1.msra.mxu0 0.0
        %1023 = vmatprep.subr.mxu0 0.0
        %1024 = vmatpush1.msra.mxu0 0.0
        %1025 = vmatprep.subr.mxu0 0.0
        %1026 = vmatpush1.msra.mxu0 0.0
        %1027 = vmatprep.subr.mxu0 0.0
        %1028 = vmatpush1.msra.mxu0 0.0
        %1029 = vmatprep.subr.mxu0 0.0
        %1030 = vmatpush1.msra.mxu0 0.0
        %1031 = vmatprep.subr.mxu0 0.0
        %1032 = vmatpush1.msra.mxu0 0.0
        %1033 = vmatprep.subr.mxu0 0.0
        %1034 = vmatpush1.msra.mxu0 0.0
        %1035 = vmatprep.subr.mxu0 0.0
        %1036 = vmatpush1.msra.mxu0 0.0
        %1037 = vmatprep.subr.mxu0 0.0
        %1038 = vmatpush1.msra.mxu0 0.0
        %1039 = vmatprep.subr.mxu0 0.0
        %1040 = vmatpush1.msra.mxu0 0.0
        %1041 = vmatprep.subr.mxu0 0.0
        %1042 = vmatpush1.msra.mxu0 0.0
        %1043 = vmatprep.subr.mxu0 0.0
        %1044 = vmatpush1.msra.mxu0 0.0
        %1045 = vmatprep.subr.mxu0 0.0
        %1046 = vmatpush1.msra.mxu0 0.0
        %1047 = vmatprep.subr.mxu0 0.0
        %1048 = vmatpush1.msra.mxu0 0.0
        %1049 = vmatprep.subr.mxu0 0.0
        %1050 = vmatpush1.msra.mxu0 0.0
        %1051 = vmatprep.subr.mxu0 0.0
        %1052 = vmatpush1.msra.mxu0 0.0
        %1053 = vmatprep.subr.mxu0 0.0
        %1054 = vmatpush1.msra.mxu0 0.0
        %1055 = vmatprep.subr.mxu0 0.0
        %1056 = vmatpush1.msra.mxu0 0.0
        %1057 = vmatprep.subr.mxu0 0.0
        %1058 = vmatpush1.msra.mxu0 0.0
        %1059 = vmatprep.subr.mxu0 0.0
        %1060 = vmatpush1.msra.mxu0 0.0
        %1061 = vmatprep.subr.mxu0 0.0
        %1062 = vmatpush1.msra.mxu0 0.0
        %1063 = vmatprep.subr.mxu0 0.0
        %1064 = vmatpush1.msra.mxu0 0.0
        %1065 = vmatprep.subr.mxu0 0.0
        %1066 = vmatpush1.msra.mxu0 0.0
        %1067 = vmatprep.mubr.f32.mxu0 0.0
        %1068 = vmatmul.mubr.f32.gmra.mrb[0].mxu0 %v884
        %v1069 = vpop.f32.mrb[0].mxu0
        %v1070 = vadd.f32 %v690, %v1069
        %v1071 = vpop.f32.mrb[0].mxu0
        %1072 = vmatprep.mubr.f32.mxu0 0.0
        %1073 = vmatmul.mubr.f32.gmra.mrb[0].mxu0 %v887
        %v1074 = vpop.f32.mrb[0].mxu0
        %v1075 = vadd.f32 %v695, %v1074
        %v1076 = vpop.f32.mrb[0].mxu0
        %1077 = vmatprep.mubr.f32.mxu0 0.0
        %1078 = vmatmul.mubr.f32.gmra.mrb[0].mxu0 %v890
        %v1079 = vpop.f32.mrb[0].mxu0
        %v1080 = vadd.f32 %v700, %v1079
        %v1081 = vpop.f32.mrb[0].mxu0
        %1082 = vmatprep.mubr.f32.mxu0 0.0
        %1083 = vmatmul.mubr.f32.gmra.mrb[0].mxu0 %v893
        %v1084 = vpop.f32.mrb[0].mxu0
        %v1085 = vadd.f32 %v705, %v1084
        %v1086 = vpop.f32.mrb[0].mxu0
        %1087 = vmatprep.mubr.f32.mxu0 0.0
        %1088 = vmatmul.mubr.f32.gmra.mrb[0].mxu0 %v896
        %v1089 = vpop.f32.mrb[0].mxu0
        %v1090 = vadd.f32 %v710, %v1089
        %v1091 = vpop.f32.mrb[0].mxu0
        %1092 = vmatprep.mubr.f32.mxu0 0.0
        %1093 = vmatmul.mubr.f32.gmra.mrb[0].mxu0 %v899
        %v1094 = vpop.f32.mrb[0].mxu0
        %v1095 = vadd.f32 %v715, %v1094
        %v1096 = vpop.f32.mrb[0].mxu0
        %1097 = vmatprep.mubr.f32.mxu0 0.0
        %1098 = vmatmul.mubr.f32.gmra.mrb[0].mxu0 %v902
        %v1099 = vpop.f32.mrb[0].mxu0
        %v1100 = vadd.f32 %v720, %v1099
        %v1101 = vpop.f32.mrb[0].mxu0
        %1102 = vmatprep.mubr.f32.mxu0 0.0
        %1103 = vmatmul.mubr.f32.gmra.mrb[0].mxu0 %v905
        %v1104 = vpop.f32.mrb[0].mxu0
        %v1105 = vadd.f32 %v725, %v1104
        %v1106 = vpop.f32.mrb[0].mxu0
        %1107 = vmatprep.mubr.f32.mxu0 0.0
        %1108 = vmatmul.mubr.f32.gmra.mrb[0].mxu0 %v908
        %v1109 = vpop.f32.mrb[0].mxu0
        %v1110 = vadd.f32 %v730, %v1109
        %v1111 = vpop.f32.mrb[0].mxu0
        %1112 = vmatprep.mubr.f32.mxu0 0.0
        %1113 = vmatmul.mubr.f32.gmra.mrb[0].mxu0 %v911
        %v1114 = vpop.f32.mrb[0].mxu0
        %v1115 = vadd.f32 %v735, %v1114
        %v1116 = vpop.f32.mrb[0].mxu0
        %1117 = vmatprep.mubr.f32.mxu0 0.0
        %1118 = vmatmul.mubr.f32.gmra.mrb[0].mxu0 %v914
        %v1119 = vpop.f32.mrb[0].mxu0
        %v1120 = vadd.f32 %v740, %v1119
        %v1121 = vpop.f32.mrb[0].mxu0
        %1122 = vmatprep.mubr.f32.mxu0 0.0
        %1123 = vmatmul.mubr.f32.gmra.mrb[0].mxu0 %v917
        %v1124 = vpop.f32.mrb[0].mxu0
        %v1125 = vadd.f32 %v745, %v1124
        %v1126 = vpop.f32.mrb[0].mxu0
        %1127 = vmatprep.mubr.f32.mxu0 0.0
        %1128 = vmatmul.mubr.f32.gmra.mrb[0].mxu0 %v920
        %v1129 = vpop.f32.mrb[0].mxu0
        %v1130 = vadd.f32 %v750, %v1129
        %v1131 = vpop.f32.mrb[0].mxu0
        %1132 = vmatprep.mubr.f32.mxu0 0.0
        %1133 = vmatmul.mubr.f32.gmra.mrb[0].mxu0 %v923
        %v1134 = vpop.f32.mrb[0].mxu0
        %v1135 = vadd.f32 %v755, %v1134
        %v1136 = vpop.f32.mrb[0].mxu0
        %1137 = vmatprep.mubr.f32.mxu0 0.0
        %1138 = vmatmul.mubr.f32.gmra.mrb[0].mxu0 %v926
        %v1139 = vpop.f32.mrb[0].mxu0
        %v1140 = vadd.f32 %v760, %v1139
        %v1141 = vpop.f32.mrb[0].mxu0
        %1142 = vmatprep.mubr.f32.mxu0 0.0
        %1143 = vmatmul.mubr.f32.gmra.mrb[0].mxu0 %v929
        %v1144 = vpop.f32.mrb[0].mxu0
        %v1145 = vadd.f32 %v765, %v1144
        %v1146 = vpop.f32.mrb[0].mxu0
        %1147 = vmatprep.mubr.f32.mxu0 0.0
        %1148 = vmatmul.mubr.f32.gmra.mrb[0].mxu0 %v932
        %v1149 = vpop.f32.mrb[0].mxu0
        %v1150 = vadd.f32 %v770, %v1149
        %v1151 = vpop.f32.mrb[0].mxu0
        %1152 = vmatprep.mubr.f32.mxu0 0.0
        %1153 = vmatmul.mubr.f32.gmra.mrb[0].mxu0 %v935
        %v1154 = vpop.f32.mrb[0].mxu0
        %v1155 = vadd.f32 %v775, %v1154
        %v1156 = vpop.f32.mrb[0].mxu0
        %1157 = vmatprep.mubr.f32.mxu0 0.0
        %1158 = vmatmul.mubr.f32.gmra.mrb[0].mxu0 %v938
        %v1159 = vpop.f32.mrb[0].mxu0
        %v1160 = vadd.f32 %v780, %v1159
        %v1161 = vpop.f32.mrb[0].mxu0
        %1162 = vmatprep.mubr.f32.mxu0 0.0
        %1163 = vmatmul.mubr.f32.gmra.mrb[0].mxu0 %v941
        %v1164 = vpop.f32.mrb[0].mxu0
        %v1165 = vadd.f32 %v785, %v1164
        %v1166 = vpop.f32.mrb[0].mxu0
        %1167 = vmatprep.mubr.f32.mxu0 0.0
        %1168 = vmatmul.mubr.f32.gmra.mrb[0].mxu0 %v944
        %v1169 = vpop.f32.mrb[0].mxu0
        %v1170 = vadd.f32 %v790, %v1169
        %v1171 = vpop.f32.mrb[0].mxu0
        %1172 = vmatprep.mubr.f32.mxu0 0.0
        %1173 = vmatmul.mubr.f32.gmra.mrb[0].mxu0 %v947
        %v1174 = vpop.f32.mrb[0].mxu0
        %v1175 = vadd.f32 %v795, %v1174
        %v1176 = vpop.f32.mrb[0].mxu0
        %1177 = vmatprep.mubr.f32.mxu0 0.0
        %1178 = vmatmul.mubr.f32.gmra.mrb[0].mxu0 %v950
        %v1179 = vpop.f32.mrb[0].mxu0
        %v1180 = vadd.f32 %v800, %v1179
        %v1181 = vpop.f32.mrb[0].mxu0
        %1182 = vmatprep.mubr.f32.mxu0 0.0
        %1183 = vmatmul.mubr.f32.gmra.mrb[0].mxu0 %v953
        %v1184 = vpop.f32.mrb[0].mxu0
        %v1185 = vadd.f32 %v805, %v1184
        %v1186 = vpop.f32.mrb[0].mxu0
        %1187 = vmatprep.mubr.f32.mxu0 0.0
        %1188 = vmatmul.mubr.f32.gmra.mrb[0].mxu0 %v956
        %v1189 = vpop.f32.mrb[0].mxu0
        %v1190 = vadd.f32 %v810, %v1189
        %v1191 = vpop.f32.mrb[0].mxu0
        %1192 = vmatprep.mubr.f32.mxu0 0.0
        %1193 = vmatmul.mubr.f32.gmra.mrb[0].mxu0 %v959
        %v1194 = vpop.f32.mrb[0].mxu0
        %v1195 = vadd.f32 %v815, %v1194
        %v1196 = vpop.f32.mrb[0].mxu0
        %1197 = vmatprep.mubr.f32.mxu0 0.0
        %1198 = vmatmul.mubr.f32.gmra.mrb[0].mxu0 %v962
        %v1199 = vpop.f32.mrb[0].mxu0
        %v1200 = vadd.f32 %v820, %v1199
        %v1201 = vpop.f32.mrb[0].mxu0
        %1202 = vmatprep.mubr.f32.mxu0 0.0
        %1203 = vmatmul.mubr.f32.gmra.mrb[0].mxu0 %v965
        %v1204 = vpop.f32.mrb[0].mxu0
        %v1205 = vadd.f32 %v825, %v1204
        %v1206 = vpop.f32.mrb[0].mxu0
        %1207 = vmatprep.mubr.f32.mxu0 0.0
        %1208 = vmatmul.mubr.f32.gmra.mrb[0].mxu0 %v968
        %v1209 = vpop.f32.mrb[0].mxu0
        %v1210 = vadd.f32 %v830, %v1209
        %v1211 = vpop.f32.mrb[0].mxu0
        %1212 = vmatprep.mubr.f32.mxu0 0.0
        %1213 = vmatmul.mubr.f32.gmra.mrb[0].mxu0 %v971
        %v1214 = vpop.f32.mrb[0].mxu0
        %v1215 = vadd.f32 %v835, %v1214
        %v1216 = vpop.f32.mrb[0].mxu0
        %1217 = vmatprep.mubr.f32.mxu0 0.0
        %1218 = vmatmul.mubr.f32.gmra.mrb[0].mxu0 %v974
        %v1219 = vpop.f32.mrb[0].mxu0
        %v1220 = vadd.f32 %v840, %v1219
        %v1221 = vpop.f32.mrb[0].mxu0
        %1222 = vmatprep.mubr.f32.mxu0 0.0
        %1223 = vmatmul.mubr.f32.gmra.mrb[0].mxu0 %v977
        %v1224 = vpop.f32.mrb[0].mxu0
        %v1225 = vadd.f32 %v845, %v1224
        %v1226 = vpop.f32.mrb[0].mxu0
        %1227 = vmatprep.mubr.f32.mxu0 0.0
        %1228 = vmatmul.mubr.f32.gmra.mrb[0].mxu0 %v980
        %v1229 = vpop.f32.mrb[0].mxu0
        %v1230 = vadd.f32 %v850, %v1229
        %v1231 = vpop.f32.mrb[0].mxu0
        %1232 = vmatprep.mubr.f32.mxu0 0.0
        %1233 = vmatmul.mubr.f32.gmra.mrb[0].mxu0 %v983
        %v1234 = vpop.f32.mrb[0].mxu0
        %v1235 = vadd.f32 %v855, %v1234
        %v1236 = vpop.f32.mrb[0].mxu0
        %1237 = vmatprep.mubr.f32.mxu0 0.0
        %1238 = vmatmul.mubr.f32.gmra.mrb[0].mxu0 %v986
        %v1239 = vpop.f32.mrb[0].mxu0
        %v1240 = vadd.f32 %v860, %v1239
        %v1241 = vpop.f32.mrb[0].mxu0
        %1242 = vmatprep.mubr.f32.mxu0 0.0
        %1243 = vmatmul.mubr.f32.gmra.mrb[0].mxu0 %v989
        %v1244 = vpop.f32.mrb[0].mxu0
        %v1245 = vadd.f32 %v865, %v1244
        %v1246 = vpop.f32.mrb[0].mxu0
        %1247 = vmatprep.mubr.f32.mxu0 0.0
        %1248 = vmatmul.mubr.f32.gmra.mrb[0].mxu0 %v992
        %v1249 = vpop.f32.mrb[0].mxu0
        %v1250 = vadd.f32 %v870, %v1249
        %v1251 = vpop.f32.mrb[0].mxu0
        %1252 = vmatprep.mubr.f32.mxu0 0.0
        %1253 = vmatmul.mubr.f32.gmra.mrb[0].mxu0 %v995
        %v1254 = vpop.f32.mrb[0].mxu0
        %v1255 = vadd.f32 %v875, %v1254
        %v1256 = vpop.f32.mrb[0].mxu0
        %1257 = vmatprep.mubr.f32.mxu0 0.0
        %1258 = vmatmul.mubr.f32.gmra.mrb[0].mxu0 %v998
        %v1259 = vpop.f32.mrb[0].mxu0
        %v1260 = vadd.f32 %v880, %v1259
        %v1261 = vpop.f32.mrb[0].mxu0
        %1262 = vdwg.mxu0
        %v1263 = vld [vmem:[%s412 + $0x2] sm:$0xff]
        %v1264 = vld [vmem:[%s412 + $0xa] sm:$0xff]
        %v1265 = vld [vmem:[%s412 + $0x12] sm:$0xff]
        %v1266 = vld [vmem:[%s412 + $0x1a] sm:$0xff]
        %v1267 = vld [vmem:[%s412 + $0x22] sm:$0xff]
        %v1268 = vld [vmem:[%s412 + $0x2a] sm:$0xff]
        %v1269 = vld [vmem:[%s412 + $0x32] sm:$0xff]
        %v1270 = vld [vmem:[%s412 + $0x3a] sm:$0xff]
        %v1271 = vld [vmem:[%s412 + $0x42] sm:$0xff]
        %v1272 = vld [vmem:[%s412 + $0x4a] sm:$0xff]
        %v1273 = vld [vmem:[%s412 + $0x52] sm:$0xff]
        %v1274 = vld [vmem:[%s412 + $0x5a] sm:$0xff]
        %v1275 = vld [vmem:[%s412 + $0x62] sm:$0xff]
        %v1276 = vld [vmem:[%s412 + $0x6a] sm:$0xff]
        %v1277 = vld [vmem:[%s412 + $0x72] sm:$0xff]
        %v1278 = vld [vmem:[%s412 + $0x7a] sm:$0xff]
        %v1279 = vld [vmem:[%s412 + $0x82] sm:$0xff]
        %v1280 = vld [vmem:[%s412 + $0x8a] sm:$0xff]
        %v1281 = vld [vmem:[%s412 + $0x92] sm:$0xff]
        %v1282 = vld [vmem:[%s412 + $0x9a] sm:$0xff]
        %v1283 = vld [vmem:[%s412 + $0xa2] sm:$0xff]
        %v1284 = vld [vmem:[%s412 + $0xaa] sm:$0xff]
        %v1285 = vld [vmem:[%s412 + $0xb2] sm:$0xff]
        %v1286 = vld [vmem:[%s412 + $0xba] sm:$0xff]
        %v1287 = vld [vmem:[%s412 + $0xc2] sm:$0xff]
        %v1288 = vld [vmem:[%s412 + $0xca] sm:$0xff]
        %v1289 = vld [vmem:[%s412 + $0xd2] sm:$0xff]
        %v1290 = vld [vmem:[%s412 + $0xda] sm:$0xff]
        %v1291 = vld [vmem:[%s412 + $0xe2] sm:$0xff]
        %v1292 = vld [vmem:[%s412 + $0xea] sm:$0xff]
        %v1293 = vld [vmem:[%s412 + $0xf2] sm:$0xff]
        %v1294 = vld [vmem:[%s412 + $0xfa] sm:$0xff]
        %v1295 = vld [vmem:[%s412 + $0x102] sm:$0xff]
        %v1296 = vld [vmem:[%s412 + $0x10a] sm:$0xff]
        %v1297 = vld [vmem:[%s412 + $0x112] sm:$0xff]
        %v1298 = vld [vmem:[%s412 + $0x11a] sm:$0xff]
        %v1299 = vld [vmem:[%s412 + $0x122] sm:$0xff]
        %v1300 = vld [vmem:[%s412 + $0x12a] sm:$0xff]
        %v1301 = vld [vmem:[%s412 + $0x132] sm:$0xff]
        %s1302 = scalar_lea.vmem %s4, 4
        %v1303 = vld [vmem:[%s1302] sm:$0x3]
        %v1305 = vsel %vm501, %v1263, 0
        %v1308 = vsel %vm501, %v1264, 0
        %v1311 = vsel %vm501, %v1265, 0
        %v1314 = vsel %vm501, %v1266, 0
        %v1317 = vsel %vm501, %v1267, 0
        %v1320 = vsel %vm501, %v1268, 0
        %v1323 = vsel %vm501, %v1269, 0
        %v1326 = vsel %vm501, %v1270, 0
        %v1329 = vsel %vm501, %v1271, 0
        %v1332 = vsel %vm501, %v1272, 0
        %v1335 = vsel %vm501, %v1273, 0
        %v1338 = vsel %vm501, %v1274, 0
        %v1341 = vsel %vm501, %v1275, 0
        %v1344 = vsel %vm501, %v1276, 0
        %v1347 = vsel %vm501, %v1277, 0
        %v1350 = vsel %vm501, %v1278, 0
        %v1353 = vsel %vm501, %v1279, 0
        %v1356 = vsel %vm501, %v1280, 0
        %v1359 = vsel %vm501, %v1281, 0
        %v1362 = vsel %vm501, %v1282, 0
        %v1365 = vsel %vm501, %v1283, 0
        %v1368 = vsel %vm501, %v1284, 0
        %v1371 = vsel %vm501, %v1285, 0
        %v1374 = vsel %vm501, %v1286, 0
        %v1377 = vsel %vm501, %v1287, 0
        %v1380 = vsel %vm501, %v1288, 0
        %v1383 = vsel %vm501, %v1289, 0
        %v1386 = vsel %vm501, %v1290, 0
        %v1389 = vsel %vm501, %v1291, 0
        %v1392 = vsel %vm501, %v1292, 0
        %v1395 = vsel %vm501, %v1293, 0
        %v1398 = vsel %vm501, %v1294, 0
        %v1401 = vsel %vm501, %v1295, 0
        %v1404 = vsel %vm501, %v1296, 0
        %v1407 = vsel %vm501, %v1297, 0
        %v1410 = vsel %vm501, %v1298, 0
        %v1413 = vsel %vm501, %v1299, 0
        %v1416 = vsel %vm501, %v1300, 0
        %v1419 = vsel %vm501, %v1301, 0
        %v1422 = vsel %vm619, %v1303, 0
        %1424 = vmatprep.subr.mxu0 0.0
        %1425 = vmatpush1.msra.mxu0 %v1422
        %1426 = vmatprep.subr.mxu0 0.0
        %1427 = vmatpush1.msra.mxu0 0.0
        %1428 = vmatprep.subr.mxu0 0.0
        %1429 = vmatpush1.msra.mxu0 0.0
        %1430 = vmatprep.subr.mxu0 0.0
        %1431 = vmatpush1.msra.mxu0 0.0
        %1432 = vmatprep.subr.mxu0 0.0
        %1433 = vmatpush1.msra.mxu0 0.0
        %1434 = vmatprep.subr.mxu0 0.0
        %1435 = vmatpush1.msra.mxu0 0.0
        %1436 = vmatprep.subr.mxu0 0.0
        %1437 = vmatpush1.msra.mxu0 0.0
        %1438 = vmatprep.subr.mxu0 0.0
        %1439 = vmatpush1.msra.mxu0 0.0
        %1440 = vmatprep.subr.mxu0 0.0
        %1441 = vmatpush1.msra.mxu0 0.0
        %1442 = vmatprep.subr.mxu0 0.0
        %1443 = vmatpush1.msra.mxu0 0.0
        %1444 = vmatprep.subr.mxu0 0.0
        %1445 = vmatpush1.msra.mxu0 0.0
        %1446 = vmatprep.subr.mxu0 0.0
        %1447 = vmatpush1.msra.mxu0 0.0
        %1448 = vmatprep.subr.mxu0 0.0
        %1449 = vmatpush1.msra.mxu0 0.0
        %1450 = vmatprep.subr.mxu0 0.0
        %1451 = vmatpush1.msra.mxu0 0.0
        %1452 = vmatprep.subr.mxu0 0.0
        %1453 = vmatpush1.msra.mxu0 0.0
        %1454 = vmatprep.subr.mxu0 0.0
        %1455 = vmatpush1.msra.mxu0 0.0
        %1456 = vmatprep.subr.mxu0 0.0
        %1457 = vmatpush1.msra.mxu0 0.0
        %1458 = vmatprep.subr.mxu0 0.0
        %1459 = vmatpush1.msra.mxu0 0.0
        %1460 = vmatprep.subr.mxu0 0.0
        %1461 = vmatpush1.msra.mxu0 0.0
        %1462 = vmatprep.subr.mxu0 0.0
        %1463 = vmatpush1.msra.mxu0 0.0
        %1464 = vmatprep.subr.mxu0 0.0
        %1465 = vmatpush1.msra.mxu0 0.0
        %1466 = vmatprep.subr.mxu0 0.0
        %1467 = vmatpush1.msra.mxu0 0.0
        %1468 = vmatprep.subr.mxu0 0.0
        %1469 = vmatpush1.msra.mxu0 0.0
        %1470 = vmatprep.subr.mxu0 0.0
        %1471 = vmatpush1.msra.mxu0 0.0
        %1472 = vmatprep.subr.mxu0 0.0
        %1473 = vmatpush1.msra.mxu0 0.0
        %1474 = vmatprep.subr.mxu0 0.0
        %1475 = vmatpush1.msra.mxu0 0.0
        %1476 = vmatprep.subr.mxu0 0.0
        %1477 = vmatpush1.msra.mxu0 0.0
        %1478 = vmatprep.subr.mxu0 0.0
        %1479 = vmatpush1.msra.mxu0 0.0
        %1480 = vmatprep.subr.mxu0 0.0
        %1481 = vmatpush1.msra.mxu0 0.0
        %1482 = vmatprep.subr.mxu0 0.0
        %1483 = vmatpush1.msra.mxu0 0.0
        %1484 = vmatprep.subr.mxu0 0.0
        %1485 = vmatpush1.msra.mxu0 0.0
        %1486 = vmatprep.subr.mxu0 0.0
        %1487 = vmatpush1.msra.mxu0 0.0
        %1488 = vmatprep.mubr.f32.mxu0 0.0
        %1489 = vmatmul.mubr.f32.gmra.mrb[0].mxu0 %v1305
        %v1490 = vpop.f32.mrb[0].mxu0
        %v1491 = vadd.f32 0.0, %v1490
        %v1492 = vpop.f32.mrb[0].mxu0
        %1493 = vmatprep.mubr.f32.mxu0 0.0
        %1494 = vmatmul.mubr.f32.gmra.mrb[0].mxu0 %v1308
        %v1495 = vpop.f32.mrb[0].mxu0
        %v1496 = vadd.f32 0.0, %v1495
        %v1497 = vpop.f32.mrb[0].mxu0
        %1498 = vmatprep.mubr.f32.mxu0 0.0
        %1499 = vmatmul.mubr.f32.gmra.mrb[0].mxu0 %v1311
        %v1500 = vpop.f32.mrb[0].mxu0
        %v1501 = vadd.f32 0.0, %v1500
        %v1502 = vpop.f32.mrb[0].mxu0
        %1503 = vmatprep.mubr.f32.mxu0 0.0
        %1504 = vmatmul.mubr.f32.gmra.mrb[0].mxu0 %v1314
        %v1505 = vpop.f32.mrb[0].mxu0
        %v1506 = vadd.f32 0.0, %v1505
        %v1507 = vpop.f32.mrb[0].mxu0
        %1508 = vmatprep.mubr.f32.mxu0 0.0
        %1509 = vmatmul.mubr.f32.gmra.mrb[0].mxu0 %v1317
        %v1510 = vpop.f32.mrb[0].mxu0
        %v1511 = vadd.f32 0.0, %v1510
        %v1512 = vpop.f32.mrb[0].mxu0
        %1513 = vmatprep.mubr.f32.mxu0 0.0
        %1514 = vmatmul.mubr.f32.gmra.mrb[0].mxu0 %v1320
        %v1515 = vpop.f32.mrb[0].mxu0
        %v1516 = vadd.f32 0.0, %v1515
        %v1517 = vpop.f32.mrb[0].mxu0
        %1518 = vmatprep.mubr.f32.mxu0 0.0
        %1519 = vmatmul.mubr.f32.gmra.mrb[0].mxu0 %v1323
        %v1520 = vpop.f32.mrb[0].mxu0
        %v1521 = vadd.f32 0.0, %v1520
        %v1522 = vpop.f32.mrb[0].mxu0
        %1523 = vmatprep.mubr.f32.mxu0 0.0
        %1524 = vmatmul.mubr.f32.gmra.mrb[0].mxu0 %v1326
        %v1525 = vpop.f32.mrb[0].mxu0
        %v1526 = vadd.f32 0.0, %v1525
        %v1527 = vpop.f32.mrb[0].mxu0
        %1528 = vmatprep.mubr.f32.mxu0 0.0
        %1529 = vmatmul.mubr.f32.gmra.mrb[0].mxu0 %v1329
        %v1530 = vpop.f32.mrb[0].mxu0
        %v1531 = vadd.f32 0.0, %v1530
        %v1532 = vpop.f32.mrb[0].mxu0
        %1533 = vmatprep.mubr.f32.mxu0 0.0
        %1534 = vmatmul.mubr.f32.gmra.mrb[0].mxu0 %v1332
        %v1535 = vpop.f32.mrb[0].mxu0
        %v1536 = vadd.f32 0.0, %v1535
        %v1537 = vpop.f32.mrb[0].mxu0
        %1538 = vmatprep.mubr.f32.mxu0 0.0
        %1539 = vmatmul.mubr.f32.gmra.mrb[0].mxu0 %v1335
        %v1540 = vpop.f32.mrb[0].mxu0
        %v1541 = vadd.f32 0.0, %v1540
        %v1542 = vpop.f32.mrb[0].mxu0
        %1543 = vmatprep.mubr.f32.mxu0 0.0
        %1544 = vmatmul.mubr.f32.gmra.mrb[0].mxu0 %v1338
        %v1545 = vpop.f32.mrb[0].mxu0
        %v1546 = vadd.f32 0.0, %v1545
        %v1547 = vpop.f32.mrb[0].mxu0
        %1548 = vmatprep.mubr.f32.mxu0 0.0
        %1549 = vmatmul.mubr.f32.gmra.mrb[0].mxu0 %v1341
        %v1550 = vpop.f32.mrb[0].mxu0
        %v1551 = vadd.f32 0.0, %v1550
        %v1552 = vpop.f32.mrb[0].mxu0
        %1553 = vmatprep.mubr.f32.mxu0 0.0
        %1554 = vmatmul.mubr.f32.gmra.mrb[0].mxu0 %v1344
        %v1555 = vpop.f32.mrb[0].mxu0
        %v1556 = vadd.f32 0.0, %v1555
        %v1557 = vpop.f32.mrb[0].mxu0
        %1558 = vmatprep.mubr.f32.mxu0 0.0
        %1559 = vmatmul.mubr.f32.gmra.mrb[0].mxu0 %v1347
        %v1560 = vpop.f32.mrb[0].mxu0
        %v1561 = vadd.f32 0.0, %v1560
        %v1562 = vpop.f32.mrb[0].mxu0
        %1563 = vmatprep.mubr.f32.mxu0 0.0
        %1564 = vmatmul.mubr.f32.gmra.mrb[0].mxu0 %v1350
        %v1565 = vpop.f32.mrb[0].mxu0
        %v1566 = vadd.f32 0.0, %v1565
        %v1567 = vpop.f32.mrb[0].mxu0
        %1568 = vmatprep.mubr.f32.mxu0 0.0
        %1569 = vmatmul.mubr.f32.gmra.mrb[0].mxu0 %v1353
        %v1570 = vpop.f32.mrb[0].mxu0
        %v1571 = vadd.f32 0.0, %v1570
        %v1572 = vpop.f32.mrb[0].mxu0
        %1573 = vmatprep.mubr.f32.mxu0 0.0
        %1574 = vmatmul.mubr.f32.gmra.mrb[0].mxu0 %v1356
        %v1575 = vpop.f32.mrb[0].mxu0
        %v1576 = vadd.f32 0.0, %v1575
        %v1577 = vpop.f32.mrb[0].mxu0
        %1578 = vmatprep.mubr.f32.mxu0 0.0
        %1579 = vmatmul.mubr.f32.gmra.mrb[0].mxu0 %v1359
        %v1580 = vpop.f32.mrb[0].mxu0
        %v1581 = vadd.f32 0.0, %v1580
        %v1582 = vpop.f32.mrb[0].mxu0
        %1583 = vmatprep.mubr.f32.mxu0 0.0
        %1584 = vmatmul.mubr.f32.gmra.mrb[0].mxu0 %v1362
        %v1585 = vpop.f32.mrb[0].mxu0
        %v1586 = vadd.f32 0.0, %v1585
        %v1587 = vpop.f32.mrb[0].mxu0
        %1588 = vmatprep.mubr.f32.mxu0 0.0
        %1589 = vmatmul.mubr.f32.gmra.mrb[0].mxu0 %v1365
        %v1590 = vpop.f32.mrb[0].mxu0
        %v1591 = vadd.f32 0.0, %v1590
        %v1592 = vpop.f32.mrb[0].mxu0
        %1593 = vmatprep.mubr.f32.mxu0 0.0
        %1594 = vmatmul.mubr.f32.gmra.mrb[0].mxu0 %v1368
        %v1595 = vpop.f32.mrb[0].mxu0
        %v1596 = vadd.f32 0.0, %v1595
        %v1597 = vpop.f32.mrb[0].mxu0
        %1598 = vmatprep.mubr.f32.mxu0 0.0
        %1599 = vmatmul.mubr.f32.gmra.mrb[0].mxu0 %v1371
        %v1600 = vpop.f32.mrb[0].mxu0
        %v1601 = vadd.f32 0.0, %v1600
        %v1602 = vpop.f32.mrb[0].mxu0
        %1603 = vmatprep.mubr.f32.mxu0 0.0
        %1604 = vmatmul.mubr.f32.gmra.mrb[0].mxu0 %v1374
        %v1605 = vpop.f32.mrb[0].mxu0
        %v1606 = vadd.f32 0.0, %v1605
        %v1607 = vpop.f32.mrb[0].mxu0
        %1608 = vmatprep.mubr.f32.mxu0 0.0
        %1609 = vmatmul.mubr.f32.gmra.mrb[0].mxu0 %v1377
        %v1610 = vpop.f32.mrb[0].mxu0
        %v1611 = vadd.f32 0.0, %v1610
        %v1612 = vpop.f32.mrb[0].mxu0
        %1613 = vmatprep.mubr.f32.mxu0 0.0
        %1614 = vmatmul.mubr.f32.gmra.mrb[0].mxu0 %v1380
        %v1615 = vpop.f32.mrb[0].mxu0
        %v1616 = vadd.f32 0.0, %v1615
        %v1617 = vpop.f32.mrb[0].mxu0
        %1618 = vmatprep.mubr.f32.mxu0 0.0
        %1619 = vmatmul.mubr.f32.gmra.mrb[0].mxu0 %v1383
        %v1620 = vpop.f32.mrb[0].mxu0
        %v1621 = vadd.f32 0.0, %v1620
        %v1622 = vpop.f32.mrb[0].mxu0
        %1623 = vmatprep.mubr.f32.mxu0 0.0
        %1624 = vmatmul.mubr.f32.gmra.mrb[0].mxu0 %v1386
        %v1625 = vpop.f32.mrb[0].mxu0
        %v1626 = vadd.f32 0.0, %v1625
        %v1627 = vpop.f32.mrb[0].mxu0
        %1628 = vmatprep.mubr.f32.mxu0 0.0
        %1629 = vmatmul.mubr.f32.gmra.mrb[0].mxu0 %v1389
        %v1630 = vpop.f32.mrb[0].mxu0
        %v1631 = vadd.f32 0.0, %v1630
        %v1632 = vpop.f32.mrb[0].mxu0
        %1633 = vmatprep.mubr.f32.mxu0 0.0
        %1634 = vmatmul.mubr.f32.gmra.mrb[0].mxu0 %v1392
        %v1635 = vpop.f32.mrb[0].mxu0
        %v1636 = vadd.f32 0.0, %v1635
        %v1637 = vpop.f32.mrb[0].mxu0
        %1638 = vmatprep.mubr.f32.mxu0 0.0
        %1639 = vmatmul.mubr.f32.gmra.mrb[0].mxu0 %v1395
        %v1640 = vpop.f32.mrb[0].mxu0
        %v1641 = vadd.f32 0.0, %v1640
        %v1642 = vpop.f32.mrb[0].mxu0
        %1643 = vmatprep.mubr.f32.mxu0 0.0
        %1644 = vmatmul.mubr.f32.gmra.mrb[0].mxu0 %v1398
        %v1645 = vpop.f32.mrb[0].mxu0
        %v1646 = vadd.f32 0.0, %v1645
        %v1647 = vpop.f32.mrb[0].mxu0
        %1648 = vmatprep.mubr.f32.mxu0 0.0
        %1649 = vmatmul.mubr.f32.gmra.mrb[0].mxu0 %v1401
        %v1650 = vpop.f32.mrb[0].mxu0
        %v1651 = vadd.f32 0.0, %v1650
        %v1652 = vpop.f32.mrb[0].mxu0
        %1653 = vmatprep.mubr.f32.mxu0 0.0
        %1654 = vmatmul.mubr.f32.gmra.mrb[0].mxu0 %v1404
        %v1655 = vpop.f32.mrb[0].mxu0
        %v1656 = vadd.f32 0.0, %v1655
        %v1657 = vpop.f32.mrb[0].mxu0
        %1658 = vmatprep.mubr.f32.mxu0 0.0
        %1659 = vmatmul.mubr.f32.gmra.mrb[0].mxu0 %v1407
        %v1660 = vpop.f32.mrb[0].mxu0
        %v1661 = vadd.f32 0.0, %v1660
        %v1662 = vpop.f32.mrb[0].mxu0
        %1663 = vmatprep.mubr.f32.mxu0 0.0
        %1664 = vmatmul.mubr.f32.gmra.mrb[0].mxu0 %v1410
        %v1665 = vpop.f32.mrb[0].mxu0
        %v1666 = vadd.f32 0.0, %v1665
        %v1667 = vpop.f32.mrb[0].mxu0
        %1668 = vmatprep.mubr.f32.mxu0 0.0
        %1669 = vmatmul.mubr.f32.gmra.mrb[0].mxu0 %v1413
        %v1670 = vpop.f32.mrb[0].mxu0
        %v1671 = vadd.f32 0.0, %v1670
        %v1672 = vpop.f32.mrb[0].mxu0
        %1673 = vmatprep.mubr.f32.mxu0 0.0
        %1674 = vmatmul.mubr.f32.gmra.mrb[0].mxu0 %v1416
        %v1675 = vpop.f32.mrb[0].mxu0
        %v1676 = vadd.f32 0.0, %v1675
        %v1677 = vpop.f32.mrb[0].mxu0
        %1678 = vmatprep.mubr.f32.mxu0 0.0
        %1679 = vmatmul.mubr.f32.gmra.mrb[0].mxu0 %v1419
        %v1680 = vpop.f32.mrb[0].mxu0
        %v1681 = vadd.f32 0.0, %v1680
        %v1682 = vpop.f32.mrb[0].mxu0
        %1683 = vdwg.mxu0
        %v1684 = vadd.f32 %v1070, %v1491
        %v1685 = vadd.f32 %v1075, %v1496
        %v1686 = vadd.f32 %v1080, %v1501
        %v1687 = vadd.f32 %v1085, %v1506
        %v1688 = vadd.f32 %v1090, %v1511
        %v1689 = vadd.f32 %v1095, %v1516
        %v1690 = vadd.f32 %v1100, %v1521
        %v1691 = vadd.f32 %v1105, %v1526
        %v1692 = vadd.f32 %v1110, %v1531
        %v1693 = vadd.f32 %v1115, %v1536
        %v1694 = vadd.f32 %v1120, %v1541
        %v1695 = vadd.f32 %v1125, %v1546
        %v1696 = vadd.f32 %v1130, %v1551
        %v1697 = vadd.f32 %v1135, %v1556
        %v1698 = vadd.f32 %v1140, %v1561
        %v1699 = vadd.f32 %v1145, %v1566
        %v1700 = vadd.f32 %v1150, %v1571
        %v1701 = vadd.f32 %v1155, %v1576
        %v1702 = vadd.f32 %v1160, %v1581
        %v1703 = vadd.f32 %v1165, %v1586
        %v1704 = vadd.f32 %v1170, %v1591
        %v1705 = vadd.f32 %v1175, %v1596
        %v1706 = vadd.f32 %v1180, %v1601
        %v1707 = vadd.f32 %v1185, %v1606
        %v1708 = vadd.f32 %v1190, %v1611
        %v1709 = vadd.f32 %v1195, %v1616
        %v1710 = vadd.f32 %v1200, %v1621
        %v1711 = vadd.f32 %v1205, %v1626
        %v1712 = vadd.f32 %v1210, %v1631
        %v1713 = vadd.f32 %v1215, %v1636
        %v1714 = vadd.f32 %v1220, %v1641
        %v1715 = vadd.f32 %v1225, %v1646
        %v1716 = vadd.f32 %v1230, %v1651
        %v1717 = vadd.f32 %v1235, %v1656
        %v1718 = vadd.f32 %v1240, %v1661
        %v1719 = vadd.f32 %v1245, %v1666
        %v1720 = vadd.f32 %v1250, %v1671
        %v1721 = vadd.f32 %v1255, %v1676
        %v1722 = vadd.f32 %v1260, %v1681
        %v1723 = vld [vmem:[%s5] sm:$0x1]
        %v1725 = vlaneseq
        %v1726 = vshrl.u32 %v1725, 7
        %v1727 = vsub.s32 0, %v1726
        %v1728 = vrot.slane %v1723, %v1727
        %v1730 = vadd.f32 %v1684, %v1728
        %v1731 = vadd.f32 %v1685, %v1728
        %v1732 = vadd.f32 %v1686, %v1728
        %v1733 = vadd.f32 %v1687, %v1728
        %v1734 = vadd.f32 %v1688, %v1728
        %v1735 = vadd.f32 %v1689, %v1728
        %v1736 = vadd.f32 %v1690, %v1728
        %v1737 = vadd.f32 %v1691, %v1728
        %v1738 = vadd.f32 %v1692, %v1728
        %v1739 = vadd.f32 %v1693, %v1728
        %v1740 = vadd.f32 %v1694, %v1728
        %v1741 = vadd.f32 %v1695, %v1728
        %v1742 = vadd.f32 %v1696, %v1728
        %v1743 = vadd.f32 %v1697, %v1728
        %v1744 = vadd.f32 %v1698, %v1728
        %v1745 = vadd.f32 %v1699, %v1728
        %v1746 = vadd.f32 %v1700, %v1728
        %v1747 = vadd.f32 %v1701, %v1728
        %v1748 = vadd.f32 %v1702, %v1728
        %v1749 = vadd.f32 %v1703, %v1728
        %v1750 = vadd.f32 %v1704, %v1728
        %v1751 = vadd.f32 %v1705, %v1728
        %v1752 = vadd.f32 %v1706, %v1728
        %v1753 = vadd.f32 %v1707, %v1728
        %v1754 = vadd.f32 %v1708, %v1728
        %v1755 = vadd.f32 %v1709, %v1728
        %v1756 = vadd.f32 %v1710, %v1728
        %v1757 = vadd.f32 %v1711, %v1728
        %v1758 = vadd.f32 %v1712, %v1728
        %v1759 = vadd.f32 %v1713, %v1728
        %v1760 = vadd.f32 %v1714, %v1728
        %v1761 = vadd.f32 %v1715, %v1728
        %v1762 = vadd.f32 %v1716, %v1728
        %v1763 = vadd.f32 %v1717, %v1728
        %v1764 = vadd.f32 %v1718, %v1728
        %v1765 = vadd.f32 %v1719, %v1728
        %v1766 = vadd.f32 %v1720, %v1728
        %v1767 = vadd.f32 %v1721, %v1728
        %v1768 = vadd.f32 %v1722, %v1728
        %v1769 = vmax.f32 %v1730, 0.0
        %v1770 = vmax.f32 %v1731, 0.0
        %v1771 = vmax.f32 %v1732, 0.0
        %v1772 = vmax.f32 %v1733, 0.0
        %v1773 = vmax.f32 %v1734, 0.0
        %v1774 = vmax.f32 %v1735, 0.0
        %v1775 = vmax.f32 %v1736, 0.0
        %v1776 = vmax.f32 %v1737, 0.0
        %v1777 = vmax.f32 %v1738, 0.0
        %v1778 = vmax.f32 %v1739, 0.0
        %v1779 = vmax.f32 %v1740, 0.0
        %v1780 = vmax.f32 %v1741, 0.0
        %v1781 = vmax.f32 %v1742, 0.0
        %v1782 = vmax.f32 %v1743, 0.0
        %v1783 = vmax.f32 %v1744, 0.0
        %v1784 = vmax.f32 %v1745, 0.0
        %v1785 = vmax.f32 %v1746, 0.0
        %v1786 = vmax.f32 %v1747, 0.0
        %v1787 = vmax.f32 %v1748, 0.0
        %v1788 = vmax.f32 %v1749, 0.0
        %v1789 = vmax.f32 %v1750, 0.0
        %v1790 = vmax.f32 %v1751, 0.0
        %v1791 = vmax.f32 %v1752, 0.0
        %v1792 = vmax.f32 %v1753, 0.0
        %v1793 = vmax.f32 %v1754, 0.0
        %v1794 = vmax.f32 %v1755, 0.0
        %v1795 = vmax.f32 %v1756, 0.0
        %v1796 = vmax.f32 %v1757, 0.0
        %v1797 = vmax.f32 %v1758, 0.0
        %v1798 = vmax.f32 %v1759, 0.0
        %v1799 = vmax.f32 %v1760, 0.0
        %v1800 = vmax.f32 %v1761, 0.0
        %v1801 = vmax.f32 %v1762, 0.0
        %v1802 = vmax.f32 %v1763, 0.0
        %v1803 = vmax.f32 %v1764, 0.0
        %v1804 = vmax.f32 %v1765, 0.0
        %v1805 = vmax.f32 %v1766, 0.0
        %v1806 = vmax.f32 %v1767, 0.0
        %v1807 = vmax.f32 %v1768, 0.0
        %v1808 = vld [vmem:[%s1] sm:$0xff]
        %v1809 = vld [vmem:[%s1 + $0x8] sm:$0xff]
        %v1810 = vld [vmem:[%s1 + $0x10] sm:$0xff]
        %v1811 = vld [vmem:[%s1 + $0x18] sm:$0xff]
        %v1812 = vld [vmem:[%s1 + $0x20] sm:$0xff]
        %v1813 = vld [vmem:[%s1 + $0x28] sm:$0xff]
        %v1814 = vld [vmem:[%s1 + $0x30] sm:$0xff]
        %v1815 = vld [vmem:[%s1 + $0x38] sm:$0xff]
        %v1816 = vld [vmem:[%s1 + $0x40] sm:$0xff]
        %v1817 = vld [vmem:[%s1 + $0x48] sm:$0xff]
        %v1818 = vld [vmem:[%s1 + $0x50] sm:$0xff]
        %v1819 = vld [vmem:[%s1 + $0x58] sm:$0xff]
        %v1820 = vld [vmem:[%s1 + $0x60] sm:$0xff]
        %v1821 = vld [vmem:[%s1 + $0x68] sm:$0xff]
        %v1822 = vld [vmem:[%s1 + $0x70] sm:$0xff]
        %v1823 = vld [vmem:[%s1 + $0x78] sm:$0xff]
        %v1824 = vld [vmem:[%s1 + $0x80] sm:$0xff]
        %v1825 = vld [vmem:[%s1 + $0x88] sm:$0xff]
        %v1826 = vld [vmem:[%s1 + $0x90] sm:$0xff]
        %v1827 = vld [vmem:[%s1 + $0x98] sm:$0xff]
        %v1828 = vld [vmem:[%s1 + $0xa0] sm:$0xff]
        %v1829 = vld [vmem:[%s1 + $0xa8] sm:$0xff]
        %v1830 = vld [vmem:[%s1 + $0xb0] sm:$0xff]
        %v1831 = vld [vmem:[%s1 + $0xb8] sm:$0xff]
        %v1832 = vld [vmem:[%s1 + $0xc0] sm:$0xff]
        %v1833 = vld [vmem:[%s1 + $0xc8] sm:$0xff]
        %v1834 = vld [vmem:[%s1 + $0xd0] sm:$0xff]
        %v1835 = vld [vmem:[%s1 + $0xd8] sm:$0xff]
        %v1836 = vld [vmem:[%s1 + $0xe0] sm:$0xff]
        %v1837 = vld [vmem:[%s1 + $0xe8] sm:$0xff]
        %v1838 = vld [vmem:[%s1 + $0xf0] sm:$0xff]
        %v1839 = vld [vmem:[%s1 + $0xf8] sm:$0xff]
        %v1840 = vld [vmem:[%s1 + $0x100] sm:$0xff]
        %v1841 = vld [vmem:[%s1 + $0x108] sm:$0xff]
        %v1842 = vld [vmem:[%s1 + $0x110] sm:$0xff]
        %v1843 = vld [vmem:[%s1 + $0x118] sm:$0xff]
        %v1844 = vld [vmem:[%s1 + $0x120] sm:$0xff]
        %v1845 = vld [vmem:[%s1 + $0x128] sm:$0xff]
        %v1846 = vld [vmem:[%s1 + $0x130] sm:$0xff]
        %1848 = vset.pattern.permute.xlu0 0
        %1849 = vperm.xlu0 %1848, %v1808
        %v1850 = vpop.permute.xlu0 %1849
        %1853 = vset.pattern.permute.xlu0 0
        %1854 = vperm.xlu0 %1853, %v1809
        %v1855 = vpop.permute.xlu0 %1854
        %1858 = vset.pattern.permute.xlu0 0
        %1859 = vperm.xlu0 %1858, %v1810
        %v1860 = vpop.permute.xlu0 %1859
        %1863 = vset.pattern.permute.xlu0 0
        %1864 = vperm.xlu0 %1863, %v1811
        %v1865 = vpop.permute.xlu0 %1864
        %1868 = vset.pattern.permute.xlu0 0
        %1869 = vperm.xlu0 %1868, %v1812
        %v1870 = vpop.permute.xlu0 %1869
        %1873 = vset.pattern.permute.xlu0 0
        %1874 = vperm.xlu0 %1873, %v1813
        %v1875 = vpop.permute.xlu0 %1874
        %1878 = vset.pattern.permute.xlu0 0
        %1879 = vperm.xlu0 %1878, %v1814
        %v1880 = vpop.permute.xlu0 %1879
        %1883 = vset.pattern.permute.xlu0 0
        %1884 = vperm.xlu0 %1883, %v1815
        %v1885 = vpop.permute.xlu0 %1884
        %1888 = vset.pattern.permute.xlu0 0
        %1889 = vperm.xlu0 %1888, %v1816
        %v1890 = vpop.permute.xlu0 %1889
        %1893 = vset.pattern.permute.xlu0 0
        %1894 = vperm.xlu0 %1893, %v1817
        %v1895 = vpop.permute.xlu0 %1894
        %1898 = vset.pattern.permute.xlu0 0
        %1899 = vperm.xlu0 %1898, %v1818
        %v1900 = vpop.permute.xlu0 %1899
        %1903 = vset.pattern.permute.xlu0 0
        %1904 = vperm.xlu0 %1903, %v1819
        %v1905 = vpop.permute.xlu0 %1904
        %1908 = vset.pattern.permute.xlu0 0
        %1909 = vperm.xlu0 %1908, %v1820
        %v1910 = vpop.permute.xlu0 %1909
        %1913 = vset.pattern.permute.xlu0 0
        %1914 = vperm.xlu0 %1913, %v1821
        %v1915 = vpop.permute.xlu0 %1914
        %1918 = vset.pattern.permute.xlu0 0
        %1919 = vperm.xlu0 %1918, %v1822
        %v1920 = vpop.permute.xlu0 %1919
        %1923 = vset.pattern.permute.xlu0 0
        %1924 = vperm.xlu0 %1923, %v1823
        %v1925 = vpop.permute.xlu0 %1924
        %1928 = vset.pattern.permute.xlu0 0
        %1929 = vperm.xlu0 %1928, %v1824
        %v1930 = vpop.permute.xlu0 %1929
        %1933 = vset.pattern.permute.xlu0 0
        %1934 = vperm.xlu0 %1933, %v1825
        %v1935 = vpop.permute.xlu0 %1934
        %1938 = vset.pattern.permute.xlu0 0
        %1939 = vperm.xlu0 %1938, %v1826
        %v1940 = vpop.permute.xlu0 %1939
        %1943 = vset.pattern.permute.xlu0 0
        %1944 = vperm.xlu0 %1943, %v1827
        %v1945 = vpop.permute.xlu0 %1944
        %1948 = vset.pattern.permute.xlu0 0
        %1949 = vperm.xlu0 %1948, %v1828
        %v1950 = vpop.permute.xlu0 %1949
        %1953 = vset.pattern.permute.xlu0 0
        %1954 = vperm.xlu0 %1953, %v1829
        %v1955 = vpop.permute.xlu0 %1954
        %1958 = vset.pattern.permute.xlu0 0
        %1959 = vperm.xlu0 %1958, %v1830
        %v1960 = vpop.permute.xlu0 %1959
        %1963 = vset.pattern.permute.xlu0 0
        %1964 = vperm.xlu0 %1963, %v1831
        %v1965 = vpop.permute.xlu0 %1964
        %1968 = vset.pattern.permute.xlu0 0
        %1969 = vperm.xlu0 %1968, %v1832
        %v1970 = vpop.permute.xlu0 %1969
        %1973 = vset.pattern.permute.xlu0 0
        %1974 = vperm.xlu0 %1973, %v1833
        %v1975 = vpop.permute.xlu0 %1974
        %1978 = vset.pattern.permute.xlu0 0
        %1979 = vperm.xlu0 %1978, %v1834
        %v1980 = vpop.permute.xlu0 %1979
        %1983 = vset.pattern.permute.xlu0 0
        %1984 = vperm.xlu0 %1983, %v1835
        %v1985 = vpop.permute.xlu0 %1984
        %1988 = vset.pattern.permute.xlu0 0
        %1989 = vperm.xlu0 %1988, %v1836
        %v1990 = vpop.permute.xlu0 %1989
        %1993 = vset.pattern.permute.xlu0 0
        %1994 = vperm.xlu0 %1993, %v1837
        %v1995 = vpop.permute.xlu0 %1994
        %1998 = vset.pattern.permute.xlu0 0
        %1999 = vperm.xlu0 %1998, %v1838
        %v2000 = vpop.permute.xlu0 %1999
        %2003 = vset.pattern.permute.xlu0 0
        %2004 = vperm.xlu0 %2003, %v1839
        %v2005 = vpop.permute.xlu0 %2004
        %2008 = vset.pattern.permute.xlu0 0
        %2009 = vperm.xlu0 %2008, %v1840
        %v2010 = vpop.permute.xlu0 %2009
        %2013 = vset.pattern.permute.xlu0 0
        %2014 = vperm.xlu0 %2013, %v1841
        %v2015 = vpop.permute.xlu0 %2014
        %2018 = vset.pattern.permute.xlu0 0
        %2019 = vperm.xlu0 %2018, %v1842
        %v2020 = vpop.permute.xlu0 %2019
        %2023 = vset.pattern.permute.xlu0 0
        %2024 = vperm.xlu0 %2023, %v1843
        %v2025 = vpop.permute.xlu0 %2024
        %2028 = vset.pattern.permute.xlu0 0
        %2029 = vperm.xlu0 %2028, %v1844
        %v2030 = vpop.permute.xlu0 %2029
        %2033 = vset.pattern.permute.xlu0 0
        %2034 = vperm.xlu0 %2033, %v1845
        %v2035 = vpop.permute.xlu0 %2034
        %2038 = vset.pattern.permute.xlu0 0
        %2039 = vperm.xlu0 %2038, %v1846
        %v2040 = vpop.permute.xlu0 %2039
        %v2042 = vmul.f32 %v1769, %v1850
        %v2043 = vmul.f32 %v1770, %v1855
        %v2044 = vmul.f32 %v1771, %v1860
        %v2045 = vmul.f32 %v1772, %v1865
        %v2046 = vmul.f32 %v1773, %v1870
        %v2047 = vmul.f32 %v1774, %v1875
        %v2048 = vmul.f32 %v1775, %v1880
        %v2049 = vmul.f32 %v1776, %v1885
        %v2050 = vmul.f32 %v1777, %v1890
        %v2051 = vmul.f32 %v1778, %v1895
        %v2052 = vmul.f32 %v1779, %v1900
        %v2053 = vmul.f32 %v1780, %v1905
        %v2054 = vmul.f32 %v1781, %v1910
        %v2055 = vmul.f32 %v1782, %v1915
        %v2056 = vmul.f32 %v1783, %v1920
        %v2057 = vmul.f32 %v1784, %v1925
        %v2058 = vmul.f32 %v1785, %v1930
        %v2059 = vmul.f32 %v1786, %v1935
        %v2060 = vmul.f32 %v1787, %v1940
        %v2061 = vmul.f32 %v1788, %v1945
        %v2062 = vmul.f32 %v1789, %v1950
        %v2063 = vmul.f32 %v1790, %v1955
        %v2064 = vmul.f32 %v1791, %v1960
        %v2065 = vmul.f32 %v1792, %v1965
        %v2066 = vmul.f32 %v1793, %v1970
        %v2067 = vmul.f32 %v1794, %v1975
        %v2068 = vmul.f32 %v1795, %v1980
        %v2069 = vmul.f32 %v1796, %v1985
        %v2070 = vmul.f32 %v1797, %v1990
        %v2071 = vmul.f32 %v1798, %v1995
        %v2072 = vmul.f32 %v1799, %v2000
        %v2073 = vmul.f32 %v1800, %v2005
        %v2074 = vmul.f32 %v1801, %v2010
        %v2075 = vmul.f32 %v1802, %v2015
        %v2076 = vmul.f32 %v1803, %v2020
        %v2077 = vmul.f32 %v1804, %v2025
        %v2078 = vmul.f32 %v1805, %v2030
        %v2079 = vmul.f32 %v1806, %v2035
        %v2080 = vmul.f32 %v1807, %v2040
        %2081 = vst.msk [vmem:[#allocation2 + $0x4] sm:$0xff] %vm414, %v2042
        %2082 = vst.msk [vmem:[#allocation2 + $0xc] sm:$0xff] %vm414, %v2043
        %2083 = vst.msk [vmem:[#allocation2 + $0x14] sm:$0xff] %vm414, %v2044
        %2084 = vst.msk [vmem:[#allocation2 + $0x1c] sm:$0xff] %vm414, %v2045
        %2085 = vst.msk [vmem:[#allocation2 + $0x24] sm:$0xff] %vm414, %v2046
        %2086 = vst.msk [vmem:[#allocation2 + $0x2c] sm:$0xff] %vm414, %v2047
        %2087 = vst.msk [vmem:[#allocation2 + $0x34] sm:$0xff] %vm414, %v2048
        %2088 = vst.msk [vmem:[#allocation2 + $0x3c] sm:$0xff] %vm414, %v2049
        %2089 = vst.msk [vmem:[#allocation2 + $0x44] sm:$0xff] %vm414, %v2050
        %2090 = vst.msk [vmem:[#allocation2 + $0x4c] sm:$0xff] %vm414, %v2051
        %2091 = vst.msk [vmem:[#allocation2 + $0x54] sm:$0xff] %vm414, %v2052
        %2092 = vst.msk [vmem:[#allocation2 + $0x5c] sm:$0xff] %vm414, %v2053
        %2093 = vst.msk [vmem:[#allocation2 + $0x64] sm:$0xff] %vm414, %v2054
        %2094 = vst.msk [vmem:[#allocation2 + $0x6c] sm:$0xff] %vm414, %v2055
        %2095 = vst.msk [vmem:[#allocation2 + $0x74] sm:$0xff] %vm414, %v2056
        %2096 = vst.msk [vmem:[#allocation2 + $0x7c] sm:$0xff] %vm414, %v2057
        %2097 = vst.msk [vmem:[#allocation2 + $0x84] sm:$0xff] %vm414, %v2058
        %2098 = vst.msk [vmem:[#allocation2 + $0x8c] sm:$0xff] %vm414, %v2059
        %2099 = vst.msk [vmem:[#allocation2 + $0x94] sm:$0xff] %vm414, %v2060
        %2100 = vst.msk [vmem:[#allocation2 + $0x9c] sm:$0xff] %vm414, %v2061
        %2101 = vst.msk [vmem:[#allocation2 + $0xa4] sm:$0xff] %vm414, %v2062
        %2102 = vst.msk [vmem:[#allocation2 + $0xac] sm:$0xff] %vm414, %v2063
        %2103 = vst.msk [vmem:[#allocation2 + $0xb4] sm:$0xff] %vm414, %v2064
        %2104 = vst.msk [vmem:[#allocation2 + $0xbc] sm:$0xff] %vm414, %v2065
        %2105 = vst.msk [vmem:[#allocation2 + $0xc4] sm:$0xff] %vm414, %v2066
        %2106 = vst.msk [vmem:[#allocation2 + $0xcc] sm:$0xff] %vm414, %v2067
        %2107 = vst.msk [vmem:[#allocation2 + $0xd4] sm:$0xff] %vm414, %v2068
        %2108 = vst.msk [vmem:[#allocation2 + $0xdc] sm:$0xff] %vm414, %v2069
        %2109 = vst.msk [vmem:[#allocation2 + $0xe4] sm:$0xff] %vm414, %v2070
        %2110 = vst.msk [vmem:[#allocation2 + $0xec] sm:$0xff] %vm414, %v2071
        %2111 = vst.msk [vmem:[#allocation2 + $0xf4] sm:$0xff] %vm414, %v2072
        %2112 = vst.msk [vmem:[#allocation2 + $0xfc] sm:$0xff] %vm414, %v2073
        %2113 = vst.msk [vmem:[#allocation2 + $0x104] sm:$0xff] %vm414, %v2074
        %2114 = vst.msk [vmem:[#allocation2 + $0x10c] sm:$0xff] %vm414, %v2075
        %2115 = vst.msk [vmem:[#allocation2 + $0x114] sm:$0xff] %vm414, %v2076
        %2116 = vst.msk [vmem:[#allocation2 + $0x11c] sm:$0xff] %vm414, %v2077
        %2117 = vst.msk [vmem:[#allocation2 + $0x124] sm:$0xff] %vm414, %v2078
        %2118 = vst.msk [vmem:[#allocation2 + $0x12c] sm:$0xff] %vm414, %v2079
        %2119 = vst.msk [vmem:[#allocation2 + $0x134] sm:$0xff] %vm414, %v2080
        %v2120 = vld [vmem:[#allocation2] sm:$0xff]
        %v2121 = vld [vmem:[#allocation2 + $0x8] sm:$0xff]
        %v2122 = vld [vmem:[#allocation2 + $0x10] sm:$0xff]
        %v2123 = vld [vmem:[#allocation2 + $0x18] sm:$0xff]
        %v2124 = vld [vmem:[#allocation2 + $0x20] sm:$0xff]
        %v2125 = vld [vmem:[#allocation2 + $0x28] sm:$0xff]
        %v2126 = vld [vmem:[#allocation2 + $0x30] sm:$0xff]
        %v2127 = vld [vmem:[#allocation2 + $0x38] sm:$0xff]
        %v2128 = vld [vmem:[#allocation2 + $0x40] sm:$0xff]
        %v2129 = vld [vmem:[#allocation2 + $0x48] sm:$0xff]
        %v2130 = vld [vmem:[#allocation2 + $0x50] sm:$0xff]
        %v2131 = vld [vmem:[#allocation2 + $0x58] sm:$0xff]
        %v2132 = vld [vmem:[#allocation2 + $0x60] sm:$0xff]
        %v2133 = vld [vmem:[#allocation2 + $0x68] sm:$0xff]
        %v2134 = vld [vmem:[#allocation2 + $0x70] sm:$0xff]
        %v2135 = vld [vmem:[#allocation2 + $0x78] sm:$0xff]
        %v2136 = vld [vmem:[#allocation2 + $0x80] sm:$0xff]
        %v2137 = vld [vmem:[#allocation2 + $0x88] sm:$0xff]
        %v2138 = vld [vmem:[#allocation2 + $0x90] sm:$0xff]
        %v2139 = vld [vmem:[#allocation2 + $0x98] sm:$0xff]
        %v2140 = vld [vmem:[#allocation2 + $0xa0] sm:$0xff]
        %v2141 = vld [vmem:[#allocation2 + $0xa8] sm:$0xff]
        %v2142 = vld [vmem:[#allocation2 + $0xb0] sm:$0xff]
        %v2143 = vld [vmem:[#allocation2 + $0xb8] sm:$0xff]
        %v2144 = vld [vmem:[#allocation2 + $0xc0] sm:$0xff]
        %v2145 = vld [vmem:[#allocation2 + $0xc8] sm:$0xff]
        %v2146 = vld [vmem:[#allocation2 + $0xd0] sm:$0xff]
        %v2147 = vld [vmem:[#allocation2 + $0xd8] sm:$0xff]
        %v2148 = vld [vmem:[#allocation2 + $0xe0] sm:$0xff]
        %v2149 = vld [vmem:[#allocation2 + $0xe8] sm:$0xff]
        %v2150 = vld [vmem:[#allocation2 + $0xf0] sm:$0xff]
        %v2151 = vld [vmem:[#allocation2 + $0xf8] sm:$0xff]
        %v2152 = vld [vmem:[#allocation2 + $0x100] sm:$0xff]
        %v2153 = vld [vmem:[#allocation2 + $0x108] sm:$0xff]
        %v2154 = vld [vmem:[#allocation2 + $0x110] sm:$0xff]
        %v2155 = vld [vmem:[#allocation2 + $0x118] sm:$0xff]
        %v2156 = vld [vmem:[#allocation2 + $0x120] sm:$0xff]
        %v2157 = vld [vmem:[#allocation2 + $0x128] sm:$0xff]
        %v2158 = vld [vmem:[#allocation2 + $0x130] sm:$0xff]
        %v2159 = vld [vmem:[%s6] sm:$0xff]
        %v2160 = vld [vmem:[%s6 + $0x8] sm:$0xff]
        %v2161 = vld [vmem:[%s6 + $0x10] sm:$0xff]
        %v2162 = vld [vmem:[%s6 + $0x18] sm:$0xff]
        %v2163 = vld [vmem:[#allocation2 + $0x2] sm:$0xff]
        %v2164 = vld [vmem:[#allocation2 + $0xa] sm:$0xff]
        %v2165 = vld [vmem:[#allocation2 + $0x12] sm:$0xff]
        %v2166 = vld [vmem:[#allocation2 + $0x1a] sm:$0xff]
        %v2167 = vld [vmem:[#allocation2 + $0x22] sm:$0xff]
        %v2168 = vld [vmem:[#allocation2 + $0x2a] sm:$0xff]
        %v2169 = vld [vmem:[#allocation2 + $0x32] sm:$0xff]
        %v2170 = vld [vmem:[#allocation2 + $0x3a] sm:$0xff]
        %v2171 = vld [vmem:[#allocation2 + $0x42] sm:$0xff]
        %v2172 = vld [vmem:[#allocation2 + $0x4a] sm:$0xff]
        %v2173 = vld [vmem:[#allocation2 + $0x52] sm:$0xff]
        %v2174 = vld [vmem:[#allocation2 + $0x5a] sm:$0xff]
        %v2175 = vld [vmem:[#allocation2 + $0x62] sm:$0xff]
        %v2176 = vld [vmem:[#allocation2 + $0x6a] sm:$0xff]
        %v2177 = vld [vmem:[#allocation2 + $0x72] sm:$0xff]
        %v2178 = vld [vmem:[#allocation2 + $0x7a] sm:$0xff]
        %v2179 = vld [vmem:[#allocation2 + $0x82] sm:$0xff]
        %v2180 = vld [vmem:[#allocation2 + $0x8a] sm:$0xff]
        %v2181 = vld [vmem:[#allocation2 + $0x92] sm:$0xff]
        %v2182 = vld [vmem:[#allocation2 + $0x9a] sm:$0xff]
        %v2183 = vld [vmem:[#allocation2 + $0xa2] sm:$0xff]
        %v2184 = vld [vmem:[#allocation2 + $0xaa] sm:$0xff]
        %v2185 = vld [vmem:[#allocation2 + $0xb2] sm:$0xff]
        %v2186 = vld [vmem:[#allocation2 + $0xba] sm:$0xff]
        %v2187 = vld [vmem:[#allocation2 + $0xc2] sm:$0xff]
        %v2188 = vld [vmem:[#allocation2 + $0xca] sm:$0xff]
        %v2189 = vld [vmem:[#allocation2 + $0xd2] sm:$0xff]
        %v2190 = vld [vmem:[#allocation2 + $0xda] sm:$0xff]
        %v2191 = vld [vmem:[#allocation2 + $0xe2] sm:$0xff]
        %v2192 = vld [vmem:[#allocation2 + $0xea] sm:$0xff]
        %v2193 = vld [vmem:[#allocation2 + $0xf2] sm:$0xff]
        %v2194 = vld [vmem:[#allocation2 + $0xfa] sm:$0xff]
        %v2195 = vld [vmem:[#allocation2 + $0x102] sm:$0xff]
        %v2196 = vld [vmem:[#allocation2 + $0x10a] sm:$0xff]
        %v2197 = vld [vmem:[#allocation2 + $0x112] sm:$0xff]
        %v2198 = vld [vmem:[#allocation2 + $0x11a] sm:$0xff]
        %v2199 = vld [vmem:[#allocation2 + $0x122] sm:$0xff]
        %v2200 = vld [vmem:[#allocation2 + $0x12a] sm:$0xff]
        %v2201 = vld [vmem:[#allocation2 + $0x132] sm:$0xff]
        %s2202 = scalar_lea.vmem %s6, 32
        %v2203 = vld [vmem:[%s2202] sm:$0xff]
        %v2204 = vld [vmem:[%s2202 + $0x8] sm:$0xff]
        %v2205 = vld [vmem:[%s2202 + $0x10] sm:$0xff]
        %v2206 = vld [vmem:[%s2202 + $0x18] sm:$0xff]
        %v2208 = vsel %vm414, %v2163, 0
        %v2211 = vsel %vm414, %v2164, 0
        %v2214 = vsel %vm414, %v2165, 0
        %v2217 = vsel %vm414, %v2166, 0
        %v2220 = vsel %vm414, %v2167, 0
        %v2223 = vsel %vm414, %v2168, 0
        %v2226 = vsel %vm414, %v2169, 0
        %v2229 = vsel %vm414, %v2170, 0
        %v2232 = vsel %vm414, %v2171, 0
        %v2235 = vsel %vm414, %v2172, 0
        %v2238 = vsel %vm414, %v2173, 0
        %v2241 = vsel %vm414, %v2174, 0
        %v2244 = vsel %vm414, %v2175, 0
        %v2247 = vsel %vm414, %v2176, 0
        %v2250 = vsel %vm414, %v2177, 0
        %v2253 = vsel %vm414, %v2178, 0
        %v2256 = vsel %vm414, %v2179, 0
        %v2259 = vsel %vm414, %v2180, 0
        %v2262 = vsel %vm414, %v2181, 0
        %v2265 = vsel %vm414, %v2182, 0
        %v2268 = vsel %vm414, %v2183, 0
        %v2271 = vsel %vm414, %v2184, 0
        %v2274 = vsel %vm414, %v2185, 0
        %v2277 = vsel %vm414, %v2186, 0
        %v2280 = vsel %vm414, %v2187, 0
        %v2283 = vsel %vm414, %v2188, 0
        %v2286 = vsel %vm414, %v2189, 0
        %v2289 = vsel %vm414, %v2190, 0
        %v2292 = vsel %vm414, %v2191, 0
        %v2295 = vsel %vm414, %v2192, 0
        %v2298 = vsel %vm414, %v2193, 0
        %v2301 = vsel %vm414, %v2194, 0
        %v2304 = vsel %vm414, %v2195, 0
        %v2307 = vsel %vm414, %v2196, 0
        %v2310 = vsel %vm414, %v2197, 0
        %v2313 = vsel %vm414, %v2198, 0
        %v2316 = vsel %vm414, %v2199, 0
        %v2319 = vsel %vm414, %v2200, 0
        %v2322 = vsel %vm414, %v2201, 0
        %2324 = vmatprep.subr.mxu0 0.0
        %2325 = vmatpush1.msra.mxu0 %v2203
        %2326 = vmatprep.subr.mxu0 0.0
        %2327 = vmatpush1.msra.mxu0 %v2204
        %2328 = vmatprep.subr.mxu0 0.0
        %2329 = vmatpush1.msra.mxu0 %v2205
        %2330 = vmatprep.subr.mxu0 0.0
        %2331 = vmatpush1.msra.mxu0 %v2206
        %2332 = vmatprep.subr.mxu0 0.0
        %2333 = vmatpush1.msra.mxu0 0.0
        %2334 = vmatprep.subr.mxu0 0.0
        %2335 = vmatpush1.msra.mxu0 0.0
        %2336 = vmatprep.subr.mxu0 0.0
        %2337 = vmatpush1.msra.mxu0 0.0
        %2338 = vmatprep.subr.mxu0 0.0
        %2339 = vmatpush1.msra.mxu0 0.0
        %2340 = vmatprep.subr.mxu0 0.0
        %2341 = vmatpush1.msra.mxu0 0.0
        %2342 = vmatprep.subr.mxu0 0.0
        %2343 = vmatpush1.msra.mxu0 0.0
        %2344 = vmatprep.subr.mxu0 0.0
        %2345 = vmatpush1.msra.mxu0 0.0
        %2346 = vmatprep.subr.mxu0 0.0
        %2347 = vmatpush1.msra.mxu0 0.0
        %2348 = vmatprep.subr.mxu0 0.0
        %2349 = vmatpush1.msra.mxu0 0.0
        %2350 = vmatprep.subr.mxu0 0.0
        %2351 = vmatpush1.msra.mxu0 0.0
        %2352 = vmatprep.subr.mxu0 0.0
        %2353 = vmatpush1.msra.mxu0 0.0
        %2354 = vmatprep.subr.mxu0 0.0
        %2355 = vmatpush1.msra.mxu0 0.0
        %2356 = vmatprep.subr.mxu0 0.0
        %2357 = vmatpush1.msra.mxu0 0.0
        %2358 = vmatprep.subr.mxu0 0.0
        %2359 = vmatpush1.msra.mxu0 0.0
        %2360 = vmatprep.subr.mxu0 0.0
        %2361 = vmatpush1.msra.mxu0 0.0
        %2362 = vmatprep.subr.mxu0 0.0
        %2363 = vmatpush1.msra.mxu0 0.0
        %2364 = vmatprep.subr.mxu0 0.0
        %2365 = vmatpush1.msra.mxu0 0.0
        %2366 = vmatprep.subr.mxu0 0.0
        %2367 = vmatpush1.msra.mxu0 0.0
        %2368 = vmatprep.subr.mxu0 0.0
        %2369 = vmatpush1.msra.mxu0 0.0
        %2370 = vmatprep.subr.mxu0 0.0
        %2371 = vmatpush1.msra.mxu0 0.0
        %2372 = vmatprep.subr.mxu0 0.0
        %2373 = vmatpush1.msra.mxu0 0.0
        %2374 = vmatprep.subr.mxu0 0.0
        %2375 = vmatpush1.msra.mxu0 0.0
        %2376 = vmatprep.subr.mxu0 0.0
        %2377 = vmatpush1.msra.mxu0 0.0
        %2378 = vmatprep.subr.mxu0 0.0
        %2379 = vmatpush1.msra.mxu0 0.0
        %2380 = vmatprep.subr.mxu0 0.0
        %2381 = vmatpush1.msra.mxu0 0.0
        %2382 = vmatprep.subr.mxu0 0.0
        %2383 = vmatpush1.msra.mxu0 0.0
        %2384 = vmatprep.subr.mxu0 0.0
        %2385 = vmatpush1.msra.mxu0 0.0
        %2386 = vmatprep.subr.mxu0 0.0
        %2387 = vmatpush1.msra.mxu0 0.0
        %2388 = vmatprep.mubr.f32.mxu0 0.0
        %2389 = vmatmul.mubr.f32.gmra.mrb[0].mxu0 %v2208
        %v2390 = vpop.f32.mrb[0].mxu0
        %v2391 = vadd.f32 0.0, %v2390
        %v2392 = vpop.f32.mrb[0].mxu0
        %2393 = vmatprep.mubr.f32.mxu0 0.0
        %2394 = vmatmul.mubr.f32.gmra.mrb[0].mxu0 %v2211
        %v2395 = vpop.f32.mrb[0].mxu0
        %v2396 = vadd.f32 0.0, %v2395
        %v2397 = vpop.f32.mrb[0].mxu0
        %2398 = vmatprep.mubr.f32.mxu0 0.0
        %2399 = vmatmul.mubr.f32.gmra.mrb[0].mxu0 %v2214
        %v2400 = vpop.f32.mrb[0].mxu0
        %v2401 = vadd.f32 0.0, %v2400
        %v2402 = vpop.f32.mrb[0].mxu0
        %2403 = vmatprep.mubr.f32.mxu0 0.0
        %2404 = vmatmul.mubr.f32.gmra.mrb[0].mxu0 %v2217
        %v2405 = vpop.f32.mrb[0].mxu0
        %v2406 = vadd.f32 0.0, %v2405
        %v2407 = vpop.f32.mrb[0].mxu0
        %2408 = vmatprep.mubr.f32.mxu0 0.0
        %2409 = vmatmul.mubr.f32.gmra.mrb[0].mxu0 %v2220
        %v2410 = vpop.f32.mrb[0].mxu0
        %v2411 = vadd.f32 0.0, %v2410
        %v2412 = vpop.f32.mrb[0].mxu0
        %2413 = vmatprep.mubr.f32.mxu0 0.0
        %2414 = vmatmul.mubr.f32.gmra.mrb[0].mxu0 %v2223
        %v2415 = vpop.f32.mrb[0].mxu0
        %v2416 = vadd.f32 0.0, %v2415
        %v2417 = vpop.f32.mrb[0].mxu0
        %2418 = vmatprep.mubr.f32.mxu0 0.0
        %2419 = vmatmul.mubr.f32.gmra.mrb[0].mxu0 %v2226
        %v2420 = vpop.f32.mrb[0].mxu0
        %v2421 = vadd.f32 0.0, %v2420
        %v2422 = vpop.f32.mrb[0].mxu0
        %2423 = vmatprep.mubr.f32.mxu0 0.0
        %2424 = vmatmul.mubr.f32.gmra.mrb[0].mxu0 %v2229
        %v2425 = vpop.f32.mrb[0].mxu0
        %v2426 = vadd.f32 0.0, %v2425
        %v2427 = vpop.f32.mrb[0].mxu0
        %2428 = vmatprep.mubr.f32.mxu0 0.0
        %2429 = vmatmul.mubr.f32.gmra.mrb[0].mxu0 %v2232
        %v2430 = vpop.f32.mrb[0].mxu0
        %v2431 = vadd.f32 0.0, %v2430
        %v2432 = vpop.f32.mrb[0].mxu0
        %2433 = vmatprep.mubr.f32.mxu0 0.0
        %2434 = vmatmul.mubr.f32.gmra.mrb[0].mxu0 %v2235
        %v2435 = vpop.f32.mrb[0].mxu0
        %v2436 = vadd.f32 0.0, %v2435
        %v2437 = vpop.f32.mrb[0].mxu0
        %2438 = vmatprep.mubr.f32.mxu0 0.0
        %2439 = vmatmul.mubr.f32.gmra.mrb[0].mxu0 %v2238
        %v2440 = vpop.f32.mrb[0].mxu0
        %v2441 = vadd.f32 0.0, %v2440
        %v2442 = vpop.f32.mrb[0].mxu0
        %2443 = vmatprep.mubr.f32.mxu0 0.0
        %2444 = vmatmul.mubr.f32.gmra.mrb[0].mxu0 %v2241
        %v2445 = vpop.f32.mrb[0].mxu0
        %v2446 = vadd.f32 0.0, %v2445
        %v2447 = vpop.f32.mrb[0].mxu0
        %2448 = vmatprep.mubr.f32.mxu0 0.0
        %2449 = vmatmul.mubr.f32.gmra.mrb[0].mxu0 %v2244
        %v2450 = vpop.f32.mrb[0].mxu0
        %v2451 = vadd.f32 0.0, %v2450
        %v2452 = vpop.f32.mrb[0].mxu0
        %2453 = vmatprep.mubr.f32.mxu0 0.0
        %2454 = vmatmul.mubr.f32.gmra.mrb[0].mxu0 %v2247
        %v2455 = vpop.f32.mrb[0].mxu0
        %v2456 = vadd.f32 0.0, %v2455
        %v2457 = vpop.f32.mrb[0].mxu0
        %2458 = vmatprep.mubr.f32.mxu0 0.0
        %2459 = vmatmul.mubr.f32.gmra.mrb[0].mxu0 %v2250
        %v2460 = vpop.f32.mrb[0].mxu0
        %v2461 = vadd.f32 0.0, %v2460
        %v2462 = vpop.f32.mrb[0].mxu0
        %2463 = vmatprep.mubr.f32.mxu0 0.0
        %2464 = vmatmul.mubr.f32.gmra.mrb[0].mxu0 %v2253
        %v2465 = vpop.f32.mrb[0].mxu0
        %v2466 = vadd.f32 0.0, %v2465
        %v2467 = vpop.f32.mrb[0].mxu0
        %2468 = vmatprep.mubr.f32.mxu0 0.0
        %2469 = vmatmul.mubr.f32.gmra.mrb[0].mxu0 %v2256
        %v2470 = vpop.f32.mrb[0].mxu0
        %v2471 = vadd.f32 0.0, %v2470
        %v2472 = vpop.f32.mrb[0].mxu0
        %2473 = vmatprep.mubr.f32.mxu0 0.0
        %2474 = vmatmul.mubr.f32.gmra.mrb[0].mxu0 %v2259
        %v2475 = vpop.f32.mrb[0].mxu0
        %v2476 = vadd.f32 0.0, %v2475
        %v2477 = vpop.f32.mrb[0].mxu0
        %2478 = vmatprep.mubr.f32.mxu0 0.0
        %2479 = vmatmul.mubr.f32.gmra.mrb[0].mxu0 %v2262
        %v2480 = vpop.f32.mrb[0].mxu0
        %v2481 = vadd.f32 0.0, %v2480
        %v2482 = vpop.f32.mrb[0].mxu0
        %2483 = vmatprep.mubr.f32.mxu0 0.0
        %2484 = vmatmul.mubr.f32.gmra.mrb[0].mxu0 %v2265
        %v2485 = vpop.f32.mrb[0].mxu0
        %v2486 = vadd.f32 0.0, %v2485
        %v2487 = vpop.f32.mrb[0].mxu0
        %2488 = vmatprep.mubr.f32.mxu0 0.0
        %2489 = vmatmul.mubr.f32.gmra.mrb[0].mxu0 %v2268
        %v2490 = vpop.f32.mrb[0].mxu0
        %v2491 = vadd.f32 0.0, %v2490
        %v2492 = vpop.f32.mrb[0].mxu0
        %2493 = vmatprep.mubr.f32.mxu0 0.0
        %2494 = vmatmul.mubr.f32.gmra.mrb[0].mxu0 %v2271
        %v2495 = vpop.f32.mrb[0].mxu0
        %v2496 = vadd.f32 0.0, %v2495
        %v2497 = vpop.f32.mrb[0].mxu0
        %2498 = vmatprep.mubr.f32.mxu0 0.0
        %2499 = vmatmul.mubr.f32.gmra.mrb[0].mxu0 %v2274
        %v2500 = vpop.f32.mrb[0].mxu0
        %v2501 = vadd.f32 0.0, %v2500
        %v2502 = vpop.f32.mrb[0].mxu0
        %2503 = vmatprep.mubr.f32.mxu0 0.0
        %2504 = vmatmul.mubr.f32.gmra.mrb[0].mxu0 %v2277
        %v2505 = vpop.f32.mrb[0].mxu0
        %v2506 = vadd.f32 0.0, %v2505
        %v2507 = vpop.f32.mrb[0].mxu0
        %2508 = vmatprep.mubr.f32.mxu0 0.0
        %2509 = vmatmul.mubr.f32.gmra.mrb[0].mxu0 %v2280
        %v2510 = vpop.f32.mrb[0].mxu0
        %v2511 = vadd.f32 0.0, %v2510
        %v2512 = vpop.f32.mrb[0].mxu0
        %2513 = vmatprep.mubr.f32.mxu0 0.0
        %2514 = vmatmul.mubr.f32.gmra.mrb[0].mxu0 %v2283
        %v2515 = vpop.f32.mrb[0].mxu0
        %v2516 = vadd.f32 0.0, %v2515
        %v2517 = vpop.f32.mrb[0].mxu0
        %2518 = vmatprep.mubr.f32.mxu0 0.0
        %2519 = vmatmul.mubr.f32.gmra.mrb[0].mxu0 %v2286
        %v2520 = vpop.f32.mrb[0].mxu0
        %v2521 = vadd.f32 0.0, %v2520
        %v2522 = vpop.f32.mrb[0].mxu0
        %2523 = vmatprep.mubr.f32.mxu0 0.0
        %2524 = vmatmul.mubr.f32.gmra.mrb[0].mxu0 %v2289
        %v2525 = vpop.f32.mrb[0].mxu0
        %v2526 = vadd.f32 0.0, %v2525
        %v2527 = vpop.f32.mrb[0].mxu0
        %2528 = vmatprep.mubr.f32.mxu0 0.0
        %2529 = vmatmul.mubr.f32.gmra.mrb[0].mxu0 %v2292
        %v2530 = vpop.f32.mrb[0].mxu0
        %v2531 = vadd.f32 0.0, %v2530
        %v2532 = vpop.f32.mrb[0].mxu0
        %2533 = vmatprep.mubr.f32.mxu0 0.0
        %2534 = vmatmul.mubr.f32.gmra.mrb[0].mxu0 %v2295
        %v2535 = vpop.f32.mrb[0].mxu0
        %v2536 = vadd.f32 0.0, %v2535
        %v2537 = vpop.f32.mrb[0].mxu0
        %2538 = vmatprep.mubr.f32.mxu0 0.0
        %2539 = vmatmul.mubr.f32.gmra.mrb[0].mxu0 %v2298
        %v2540 = vpop.f32.mrb[0].mxu0
        %v2541 = vadd.f32 0.0, %v2540
        %v2542 = vpop.f32.mrb[0].mxu0
        %2543 = vmatprep.mubr.f32.mxu0 0.0
        %2544 = vmatmul.mubr.f32.gmra.mrb[0].mxu0 %v2301
        %v2545 = vpop.f32.mrb[0].mxu0
        %v2546 = vadd.f32 0.0, %v2545
        %v2547 = vpop.f32.mrb[0].mxu0
        %2548 = vmatprep.mubr.f32.mxu0 0.0
        %2549 = vmatmul.mubr.f32.gmra.mrb[0].mxu0 %v2304
        %v2550 = vpop.f32.mrb[0].mxu0
        %v2551 = vadd.f32 0.0, %v2550
        %v2552 = vpop.f32.mrb[0].mxu0
        %2553 = vmatprep.mubr.f32.mxu0 0.0
        %2554 = vmatmul.mubr.f32.gmra.mrb[0].mxu0 %v2307
        %v2555 = vpop.f32.mrb[0].mxu0
        %v2556 = vadd.f32 0.0, %v2555
        %v2557 = vpop.f32.mrb[0].mxu0
        %2558 = vmatprep.mubr.f32.mxu0 0.0
        %2559 = vmatmul.mubr.f32.gmra.mrb[0].mxu0 %v2310
        %v2560 = vpop.f32.mrb[0].mxu0
        %v2561 = vadd.f32 0.0, %v2560
        %v2562 = vpop.f32.mrb[0].mxu0
        %2563 = vmatprep.mubr.f32.mxu0 0.0
        %2564 = vmatmul.mubr.f32.gmra.mrb[0].mxu0 %v2313
        %v2565 = vpop.f32.mrb[0].mxu0
        %v2566 = vadd.f32 0.0, %v2565
        %v2567 = vpop.f32.mrb[0].mxu0
        %2568 = vmatprep.mubr.f32.mxu0 0.0
        %2569 = vmatmul.mubr.f32.gmra.mrb[0].mxu0 %v2316
        %v2570 = vpop.f32.mrb[0].mxu0
        %v2571 = vadd.f32 0.0, %v2570
        %v2572 = vpop.f32.mrb[0].mxu0
        %2573 = vmatprep.mubr.f32.mxu0 0.0
        %2574 = vmatmul.mubr.f32.gmra.mrb[0].mxu0 %v2319
        %v2575 = vpop.f32.mrb[0].mxu0
        %v2576 = vadd.f32 0.0, %v2575
        %v2577 = vpop.f32.mrb[0].mxu0
        %2578 = vmatprep.mubr.f32.mxu0 0.0
        %2579 = vmatmul.mubr.f32.gmra.mrb[0].mxu0 %v2322
        %v2580 = vpop.f32.mrb[0].mxu0
        %v2581 = vadd.f32 0.0, %v2580
        %v2582 = vpop.f32.mrb[0].mxu0
        %2583 = vdwg.mxu0
        %v2585 = vsel %vm414, %v2120, 0
        %v2588 = vsel %vm414, %v2121, 0
        %v2591 = vsel %vm414, %v2122, 0
        %v2594 = vsel %vm414, %v2123, 0
        %v2597 = vsel %vm414, %v2124, 0
        %v2600 = vsel %vm414, %v2125, 0
        %v2603 = vsel %vm414, %v2126, 0
        %v2606 = vsel %vm414, %v2127, 0
        %v2609 = vsel %vm414, %v2128, 0
        %v2612 = vsel %vm414, %v2129, 0
        %v2615 = vsel %vm414, %v2130, 0
        %v2618 = vsel %vm414, %v2131, 0
        %v2621 = vsel %vm414, %v2132, 0
        %v2624 = vsel %vm414, %v2133, 0
        %v2627 = vsel %vm414, %v2134, 0
        %v2630 = vsel %vm414, %v2135, 0
        %v2633 = vsel %vm414, %v2136, 0
        %v2636 = vsel %vm414, %v2137, 0
        %v2639 = vsel %vm414, %v2138, 0
        %v2642 = vsel %vm414, %v2139, 0
        %v2645 = vsel %vm414, %v2140, 0
        %v2648 = vsel %vm414, %v2141, 0
        %v2651 = vsel %vm414, %v2142, 0
        %v2654 = vsel %vm414, %v2143, 0
        %v2657 = vsel %vm414, %v2144, 0
        %v2660 = vsel %vm414, %v2145, 0
        %v2663 = vsel %vm414, %v2146, 0
        %v2666 = vsel %vm414, %v2147, 0
        %v2669 = vsel %vm414, %v2148, 0
        %v2672 = vsel %vm414, %v2149, 0
        %v2675 = vsel %vm414, %v2150, 0
        %v2678 = vsel %vm414, %v2151, 0
        %v2681 = vsel %vm414, %v2152, 0
        %v2684 = vsel %vm414, %v2153, 0
        %v2687 = vsel %vm414, %v2154, 0
        %v2690 = vsel %vm414, %v2155, 0
        %v2693 = vsel %vm414, %v2156, 0
        %v2696 = vsel %vm414, %v2157, 0
        %v2699 = vsel %vm414, %v2158, 0
        %2701 = vmatprep.subr.mxu0 0.0
        %2702 = vmatpush1.msra.mxu0 %v2159
        %2703 = vmatprep.subr.mxu0 0.0
        %2704 = vmatpush1.msra.mxu0 %v2160
        %2705 = vmatprep.subr.mxu0 0.0
        %2706 = vmatpush1.msra.mxu0 %v2161
        %2707 = vmatprep.subr.mxu0 0.0
        %2708 = vmatpush1.msra.mxu0 %v2162
        %2709 = vmatprep.subr.mxu0 0.0
        %2710 = vmatpush1.msra.mxu0 0.0
        %2711 = vmatprep.subr.mxu0 0.0
        %2712 = vmatpush1.msra.mxu0 0.0
        %2713 = vmatprep.subr.mxu0 0.0
        %2714 = vmatpush1.msra.mxu0 0.0
        %2715 = vmatprep.subr.mxu0 0.0
        %2716 = vmatpush1.msra.mxu0 0.0
        %2717 = vmatprep.subr.mxu0 0.0
        %2718 = vmatpush1.msra.mxu0 0.0
        %2719 = vmatprep.subr.mxu0 0.0
        %2720 = vmatpush1.msra.mxu0 0.0
        %2721 = vmatprep.subr.mxu0 0.0
        %2722 = vmatpush1.msra.mxu0 0.0
        %2723 = vmatprep.subr.mxu0 0.0
        %2724 = vmatpush1.msra.mxu0 0.0
        %2725 = vmatprep.subr.mxu0 0.0
        %2726 = vmatpush1.msra.mxu0 0.0
        %2727 = vmatprep.subr.mxu0 0.0
        %2728 = vmatpush1.msra.mxu0 0.0
        %2729 = vmatprep.subr.mxu0 0.0
        %2730 = vmatpush1.msra.mxu0 0.0
        %2731 = vmatprep.subr.mxu0 0.0
        %2732 = vmatpush1.msra.mxu0 0.0
        %2733 = vmatprep.subr.mxu0 0.0
        %2734 = vmatpush1.msra.mxu0 0.0
        %2735 = vmatprep.subr.mxu0 0.0
        %2736 = vmatpush1.msra.mxu0 0.0
        %2737 = vmatprep.subr.mxu0 0.0
        %2738 = vmatpush1.msra.mxu0 0.0
        %2739 = vmatprep.subr.mxu0 0.0
        %2740 = vmatpush1.msra.mxu0 0.0
        %2741 = vmatprep.subr.mxu0 0.0
        %2742 = vmatpush1.msra.mxu0 0.0
        %2743 = vmatprep.subr.mxu0 0.0
        %2744 = vmatpush1.msra.mxu0 0.0
        %2745 = vmatprep.subr.mxu0 0.0
        %2746 = vmatpush1.msra.mxu0 0.0
        %2747 = vmatprep.subr.mxu0 0.0
        %2748 = vmatpush1.msra.mxu0 0.0
        %2749 = vmatprep.subr.mxu0 0.0
        %2750 = vmatpush1.msra.mxu0 0.0
        %2751 = vmatprep.subr.mxu0 0.0
        %2752 = vmatpush1.msra.mxu0 0.0
        %2753 = vmatprep.subr.mxu0 0.0
        %2754 = vmatpush1.msra.mxu0 0.0
        %2755 = vmatprep.subr.mxu0 0.0
        %2756 = vmatpush1.msra.mxu0 0.0
        %2757 = vmatprep.subr.mxu0 0.0
        %2758 = vmatpush1.msra.mxu0 0.0
        %2759 = vmatprep.subr.mxu0 0.0
        %2760 = vmatpush1.msra.mxu0 0.0
        %2761 = vmatprep.subr.mxu0 0.0
        %2762 = vmatpush1.msra.mxu0 0.0
        %2763 = vmatprep.subr.mxu0 0.0
        %2764 = vmatpush1.msra.mxu0 0.0
        %2765 = vmatprep.mubr.f32.mxu0 0.0
        %2766 = vmatmul.mubr.f32.gmra.mrb[0].mxu0 %v2585
        %v2767 = vpop.f32.mrb[0].mxu0
        %v2768 = vadd.f32 %v2391, %v2767
        %v2769 = vpop.f32.mrb[0].mxu0
        %2770 = vmatprep.mubr.f32.mxu0 0.0
        %2771 = vmatmul.mubr.f32.gmra.mrb[0].mxu0 %v2588
        %v2772 = vpop.f32.mrb[0].mxu0
        %v2773 = vadd.f32 %v2396, %v2772
        %v2774 = vpop.f32.mrb[0].mxu0
        %2775 = vmatprep.mubr.f32.mxu0 0.0
        %2776 = vmatmul.mubr.f32.gmra.mrb[0].mxu0 %v2591
        %v2777 = vpop.f32.mrb[0].mxu0
        %v2778 = vadd.f32 %v2401, %v2777
        %v2779 = vpop.f32.mrb[0].mxu0
        %2780 = vmatprep.mubr.f32.mxu0 0.0
        %2781 = vmatmul.mubr.f32.gmra.mrb[0].mxu0 %v2594
        %v2782 = vpop.f32.mrb[0].mxu0
        %v2783 = vadd.f32 %v2406, %v2782
        %v2784 = vpop.f32.mrb[0].mxu0
        %2785 = vmatprep.mubr.f32.mxu0 0.0
        %2786 = vmatmul.mubr.f32.gmra.mrb[0].mxu0 %v2597
        %v2787 = vpop.f32.mrb[0].mxu0
        %v2788 = vadd.f32 %v2411, %v2787
        %v2789 = vpop.f32.mrb[0].mxu0
        %2790 = vmatprep.mubr.f32.mxu0 0.0
        %2791 = vmatmul.mubr.f32.gmra.mrb[0].mxu0 %v2600
        %v2792 = vpop.f32.mrb[0].mxu0
        %v2793 = vadd.f32 %v2416, %v2792
        %v2794 = vpop.f32.mrb[0].mxu0
        %2795 = vmatprep.mubr.f32.mxu0 0.0
        %2796 = vmatmul.mubr.f32.gmra.mrb[0].mxu0 %v2603
        %v2797 = vpop.f32.mrb[0].mxu0
        %v2798 = vadd.f32 %v2421, %v2797
        %v2799 = vpop.f32.mrb[0].mxu0
        %2800 = vmatprep.mubr.f32.mxu0 0.0
        %2801 = vmatmul.mubr.f32.gmra.mrb[0].mxu0 %v2606
        %v2802 = vpop.f32.mrb[0].mxu0
        %v2803 = vadd.f32 %v2426, %v2802
        %v2804 = vpop.f32.mrb[0].mxu0
        %2805 = vmatprep.mubr.f32.mxu0 0.0
        %2806 = vmatmul.mubr.f32.gmra.mrb[0].mxu0 %v2609
        %v2807 = vpop.f32.mrb[0].mxu0
        %v2808 = vadd.f32 %v2431, %v2807
        %v2809 = vpop.f32.mrb[0].mxu0
        %2810 = vmatprep.mubr.f32.mxu0 0.0
        %2811 = vmatmul.mubr.f32.gmra.mrb[0].mxu0 %v2612
        %v2812 = vpop.f32.mrb[0].mxu0
        %v2813 = vadd.f32 %v2436, %v2812
        %v2814 = vpop.f32.mrb[0].mxu0
        %2815 = vmatprep.mubr.f32.mxu0 0.0
        %2816 = vmatmul.mubr.f32.gmra.mrb[0].mxu0 %v2615
        %v2817 = vpop.f32.mrb[0].mxu0
        %v2818 = vadd.f32 %v2441, %v2817
        %v2819 = vpop.f32.mrb[0].mxu0
        %2820 = vmatprep.mubr.f32.mxu0 0.0
        %2821 = vmatmul.mubr.f32.gmra.mrb[0].mxu0 %v2618
        %v2822 = vpop.f32.mrb[0].mxu0
        %v2823 = vadd.f32 %v2446, %v2822
        %v2824 = vpop.f32.mrb[0].mxu0
        %2825 = vmatprep.mubr.f32.mxu0 0.0
        %2826 = vmatmul.mubr.f32.gmra.mrb[0].mxu0 %v2621
        %v2827 = vpop.f32.mrb[0].mxu0
        %v2828 = vadd.f32 %v2451, %v2827
        %v2829 = vpop.f32.mrb[0].mxu0
        %2830 = vmatprep.mubr.f32.mxu0 0.0
        %2831 = vmatmul.mubr.f32.gmra.mrb[0].mxu0 %v2624
        %v2832 = vpop.f32.mrb[0].mxu0
        %v2833 = vadd.f32 %v2456, %v2832
        %v2834 = vpop.f32.mrb[0].mxu0
        %2835 = vmatprep.mubr.f32.mxu0 0.0
        %2836 = vmatmul.mubr.f32.gmra.mrb[0].mxu0 %v2627
        %v2837 = vpop.f32.mrb[0].mxu0
        %v2838 = vadd.f32 %v2461, %v2837
        %v2839 = vpop.f32.mrb[0].mxu0
        %2840 = vmatprep.mubr.f32.mxu0 0.0
        %2841 = vmatmul.mubr.f32.gmra.mrb[0].mxu0 %v2630
        %v2842 = vpop.f32.mrb[0].mxu0
        %v2843 = vadd.f32 %v2466, %v2842
        %v2844 = vpop.f32.mrb[0].mxu0
        %2845 = vmatprep.mubr.f32.mxu0 0.0
        %2846 = vmatmul.mubr.f32.gmra.mrb[0].mxu0 %v2633
        %v2847 = vpop.f32.mrb[0].mxu0
        %v2848 = vadd.f32 %v2471, %v2847
        %v2849 = vpop.f32.mrb[0].mxu0
        %2850 = vmatprep.mubr.f32.mxu0 0.0
        %2851 = vmatmul.mubr.f32.gmra.mrb[0].mxu0 %v2636
        %v2852 = vpop.f32.mrb[0].mxu0
        %v2853 = vadd.f32 %v2476, %v2852
        %v2854 = vpop.f32.mrb[0].mxu0
        %2855 = vmatprep.mubr.f32.mxu0 0.0
        %2856 = vmatmul.mubr.f32.gmra.mrb[0].mxu0 %v2639
        %v2857 = vpop.f32.mrb[0].mxu0
        %v2858 = vadd.f32 %v2481, %v2857
        %v2859 = vpop.f32.mrb[0].mxu0
        %2860 = vmatprep.mubr.f32.mxu0 0.0
        %2861 = vmatmul.mubr.f32.gmra.mrb[0].mxu0 %v2642
        %v2862 = vpop.f32.mrb[0].mxu0
        %v2863 = vadd.f32 %v2486, %v2862
        %v2864 = vpop.f32.mrb[0].mxu0
        %2865 = vmatprep.mubr.f32.mxu0 0.0
        %2866 = vmatmul.mubr.f32.gmra.mrb[0].mxu0 %v2645
        %v2867 = vpop.f32.mrb[0].mxu0
        %v2868 = vadd.f32 %v2491, %v2867
        %v2869 = vpop.f32.mrb[0].mxu0
        %2870 = vmatprep.mubr.f32.mxu0 0.0
        %2871 = vmatmul.mubr.f32.gmra.mrb[0].mxu0 %v2648
        %v2872 = vpop.f32.mrb[0].mxu0
        %v2873 = vadd.f32 %v2496, %v2872
        %v2874 = vpop.f32.mrb[0].mxu0
        %2875 = vmatprep.mubr.f32.mxu0 0.0
        %2876 = vmatmul.mubr.f32.gmra.mrb[0].mxu0 %v2651
        %v2877 = vpop.f32.mrb[0].mxu0
        %v2878 = vadd.f32 %v2501, %v2877
        %v2879 = vpop.f32.mrb[0].mxu0
        %2880 = vmatprep.mubr.f32.mxu0 0.0
        %2881 = vmatmul.mubr.f32.gmra.mrb[0].mxu0 %v2654
        %v2882 = vpop.f32.mrb[0].mxu0
        %v2883 = vadd.f32 %v2506, %v2882
        %v2884 = vpop.f32.mrb[0].mxu0
        %2885 = vmatprep.mubr.f32.mxu0 0.0
        %2886 = vmatmul.mubr.f32.gmra.mrb[0].mxu0 %v2657
        %v2887 = vpop.f32.mrb[0].mxu0
        %v2888 = vadd.f32 %v2511, %v2887
        %v2889 = vpop.f32.mrb[0].mxu0
        %2890 = vmatprep.mubr.f32.mxu0 0.0
        %2891 = vmatmul.mubr.f32.gmra.mrb[0].mxu0 %v2660
        %v2892 = vpop.f32.mrb[0].mxu0
        %v2893 = vadd.f32 %v2516, %v2892
        %v2894 = vpop.f32.mrb[0].mxu0
        %2895 = vmatprep.mubr.f32.mxu0 0.0
        %2896 = vmatmul.mubr.f32.gmra.mrb[0].mxu0 %v2663
        %v2897 = vpop.f32.mrb[0].mxu0
        %v2898 = vadd.f32 %v2521, %v2897
        %v2899 = vpop.f32.mrb[0].mxu0
        %2900 = vmatprep.mubr.f32.mxu0 0.0
        %2901 = vmatmul.mubr.f32.gmra.mrb[0].mxu0 %v2666
        %v2902 = vpop.f32.mrb[0].mxu0
        %v2903 = vadd.f32 %v2526, %v2902
        %v2904 = vpop.f32.mrb[0].mxu0
        %2905 = vmatprep.mubr.f32.mxu0 0.0
        %2906 = vmatmul.mubr.f32.gmra.mrb[0].mxu0 %v2669
        %v2907 = vpop.f32.mrb[0].mxu0
        %v2908 = vadd.f32 %v2531, %v2907
        %v2909 = vpop.f32.mrb[0].mxu0
        %2910 = vmatprep.mubr.f32.mxu0 0.0
        %2911 = vmatmul.mubr.f32.gmra.mrb[0].mxu0 %v2672
        %v2912 = vpop.f32.mrb[0].mxu0
        %v2913 = vadd.f32 %v2536, %v2912
        %v2914 = vpop.f32.mrb[0].mxu0
        %2915 = vmatprep.mubr.f32.mxu0 0.0
        %2916 = vmatmul.mubr.f32.gmra.mrb[0].mxu0 %v2675
        %v2917 = vpop.f32.mrb[0].mxu0
        %v2918 = vadd.f32 %v2541, %v2917
        %v2919 = vpop.f32.mrb[0].mxu0
        %2920 = vmatprep.mubr.f32.mxu0 0.0
        %2921 = vmatmul.mubr.f32.gmra.mrb[0].mxu0 %v2678
        %v2922 = vpop.f32.mrb[0].mxu0
        %v2923 = vadd.f32 %v2546, %v2922
        %v2924 = vpop.f32.mrb[0].mxu0
        %2925 = vmatprep.mubr.f32.mxu0 0.0
        %2926 = vmatmul.mubr.f32.gmra.mrb[0].mxu0 %v2681
        %v2927 = vpop.f32.mrb[0].mxu0
        %v2928 = vadd.f32 %v2551, %v2927
        %v2929 = vpop.f32.mrb[0].mxu0
        %2930 = vmatprep.mubr.f32.mxu0 0.0
        %2931 = vmatmul.mubr.f32.gmra.mrb[0].mxu0 %v2684
        %v2932 = vpop.f32.mrb[0].mxu0
        %v2933 = vadd.f32 %v2556, %v2932
        %v2934 = vpop.f32.mrb[0].mxu0
        %2935 = vmatprep.mubr.f32.mxu0 0.0
        %2936 = vmatmul.mubr.f32.gmra.mrb[0].mxu0 %v2687
        %v2937 = vpop.f32.mrb[0].mxu0
        %v2938 = vadd.f32 %v2561, %v2937
        %v2939 = vpop.f32.mrb[0].mxu0
        %2940 = vmatprep.mubr.f32.mxu0 0.0
        %2941 = vmatmul.mubr.f32.gmra.mrb[0].mxu0 %v2690
        %v2942 = vpop.f32.mrb[0].mxu0
        %v2943 = vadd.f32 %v2566, %v2942
        %v2944 = vpop.f32.mrb[0].mxu0
        %2945 = vmatprep.mubr.f32.mxu0 0.0
        %2946 = vmatmul.mubr.f32.gmra.mrb[0].mxu0 %v2693
        %v2947 = vpop.f32.mrb[0].mxu0
        %v2948 = vadd.f32 %v2571, %v2947
        %v2949 = vpop.f32.mrb[0].mxu0
        %2950 = vmatprep.mubr.f32.mxu0 0.0
        %2951 = vmatmul.mubr.f32.gmra.mrb[0].mxu0 %v2696
        %v2952 = vpop.f32.mrb[0].mxu0
        %v2953 = vadd.f32 %v2576, %v2952
        %v2954 = vpop.f32.mrb[0].mxu0
        %2955 = vmatprep.mubr.f32.mxu0 0.0
        %2956 = vmatmul.mubr.f32.gmra.mrb[0].mxu0 %v2699
        %v2957 = vpop.f32.mrb[0].mxu0
        %v2958 = vadd.f32 %v2581, %v2957
        %v2959 = vpop.f32.mrb[0].mxu0
        %2960 = vdwg.mxu0
        %v2961 = vld [vmem:[#allocation2 + $0x4] sm:$0xff]
        %v2962 = vld [vmem:[#allocation2 + $0xc] sm:$0xff]
        %v2963 = vld [vmem:[#allocation2 + $0x14] sm:$0xff]
        %v2964 = vld [vmem:[#allocation2 + $0x1c] sm:$0xff]
        %v2965 = vld [vmem:[#allocation2 + $0x24] sm:$0xff]
        %v2966 = vld [vmem:[#allocation2 + $0x2c] sm:$0xff]
        %v2967 = vld [vmem:[#allocation2 + $0x34] sm:$0xff]
        %v2968 = vld [vmem:[#allocation2 + $0x3c] sm:$0xff]
        %v2969 = vld [vmem:[#allocation2 + $0x44] sm:$0xff]
        %v2970 = vld [vmem:[#allocation2 + $0x4c] sm:$0xff]
        %v2971 = vld [vmem:[#allocation2 + $0x54] sm:$0xff]
        %v2972 = vld [vmem:[#allocation2 + $0x5c] sm:$0xff]
        %v2973 = vld [vmem:[#allocation2 + $0x64] sm:$0xff]
        %v2974 = vld [vmem:[#allocation2 + $0x6c] sm:$0xff]
        %v2975 = vld [vmem:[#allocation2 + $0x74] sm:$0xff]
        %v2976 = vld [vmem:[#allocation2 + $0x7c] sm:$0xff]
        %v2977 = vld [vmem:[#allocation2 + $0x84] sm:$0xff]
        %v2978 = vld [vmem:[#allocation2 + $0x8c] sm:$0xff]
        %v2979 = vld [vmem:[#allocation2 + $0x94] sm:$0xff]
        %v2980 = vld [vmem:[#allocation2 + $0x9c] sm:$0xff]
        %v2981 = vld [vmem:[#allocation2 + $0xa4] sm:$0xff]
        %v2982 = vld [vmem:[#allocation2 + $0xac] sm:$0xff]
        %v2983 = vld [vmem:[#allocation2 + $0xb4] sm:$0xff]
        %v2984 = vld [vmem:[#allocation2 + $0xbc] sm:$0xff]
        %v2985 = vld [vmem:[#allocation2 + $0xc4] sm:$0xff]
        %v2986 = vld [vmem:[#allocation2 + $0xcc] sm:$0xff]
        %v2987 = vld [vmem:[#allocation2 + $0xd4] sm:$0xff]
        %v2988 = vld [vmem:[#allocation2 + $0xdc] sm:$0xff]
        %v2989 = vld [vmem:[#allocation2 + $0xe4] sm:$0xff]
        %v2990 = vld [vmem:[#allocation2 + $0xec] sm:$0xff]
        %v2991 = vld [vmem:[#allocation2 + $0xf4] sm:$0xff]
        %v2992 = vld [vmem:[#allocation2 + $0xfc] sm:$0xff]
        %v2993 = vld [vmem:[#allocation2 + $0x104] sm:$0xff]
        %v2994 = vld [vmem:[#allocation2 + $0x10c] sm:$0xff]
        %v2995 = vld [vmem:[#allocation2 + $0x114] sm:$0xff]
        %v2996 = vld [vmem:[#allocation2 + $0x11c] sm:$0xff]
        %v2997 = vld [vmem:[#allocation2 + $0x124] sm:$0xff]
        %v2998 = vld [vmem:[#allocation2 + $0x12c] sm:$0xff]
        %v2999 = vld [vmem:[#allocation2 + $0x134] sm:$0xff]
        %s3000 = scalar_lea.vmem %s6, 64
        %v3001 = vld [vmem:[%s3000] sm:$0xff]
        %v3002 = vld [vmem:[%s3000 + $0x8] sm:$0xff]
        %v3003 = vld [vmem:[%s3000 + $0x10] sm:$0xff]
        %v3004 = vld [vmem:[%s3000 + $0x18] sm:$0xff]
        %v3006 = vsel %vm414, %v2961, 0
        %v3009 = vsel %vm414, %v2962, 0
        %v3012 = vsel %vm414, %v2963, 0
        %v3015 = vsel %vm414, %v2964, 0
        %v3018 = vsel %vm414, %v2965, 0
        %v3021 = vsel %vm414, %v2966, 0
        %v3024 = vsel %vm414, %v2967, 0
        %v3027 = vsel %vm414, %v2968, 0
        %v3030 = vsel %vm414, %v2969, 0
        %v3033 = vsel %vm414, %v2970, 0
        %v3036 = vsel %vm414, %v2971, 0
        %v3039 = vsel %vm414, %v2972, 0
        %v3042 = vsel %vm414, %v2973, 0
        %v3045 = vsel %vm414, %v2974, 0
        %v3048 = vsel %vm414, %v2975, 0
        %v3051 = vsel %vm414, %v2976, 0
        %v3054 = vsel %vm414, %v2977, 0
        %v3057 = vsel %vm414, %v2978, 0
        %v3060 = vsel %vm414, %v2979, 0
        %v3063 = vsel %vm414, %v2980, 0
        %v3066 = vsel %vm414, %v2981, 0
        %v3069 = vsel %vm414, %v2982, 0
        %v3072 = vsel %vm414, %v2983, 0
        %v3075 = vsel %vm414, %v2984, 0
        %v3078 = vsel %vm414, %v2985, 0
        %v3081 = vsel %vm414, %v2986, 0
        %v3084 = vsel %vm414, %v2987, 0
        %v3087 = vsel %vm414, %v2988, 0
        %v3090 = vsel %vm414, %v2989, 0
        %v3093 = vsel %vm414, %v2990, 0
        %v3096 = vsel %vm414, %v2991, 0
        %v3099 = vsel %vm414, %v2992, 0
        %v3102 = vsel %vm414, %v2993, 0
        %v3105 = vsel %vm414, %v2994, 0
        %v3108 = vsel %vm414, %v2995, 0
        %v3111 = vsel %vm414, %v2996, 0
        %v3114 = vsel %vm414, %v2997, 0
        %v3117 = vsel %vm414, %v2998, 0
        %v3120 = vsel %vm414, %v2999, 0
        %3122 = vmatprep.subr.mxu0 0.0
        %3123 = vmatpush1.msra.mxu0 %v3001
        %3124 = vmatprep.subr.mxu0 0.0
        %3125 = vmatpush1.msra.mxu0 %v3002
        %3126 = vmatprep.subr.mxu0 0.0
        %3127 = vmatpush1.msra.mxu0 %v3003
        %3128 = vmatprep.subr.mxu0 0.0
        %3129 = vmatpush1.msra.mxu0 %v3004
        %3130 = vmatprep.subr.mxu0 0.0
        %3131 = vmatpush1.msra.mxu0 0.0
        %3132 = vmatprep.subr.mxu0 0.0
        %3133 = vmatpush1.msra.mxu0 0.0
        %3134 = vmatprep.subr.mxu0 0.0
        %3135 = vmatpush1.msra.mxu0 0.0
        %3136 = vmatprep.subr.mxu0 0.0
        %3137 = vmatpush1.msra.mxu0 0.0
        %3138 = vmatprep.subr.mxu0 0.0
        %3139 = vmatpush1.msra.mxu0 0.0
        %3140 = vmatprep.subr.mxu0 0.0
        %3141 = vmatpush1.msra.mxu0 0.0
        %3142 = vmatprep.subr.mxu0 0.0
        %3143 = vmatpush1.msra.mxu0 0.0
        %3144 = vmatprep.subr.mxu0 0.0
        %3145 = vmatpush1.msra.mxu0 0.0
        %3146 = vmatprep.subr.mxu0 0.0
        %3147 = vmatpush1.msra.mxu0 0.0
        %3148 = vmatprep.subr.mxu0 0.0
        %3149 = vmatpush1.msra.mxu0 0.0
        %3150 = vmatprep.subr.mxu0 0.0
        %3151 = vmatpush1.msra.mxu0 0.0
        %3152 = vmatprep.subr.mxu0 0.0
        %3153 = vmatpush1.msra.mxu0 0.0
        %3154 = vmatprep.subr.mxu0 0.0
        %3155 = vmatpush1.msra.mxu0 0.0
        %3156 = vmatprep.subr.mxu0 0.0
        %3157 = vmatpush1.msra.mxu0 0.0
        %3158 = vmatprep.subr.mxu0 0.0
        %3159 = vmatpush1.msra.mxu0 0.0
        %3160 = vmatprep.subr.mxu0 0.0
        %3161 = vmatpush1.msra.mxu0 0.0
        %3162 = vmatprep.subr.mxu0 0.0
        %3163 = vmatpush1.msra.mxu0 0.0
        %3164 = vmatprep.subr.mxu0 0.0
        %3165 = vmatpush1.msra.mxu0 0.0
        %3166 = vmatprep.subr.mxu0 0.0
        %3167 = vmatpush1.msra.mxu0 0.0
        %3168 = vmatprep.subr.mxu0 0.0
        %3169 = vmatpush1.msra.mxu0 0.0
        %3170 = vmatprep.subr.mxu0 0.0
        %3171 = vmatpush1.msra.mxu0 0.0
        %3172 = vmatprep.subr.mxu0 0.0
        %3173 = vmatpush1.msra.mxu0 0.0
        %3174 = vmatprep.subr.mxu0 0.0
        %3175 = vmatpush1.msra.mxu0 0.0
        %3176 = vmatprep.subr.mxu0 0.0
        %3177 = vmatpush1.msra.mxu0 0.0
        %3178 = vmatprep.subr.mxu0 0.0
        %3179 = vmatpush1.msra.mxu0 0.0
        %3180 = vmatprep.subr.mxu0 0.0
        %3181 = vmatpush1.msra.mxu0 0.0
        %3182 = vmatprep.subr.mxu0 0.0
        %3183 = vmatpush1.msra.mxu0 0.0
        %3184 = vmatprep.subr.mxu0 0.0
        %3185 = vmatpush1.msra.mxu0 0.0
        %3186 = vmatprep.mubr.f32.mxu0 0.0
        %3187 = vmatmul.mubr.f32.gmra.mrb[0].mxu0 %v3006
        %v3188 = vpop.f32.mrb[0].mxu0
        %v3189 = vadd.f32 0.0, %v3188
        %v3190 = vpop.f32.mrb[0].mxu0
        %3191 = vmatprep.mubr.f32.mxu0 0.0
        %3192 = vmatmul.mubr.f32.gmra.mrb[0].mxu0 %v3009
        %v3193 = vpop.f32.mrb[0].mxu0
        %v3194 = vadd.f32 0.0, %v3193
        %v3195 = vpop.f32.mrb[0].mxu0
        %3196 = vmatprep.mubr.f32.mxu0 0.0
        %3197 = vmatmul.mubr.f32.gmra.mrb[0].mxu0 %v3012
        %v3198 = vpop.f32.mrb[0].mxu0
        %v3199 = vadd.f32 0.0, %v3198
        %v3200 = vpop.f32.mrb[0].mxu0
        %3201 = vmatprep.mubr.f32.mxu0 0.0
        %3202 = vmatmul.mubr.f32.gmra.mrb[0].mxu0 %v3015
        %v3203 = vpop.f32.mrb[0].mxu0
        %v3204 = vadd.f32 0.0, %v3203
        %v3205 = vpop.f32.mrb[0].mxu0
        %3206 = vmatprep.mubr.f32.mxu0 0.0
        %3207 = vmatmul.mubr.f32.gmra.mrb[0].mxu0 %v3018
        %v3208 = vpop.f32.mrb[0].mxu0
        %v3209 = vadd.f32 0.0, %v3208
        %v3210 = vpop.f32.mrb[0].mxu0
        %3211 = vmatprep.mubr.f32.mxu0 0.0
        %3212 = vmatmul.mubr.f32.gmra.mrb[0].mxu0 %v3021
        %v3213 = vpop.f32.mrb[0].mxu0
        %v3214 = vadd.f32 0.0, %v3213
        %v3215 = vpop.f32.mrb[0].mxu0
        %3216 = vmatprep.mubr.f32.mxu0 0.0
        %3217 = vmatmul.mubr.f32.gmra.mrb[0].mxu0 %v3024
        %v3218 = vpop.f32.mrb[0].mxu0
        %v3219 = vadd.f32 0.0, %v3218
        %v3220 = vpop.f32.mrb[0].mxu0
        %3221 = vmatprep.mubr.f32.mxu0 0.0
        %3222 = vmatmul.mubr.f32.gmra.mrb[0].mxu0 %v3027
        %v3223 = vpop.f32.mrb[0].mxu0
        %v3224 = vadd.f32 0.0, %v3223
        %v3225 = vpop.f32.mrb[0].mxu0
        %3226 = vmatprep.mubr.f32.mxu0 0.0
        %3227 = vmatmul.mubr.f32.gmra.mrb[0].mxu0 %v3030
        %v3228 = vpop.f32.mrb[0].mxu0
        %v3229 = vadd.f32 0.0, %v3228
        %v3230 = vpop.f32.mrb[0].mxu0
        %3231 = vmatprep.mubr.f32.mxu0 0.0
        %3232 = vmatmul.mubr.f32.gmra.mrb[0].mxu0 %v3033
        %v3233 = vpop.f32.mrb[0].mxu0
        %v3234 = vadd.f32 0.0, %v3233
        %v3235 = vpop.f32.mrb[0].mxu0
        %3236 = vmatprep.mubr.f32.mxu0 0.0
        %3237 = vmatmul.mubr.f32.gmra.mrb[0].mxu0 %v3036
        %v3238 = vpop.f32.mrb[0].mxu0
        %v3239 = vadd.f32 0.0, %v3238
        %v3240 = vpop.f32.mrb[0].mxu0
        %3241 = vmatprep.mubr.f32.mxu0 0.0
        %3242 = vmatmul.mubr.f32.gmra.mrb[0].mxu0 %v3039
        %v3243 = vpop.f32.mrb[0].mxu0
        %v3244 = vadd.f32 0.0, %v3243
        %v3245 = vpop.f32.mrb[0].mxu0
        %3246 = vmatprep.mubr.f32.mxu0 0.0
        %3247 = vmatmul.mubr.f32.gmra.mrb[0].mxu0 %v3042
        %v3248 = vpop.f32.mrb[0].mxu0
        %v3249 = vadd.f32 0.0, %v3248
        %v3250 = vpop.f32.mrb[0].mxu0
        %3251 = vmatprep.mubr.f32.mxu0 0.0
        %3252 = vmatmul.mubr.f32.gmra.mrb[0].mxu0 %v3045
        %v3253 = vpop.f32.mrb[0].mxu0
        %v3254 = vadd.f32 0.0, %v3253
        %v3255 = vpop.f32.mrb[0].mxu0
        %3256 = vmatprep.mubr.f32.mxu0 0.0
        %3257 = vmatmul.mubr.f32.gmra.mrb[0].mxu0 %v3048
        %v3258 = vpop.f32.mrb[0].mxu0
        %v3259 = vadd.f32 0.0, %v3258
        %v3260 = vpop.f32.mrb[0].mxu0
        %3261 = vmatprep.mubr.f32.mxu0 0.0
        %3262 = vmatmul.mubr.f32.gmra.mrb[0].mxu0 %v3051
        %v3263 = vpop.f32.mrb[0].mxu0
        %v3264 = vadd.f32 0.0, %v3263
        %v3265 = vpop.f32.mrb[0].mxu0
        %3266 = vmatprep.mubr.f32.mxu0 0.0
        %3267 = vmatmul.mubr.f32.gmra.mrb[0].mxu0 %v3054
        %v3268 = vpop.f32.mrb[0].mxu0
        %v3269 = vadd.f32 0.0, %v3268
        %v3270 = vpop.f32.mrb[0].mxu0
        %3271 = vmatprep.mubr.f32.mxu0 0.0
        %3272 = vmatmul.mubr.f32.gmra.mrb[0].mxu0 %v3057
        %v3273 = vpop.f32.mrb[0].mxu0
        %v3274 = vadd.f32 0.0, %v3273
        %v3275 = vpop.f32.mrb[0].mxu0
        %3276 = vmatprep.mubr.f32.mxu0 0.0
        %3277 = vmatmul.mubr.f32.gmra.mrb[0].mxu0 %v3060
        %v3278 = vpop.f32.mrb[0].mxu0
        %v3279 = vadd.f32 0.0, %v3278
        %v3280 = vpop.f32.mrb[0].mxu0
        %3281 = vmatprep.mubr.f32.mxu0 0.0
        %3282 = vmatmul.mubr.f32.gmra.mrb[0].mxu0 %v3063
        %v3283 = vpop.f32.mrb[0].mxu0
        %v3284 = vadd.f32 0.0, %v3283
        %v3285 = vpop.f32.mrb[0].mxu0
        %3286 = vmatprep.mubr.f32.mxu0 0.0
        %3287 = vmatmul.mubr.f32.gmra.mrb[0].mxu0 %v3066
        %v3288 = vpop.f32.mrb[0].mxu0
        %v3289 = vadd.f32 0.0, %v3288
        %v3290 = vpop.f32.mrb[0].mxu0
        %3291 = vmatprep.mubr.f32.mxu0 0.0
        %3292 = vmatmul.mubr.f32.gmra.mrb[0].mxu0 %v3069
        %v3293 = vpop.f32.mrb[0].mxu0
        %v3294 = vadd.f32 0.0, %v3293
        %v3295 = vpop.f32.mrb[0].mxu0
        %3296 = vmatprep.mubr.f32.mxu0 0.0
        %3297 = vmatmul.mubr.f32.gmra.mrb[0].mxu0 %v3072
        %v3298 = vpop.f32.mrb[0].mxu0
        %v3299 = vadd.f32 0.0, %v3298
        %v3300 = vpop.f32.mrb[0].mxu0
        %3301 = vmatprep.mubr.f32.mxu0 0.0
        %3302 = vmatmul.mubr.f32.gmra.mrb[0].mxu0 %v3075
        %v3303 = vpop.f32.mrb[0].mxu0
        %v3304 = vadd.f32 0.0, %v3303
        %v3305 = vpop.f32.mrb[0].mxu0
        %3306 = vmatprep.mubr.f32.mxu0 0.0
        %3307 = vmatmul.mubr.f32.gmra.mrb[0].mxu0 %v3078
        %v3308 = vpop.f32.mrb[0].mxu0
        %v3309 = vadd.f32 0.0, %v3308
        %v3310 = vpop.f32.mrb[0].mxu0
        %3311 = vmatprep.mubr.f32.mxu0 0.0
        %3312 = vmatmul.mubr.f32.gmra.mrb[0].mxu0 %v3081
        %v3313 = vpop.f32.mrb[0].mxu0
        %v3314 = vadd.f32 0.0, %v3313
        %v3315 = vpop.f32.mrb[0].mxu0
        %3316 = vmatprep.mubr.f32.mxu0 0.0
        %3317 = vmatmul.mubr.f32.gmra.mrb[0].mxu0 %v3084
        %v3318 = vpop.f32.mrb[0].mxu0
        %v3319 = vadd.f32 0.0, %v3318
        %v3320 = vpop.f32.mrb[0].mxu0
        %3321 = vmatprep.mubr.f32.mxu0 0.0
        %3322 = vmatmul.mubr.f32.gmra.mrb[0].mxu0 %v3087
        %v3323 = vpop.f32.mrb[0].mxu0
        %v3324 = vadd.f32 0.0, %v3323
        %v3325 = vpop.f32.mrb[0].mxu0
        %3326 = vmatprep.mubr.f32.mxu0 0.0
        %3327 = vmatmul.mubr.f32.gmra.mrb[0].mxu0 %v3090
        %v3328 = vpop.f32.mrb[0].mxu0
        %v3329 = vadd.f32 0.0, %v3328
        %v3330 = vpop.f32.mrb[0].mxu0
        %3331 = vmatprep.mubr.f32.mxu0 0.0
        %3332 = vmatmul.mubr.f32.gmra.mrb[0].mxu0 %v3093
        %v3333 = vpop.f32.mrb[0].mxu0
        %v3334 = vadd.f32 0.0, %v3333
        %v3335 = vpop.f32.mrb[0].mxu0
        %3336 = vmatprep.mubr.f32.mxu0 0.0
        %3337 = vmatmul.mubr.f32.gmra.mrb[0].mxu0 %v3096
        %v3338 = vpop.f32.mrb[0].mxu0
        %v3339 = vadd.f32 0.0, %v3338
        %v3340 = vpop.f32.mrb[0].mxu0
        %3341 = vmatprep.mubr.f32.mxu0 0.0
        %3342 = vmatmul.mubr.f32.gmra.mrb[0].mxu0 %v3099
        %v3343 = vpop.f32.mrb[0].mxu0
        %v3344 = vadd.f32 0.0, %v3343
        %v3345 = vpop.f32.mrb[0].mxu0
        %3346 = vmatprep.mubr.f32.mxu0 0.0
        %3347 = vmatmul.mubr.f32.gmra.mrb[0].mxu0 %v3102
        %v3348 = vpop.f32.mrb[0].mxu0
        %v3349 = vadd.f32 0.0, %v3348
        %v3350 = vpop.f32.mrb[0].mxu0
        %3351 = vmatprep.mubr.f32.mxu0 0.0
        %3352 = vmatmul.mubr.f32.gmra.mrb[0].mxu0 %v3105
        %v3353 = vpop.f32.mrb[0].mxu0
        %v3354 = vadd.f32 0.0, %v3353
        %v3355 = vpop.f32.mrb[0].mxu0
        %3356 = vmatprep.mubr.f32.mxu0 0.0
        %3357 = vmatmul.mubr.f32.gmra.mrb[0].mxu0 %v3108
        %v3358 = vpop.f32.mrb[0].mxu0
        %v3359 = vadd.f32 0.0, %v3358
        %v3360 = vpop.f32.mrb[0].mxu0
        %3361 = vmatprep.mubr.f32.mxu0 0.0
        %3362 = vmatmul.mubr.f32.gmra.mrb[0].mxu0 %v3111
        %v3363 = vpop.f32.mrb[0].mxu0
        %v3364 = vadd.f32 0.0, %v3363
        %v3365 = vpop.f32.mrb[0].mxu0
        %3366 = vmatprep.mubr.f32.mxu0 0.0
        %3367 = vmatmul.mubr.f32.gmra.mrb[0].mxu0 %v3114
        %v3368 = vpop.f32.mrb[0].mxu0
        %v3369 = vadd.f32 0.0, %v3368
        %v3370 = vpop.f32.mrb[0].mxu0
        %3371 = vmatprep.mubr.f32.mxu0 0.0
        %3372 = vmatmul.mubr.f32.gmra.mrb[0].mxu0 %v3117
        %v3373 = vpop.f32.mrb[0].mxu0
        %v3374 = vadd.f32 0.0, %v3373
        %v3375 = vpop.f32.mrb[0].mxu0
        %3376 = vmatprep.mubr.f32.mxu0 0.0
        %3377 = vmatmul.mubr.f32.gmra.mrb[0].mxu0 %v3120
        %v3378 = vpop.f32.mrb[0].mxu0
        %v3379 = vadd.f32 0.0, %v3378
        %v3380 = vpop.f32.mrb[0].mxu0
        %3381 = vdwg.mxu0
        %v3382 = vadd.f32 %v2768, %v3189
        %v3383 = vadd.f32 %v2773, %v3194
        %v3384 = vadd.f32 %v2778, %v3199
        %v3385 = vadd.f32 %v2783, %v3204
        %v3386 = vadd.f32 %v2788, %v3209
        %v3387 = vadd.f32 %v2793, %v3214
        %v3388 = vadd.f32 %v2798, %v3219
        %v3389 = vadd.f32 %v2803, %v3224
        %v3390 = vadd.f32 %v2808, %v3229
        %v3391 = vadd.f32 %v2813, %v3234
        %v3392 = vadd.f32 %v2818, %v3239
        %v3393 = vadd.f32 %v2823, %v3244
        %v3394 = vadd.f32 %v2828, %v3249
        %v3395 = vadd.f32 %v2833, %v3254
        %v3396 = vadd.f32 %v2838, %v3259
        %v3397 = vadd.f32 %v2843, %v3264
        %v3398 = vadd.f32 %v2848, %v3269
        %v3399 = vadd.f32 %v2853, %v3274
        %v3400 = vadd.f32 %v2858, %v3279
        %v3401 = vadd.f32 %v2863, %v3284
        %v3402 = vadd.f32 %v2868, %v3289
        %v3403 = vadd.f32 %v2873, %v3294
        %v3404 = vadd.f32 %v2878, %v3299
        %v3405 = vadd.f32 %v2883, %v3304
        %v3406 = vadd.f32 %v2888, %v3309
        %v3407 = vadd.f32 %v2893, %v3314
        %v3408 = vadd.f32 %v2898, %v3319
        %v3409 = vadd.f32 %v2903, %v3324
        %v3410 = vadd.f32 %v2908, %v3329
        %v3411 = vadd.f32 %v2913, %v3334
        %v3412 = vadd.f32 %v2918, %v3339
        %v3413 = vadd.f32 %v2923, %v3344
        %v3414 = vadd.f32 %v2928, %v3349
        %v3415 = vadd.f32 %v2933, %v3354
        %v3416 = vadd.f32 %v2938, %v3359
        %v3417 = vadd.f32 %v2943, %v3364
        %v3418 = vadd.f32 %v2948, %v3369
        %v3419 = vadd.f32 %v2953, %v3374
        %v3420 = vadd.f32 %v2958, %v3379
        %v3421 = vld [vmem:[%s7] sm:$0x1]
        %v3423 = vlaneseq
        %v3424 = vshrl.u32 %v3423, 7
        %v3425 = vsub.s32 0, %v3424
        %v3426 = vrot.slane %v3421, %v3425
        %v3428 = vadd.f32 %v3382, %v3426
        %v3429 = vadd.f32 %v3383, %v3426
        %v3430 = vadd.f32 %v3384, %v3426
        %v3431 = vadd.f32 %v3385, %v3426
        %v3432 = vadd.f32 %v3386, %v3426
        %v3433 = vadd.f32 %v3387, %v3426
        %v3434 = vadd.f32 %v3388, %v3426
        %v3435 = vadd.f32 %v3389, %v3426
        %v3436 = vadd.f32 %v3390, %v3426
        %v3437 = vadd.f32 %v3391, %v3426
        %v3438 = vadd.f32 %v3392, %v3426
        %v3439 = vadd.f32 %v3393, %v3426
        %v3440 = vadd.f32 %v3394, %v3426
        %v3441 = vadd.f32 %v3395, %v3426
        %v3442 = vadd.f32 %v3396, %v3426
        %v3443 = vadd.f32 %v3397, %v3426
        %v3444 = vadd.f32 %v3398, %v3426
        %v3445 = vadd.f32 %v3399, %v3426
        %v3446 = vadd.f32 %v3400, %v3426
        %v3447 = vadd.f32 %v3401, %v3426
        %v3448 = vadd.f32 %v3402, %v3426
        %v3449 = vadd.f32 %v3403, %v3426
        %v3450 = vadd.f32 %v3404, %v3426
        %v3451 = vadd.f32 %v3405, %v3426
        %v3452 = vadd.f32 %v3406, %v3426
        %v3453 = vadd.f32 %v3407, %v3426
        %v3454 = vadd.f32 %v3408, %v3426
        %v3455 = vadd.f32 %v3409, %v3426
        %v3456 = vadd.f32 %v3410, %v3426
        %v3457 = vadd.f32 %v3411, %v3426
        %v3458 = vadd.f32 %v3412, %v3426
        %v3459 = vadd.f32 %v3413, %v3426
        %v3460 = vadd.f32 %v3414, %v3426
        %v3461 = vadd.f32 %v3415, %v3426
        %v3462 = vadd.f32 %v3416, %v3426
        %v3463 = vadd.f32 %v3417, %v3426
        %v3464 = vadd.f32 %v3418, %v3426
        %v3465 = vadd.f32 %v3419, %v3426
        %v3466 = vadd.f32 %v3420, %v3426
        %v3467 = vmax.f32 %v3428, 0.0
        %v3468 = vmax.f32 %v3429, 0.0
        %v3469 = vmax.f32 %v3430, 0.0
        %v3470 = vmax.f32 %v3431, 0.0
        %v3471 = vmax.f32 %v3432, 0.0
        %v3472 = vmax.f32 %v3433, 0.0
        %v3473 = vmax.f32 %v3434, 0.0
        %v3474 = vmax.f32 %v3435, 0.0
        %v3475 = vmax.f32 %v3436, 0.0
        %v3476 = vmax.f32 %v3437, 0.0
        %v3477 = vmax.f32 %v3438, 0.0
        %v3478 = vmax.f32 %v3439, 0.0
        %v3479 = vmax.f32 %v3440, 0.0
        %v3480 = vmax.f32 %v3441, 0.0
        %v3481 = vmax.f32 %v3442, 0.0
        %v3482 = vmax.f32 %v3443, 0.0
        %v3483 = vmax.f32 %v3444, 0.0
        %v3484 = vmax.f32 %v3445, 0.0
        %v3485 = vmax.f32 %v3446, 0.0
        %v3486 = vmax.f32 %v3447, 0.0
        %v3487 = vmax.f32 %v3448, 0.0
        %v3488 = vmax.f32 %v3449, 0.0
        %v3489 = vmax.f32 %v3450, 0.0
        %v3490 = vmax.f32 %v3451, 0.0
        %v3491 = vmax.f32 %v3452, 0.0
        %v3492 = vmax.f32 %v3453, 0.0
        %v3493 = vmax.f32 %v3454, 0.0
        %v3494 = vmax.f32 %v3455, 0.0
        %v3495 = vmax.f32 %v3456, 0.0
        %v3496 = vmax.f32 %v3457, 0.0
        %v3497 = vmax.f32 %v3458, 0.0
        %v3498 = vmax.f32 %v3459, 0.0
        %v3499 = vmax.f32 %v3460, 0.0
        %v3500 = vmax.f32 %v3461, 0.0
        %v3501 = vmax.f32 %v3462, 0.0
        %v3502 = vmax.f32 %v3463, 0.0
        %v3503 = vmax.f32 %v3464, 0.0
        %v3504 = vmax.f32 %v3465, 0.0
        %v3505 = vmax.f32 %v3466, 0.0
        %v3506 = vld [vmem:[%s2] sm:$0xff]
        %v3507 = vld [vmem:[%s2 + $0x8] sm:$0xff]
        %v3508 = vld [vmem:[%s2 + $0x10] sm:$0xff]
        %v3509 = vld [vmem:[%s2 + $0x18] sm:$0xff]
        %v3510 = vld [vmem:[%s2 + $0x20] sm:$0xff]
        %v3511 = vld [vmem:[%s2 + $0x28] sm:$0xff]
        %v3512 = vld [vmem:[%s2 + $0x30] sm:$0xff]
        %v3513 = vld [vmem:[%s2 + $0x38] sm:$0xff]
        %v3514 = vld [vmem:[%s2 + $0x40] sm:$0xff]
        %v3515 = vld [vmem:[%s2 + $0x48] sm:$0xff]
        %v3516 = vld [vmem:[%s2 + $0x50] sm:$0xff]
        %v3517 = vld [vmem:[%s2 + $0x58] sm:$0xff]
        %v3518 = vld [vmem:[%s2 + $0x60] sm:$0xff]
        %v3519 = vld [vmem:[%s2 + $0x68] sm:$0xff]
        %v3520 = vld [vmem:[%s2 + $0x70] sm:$0xff]
        %v3521 = vld [vmem:[%s2 + $0x78] sm:$0xff]
        %v3522 = vld [vmem:[%s2 + $0x80] sm:$0xff]
        %v3523 = vld [vmem:[%s2 + $0x88] sm:$0xff]
        %v3524 = vld [vmem:[%s2 + $0x90] sm:$0xff]
        %v3525 = vld [vmem:[%s2 + $0x98] sm:$0xff]
        %v3526 = vld [vmem:[%s2 + $0xa0] sm:$0xff]
        %v3527 = vld [vmem:[%s2 + $0xa8] sm:$0xff]
        %v3528 = vld [vmem:[%s2 + $0xb0] sm:$0xff]
        %v3529 = vld [vmem:[%s2 + $0xb8] sm:$0xff]
        %v3530 = vld [vmem:[%s2 + $0xc0] sm:$0xff]
        %v3531 = vld [vmem:[%s2 + $0xc8] sm:$0xff]
        %v3532 = vld [vmem:[%s2 + $0xd0] sm:$0xff]
        %v3533 = vld [vmem:[%s2 + $0xd8] sm:$0xff]
        %v3534 = vld [vmem:[%s2 + $0xe0] sm:$0xff]
        %v3535 = vld [vmem:[%s2 + $0xe8] sm:$0xff]
        %v3536 = vld [vmem:[%s2 + $0xf0] sm:$0xff]
        %v3537 = vld [vmem:[%s2 + $0xf8] sm:$0xff]
        %v3538 = vld [vmem:[%s2 + $0x100] sm:$0xff]
        %v3539 = vld [vmem:[%s2 + $0x108] sm:$0xff]
        %v3540 = vld [vmem:[%s2 + $0x110] sm:$0xff]
        %v3541 = vld [vmem:[%s2 + $0x118] sm:$0xff]
        %v3542 = vld [vmem:[%s2 + $0x120] sm:$0xff]
        %v3543 = vld [vmem:[%s2 + $0x128] sm:$0xff]
        %v3544 = vld [vmem:[%s2 + $0x130] sm:$0xff]
        %3546 = vset.pattern.permute.xlu0 0
        %3547 = vperm.xlu0 %3546, %v3506
        %v3548 = vpop.permute.xlu0 %3547
        %3551 = vset.pattern.permute.xlu0 0
        %3552 = vperm.xlu0 %3551, %v3507
        %v3553 = vpop.permute.xlu0 %3552
        %3556 = vset.pattern.permute.xlu0 0
        %3557 = vperm.xlu0 %3556, %v3508
        %v3558 = vpop.permute.xlu0 %3557
        %3561 = vset.pattern.permute.xlu0 0
        %3562 = vperm.xlu0 %3561, %v3509
        %v3563 = vpop.permute.xlu0 %3562
        %3566 = vset.pattern.permute.xlu0 0
        %3567 = vperm.xlu0 %3566, %v3510
        %v3568 = vpop.permute.xlu0 %3567
        %3571 = vset.pattern.permute.xlu0 0
        %3572 = vperm.xlu0 %3571, %v3511
        %v3573 = vpop.permute.xlu0 %3572
        %3576 = vset.pattern.permute.xlu0 0
        %3577 = vperm.xlu0 %3576, %v3512
        %v3578 = vpop.permute.xlu0 %3577
        %3581 = vset.pattern.permute.xlu0 0
        %3582 = vperm.xlu0 %3581, %v3513
        %v3583 = vpop.permute.xlu0 %3582
        %3586 = vset.pattern.permute.xlu0 0
        %3587 = vperm.xlu0 %3586, %v3514
        %v3588 = vpop.permute.xlu0 %3587
        %3591 = vset.pattern.permute.xlu0 0
        %3592 = vperm.xlu0 %3591, %v3515
        %v3593 = vpop.permute.xlu0 %3592
        %3596 = vset.pattern.permute.xlu0 0
        %3597 = vperm.xlu0 %3596, %v3516
        %v3598 = vpop.permute.xlu0 %3597
        %3601 = vset.pattern.permute.xlu0 0
        %3602 = vperm.xlu0 %3601, %v3517
        %v3603 = vpop.permute.xlu0 %3602
        %3606 = vset.pattern.permute.xlu0 0
        %3607 = vperm.xlu0 %3606, %v3518
        %v3608 = vpop.permute.xlu0 %3607
        %3611 = vset.pattern.permute.xlu0 0
        %3612 = vperm.xlu0 %3611, %v3519
        %v3613 = vpop.permute.xlu0 %3612
        %3616 = vset.pattern.permute.xlu0 0
        %3617 = vperm.xlu0 %3616, %v3520
        %v3618 = vpop.permute.xlu0 %3617
        %3621 = vset.pattern.permute.xlu0 0
        %3622 = vperm.xlu0 %3621, %v3521
        %v3623 = vpop.permute.xlu0 %3622
        %3626 = vset.pattern.permute.xlu0 0
        %3627 = vperm.xlu0 %3626, %v3522
        %v3628 = vpop.permute.xlu0 %3627
        %3631 = vset.pattern.permute.xlu0 0
        %3632 = vperm.xlu0 %3631, %v3523
        %v3633 = vpop.permute.xlu0 %3632
        %3636 = vset.pattern.permute.xlu0 0
        %3637 = vperm.xlu0 %3636, %v3524
        %v3638 = vpop.permute.xlu0 %3637
        %3641 = vset.pattern.permute.xlu0 0
        %3642 = vperm.xlu0 %3641, %v3525
        %v3643 = vpop.permute.xlu0 %3642
        %3646 = vset.pattern.permute.xlu0 0
        %3647 = vperm.xlu0 %3646, %v3526
        %v3648 = vpop.permute.xlu0 %3647
        %3651 = vset.pattern.permute.xlu0 0
        %3652 = vperm.xlu0 %3651, %v3527
        %v3653 = vpop.permute.xlu0 %3652
        %3656 = vset.pattern.permute.xlu0 0
        %3657 = vperm.xlu0 %3656, %v3528
        %v3658 = vpop.permute.xlu0 %3657
        %3661 = vset.pattern.permute.xlu0 0
        %3662 = vperm.xlu0 %3661, %v3529
        %v3663 = vpop.permute.xlu0 %3662
        %3666 = vset.pattern.permute.xlu0 0
        %3667 = vperm.xlu0 %3666, %v3530
        %v3668 = vpop.permute.xlu0 %3667
        %3671 = vset.pattern.permute.xlu0 0
        %3672 = vperm.xlu0 %3671, %v3531
        %v3673 = vpop.permute.xlu0 %3672
        %3676 = vset.pattern.permute.xlu0 0
        %3677 = vperm.xlu0 %3676, %v3532
        %v3678 = vpop.permute.xlu0 %3677
        %3681 = vset.pattern.permute.xlu0 0
        %3682 = vperm.xlu0 %3681, %v3533
        %v3683 = vpop.permute.xlu0 %3682
        %3686 = vset.pattern.permute.xlu0 0
        %3687 = vperm.xlu0 %3686, %v3534
        %v3688 = vpop.permute.xlu0 %3687
        %3691 = vset.pattern.permute.xlu0 0
        %3692 = vperm.xlu0 %3691, %v3535
        %v3693 = vpop.permute.xlu0 %3692
        %3696 = vset.pattern.permute.xlu0 0
        %3697 = vperm.xlu0 %3696, %v3536
        %v3698 = vpop.permute.xlu0 %3697
        %3701 = vset.pattern.permute.xlu0 0
        %3702 = vperm.xlu0 %3701, %v3537
        %v3703 = vpop.permute.xlu0 %3702
        %3706 = vset.pattern.permute.xlu0 0
        %3707 = vperm.xlu0 %3706, %v3538
        %v3708 = vpop.permute.xlu0 %3707
        %3711 = vset.pattern.permute.xlu0 0
        %3712 = vperm.xlu0 %3711, %v3539
        %v3713 = vpop.permute.xlu0 %3712
        %3716 = vset.pattern.permute.xlu0 0
        %3717 = vperm.xlu0 %3716, %v3540
        %v3718 = vpop.permute.xlu0 %3717
        %3721 = vset.pattern.permute.xlu0 0
        %3722 = vperm.xlu0 %3721, %v3541
        %v3723 = vpop.permute.xlu0 %3722
        %3726 = vset.pattern.permute.xlu0 0
        %3727 = vperm.xlu0 %3726, %v3542
        %v3728 = vpop.permute.xlu0 %3727
        %3731 = vset.pattern.permute.xlu0 0
        %3732 = vperm.xlu0 %3731, %v3543
        %v3733 = vpop.permute.xlu0 %3732
        %3736 = vset.pattern.permute.xlu0 0
        %3737 = vperm.xlu0 %3736, %v3544
        %v3738 = vpop.permute.xlu0 %3737
        %v3740 = vmul.f32 %v3467, %v3548
        %v3741 = vmul.f32 %v3468, %v3553
        %v3742 = vmul.f32 %v3469, %v3558
        %v3743 = vmul.f32 %v3470, %v3563
        %v3744 = vmul.f32 %v3471, %v3568
        %v3745 = vmul.f32 %v3472, %v3573
        %v3746 = vmul.f32 %v3473, %v3578
        %v3747 = vmul.f32 %v3474, %v3583
        %v3748 = vmul.f32 %v3475, %v3588
        %v3749 = vmul.f32 %v3476, %v3593
        %v3750 = vmul.f32 %v3477, %v3598
        %v3751 = vmul.f32 %v3478, %v3603
        %v3752 = vmul.f32 %v3479, %v3608
        %v3753 = vmul.f32 %v3480, %v3613
        %v3754 = vmul.f32 %v3481, %v3618
        %v3755 = vmul.f32 %v3482, %v3623
        %v3756 = vmul.f32 %v3483, %v3628
        %v3757 = vmul.f32 %v3484, %v3633
        %v3758 = vmul.f32 %v3485, %v3638
        %v3759 = vmul.f32 %v3486, %v3643
        %v3760 = vmul.f32 %v3487, %v3648
        %v3761 = vmul.f32 %v3488, %v3653
        %v3762 = vmul.f32 %v3489, %v3658
        %v3763 = vmul.f32 %v3490, %v3663
        %v3764 = vmul.f32 %v3491, %v3668
        %v3765 = vmul.f32 %v3492, %v3673
        %v3766 = vmul.f32 %v3493, %v3678
        %v3767 = vmul.f32 %v3494, %v3683
        %v3768 = vmul.f32 %v3495, %v3688
        %v3769 = vmul.f32 %v3496, %v3693
        %v3770 = vmul.f32 %v3497, %v3698
        %v3771 = vmul.f32 %v3498, %v3703
        %v3772 = vmul.f32 %v3499, %v3708
        %v3773 = vmul.f32 %v3500, %v3713
        %v3774 = vmul.f32 %v3501, %v3718
        %v3775 = vmul.f32 %v3502, %v3723
        %v3776 = vmul.f32 %v3503, %v3728
        %v3777 = vmul.f32 %v3504, %v3733
        %v3778 = vmul.f32 %v3505, %v3738
        %3779 = vst.msk [vmem:[#allocation3 + $0x8] sm:$0xff] %vm417, %v3740
        %3780 = vst.msk [vmem:[#allocation3 + $0x10] sm:$0xff] %vm417, %v3741
        %3781 = vst.msk [vmem:[#allocation3 + $0x18] sm:$0xff] %vm417, %v3742
        %3782 = vst.msk [vmem:[#allocation3 + $0x20] sm:$0xff] %vm417, %v3743
        %3783 = vst.msk [vmem:[#allocation3 + $0x28] sm:$0xff] %vm417, %v3744
        %3784 = vst.msk [vmem:[#allocation3 + $0x30] sm:$0xff] %vm417, %v3745
        %3785 = vst.msk [vmem:[#allocation3 + $0x38] sm:$0xff] %vm417, %v3746
        %3786 = vst.msk [vmem:[#allocation3 + $0x40] sm:$0xff] %vm417, %v3747
        %3787 = vst.msk [vmem:[#allocation3 + $0x48] sm:$0xff] %vm417, %v3748
        %3788 = vst.msk [vmem:[#allocation3 + $0x50] sm:$0xff] %vm417, %v3749
        %3789 = vst.msk [vmem:[#allocation3 + $0x58] sm:$0xff] %vm417, %v3750
        %3790 = vst.msk [vmem:[#allocation3 + $0x60] sm:$0xff] %vm417, %v3751
        %3791 = vst.msk [vmem:[#allocation3 + $0x68] sm:$0xff] %vm417, %v3752
        %3792 = vst.msk [vmem:[#allocation3 + $0x70] sm:$0xff] %vm417, %v3753
        %3793 = vst.msk [vmem:[#allocation3 + $0x78] sm:$0xff] %vm417, %v3754
        %3794 = vst.msk [vmem:[#allocation3 + $0x80] sm:$0xff] %vm417, %v3755
        %3795 = vst.msk [vmem:[#allocation3 + $0x88] sm:$0xff] %vm417, %v3756
        %3796 = vst.msk [vmem:[#allocation3 + $0x90] sm:$0xff] %vm417, %v3757
        %3797 = vst.msk [vmem:[#allocation3 + $0x98] sm:$0xff] %vm417, %v3758
        %3798 = vst.msk [vmem:[#allocation3 + $0xa0] sm:$0xff] %vm417, %v3759
        %3799 = vst.msk [vmem:[#allocation3 + $0xa8] sm:$0xff] %vm417, %v3760
        %3800 = vst.msk [vmem:[#allocation3 + $0xb0] sm:$0xff] %vm417, %v3761
        %3801 = vst.msk [vmem:[#allocation3 + $0xb8] sm:$0xff] %vm417, %v3762
        %3802 = vst.msk [vmem:[#allocation3 + $0xc0] sm:$0xff] %vm417, %v3763
        %3803 = vst.msk [vmem:[#allocation3 + $0xc8] sm:$0xff] %vm417, %v3764
        %3804 = vst.msk [vmem:[#allocation3 + $0xd0] sm:$0xff] %vm417, %v3765
        %3805 = vst.msk [vmem:[#allocation3 + $0xd8] sm:$0xff] %vm417, %v3766
        %3806 = vst.msk [vmem:[#allocation3 + $0xe0] sm:$0xff] %vm417, %v3767
        %3807 = vst.msk [vmem:[#allocation3 + $0xe8] sm:$0xff] %vm417, %v3768
        %3808 = vst.msk [vmem:[#allocation3 + $0xf0] sm:$0xff] %vm417, %v3769
        %3809 = vst.msk [vmem:[#allocation3 + $0xf8] sm:$0xff] %vm417, %v3770
        %3810 = vst.msk [vmem:[#allocation3 + $0x100] sm:$0xff] %vm417, %v3771
        %3811 = vst.msk [vmem:[#allocation3 + $0x108] sm:$0xff] %vm417, %v3772
        %3812 = vst.msk [vmem:[#allocation3 + $0x110] sm:$0xff] %vm417, %v3773
        %3813 = vst.msk [vmem:[#allocation3 + $0x118] sm:$0xff] %vm417, %v3774
        %3814 = vst.msk [vmem:[#allocation3 + $0x120] sm:$0xff] %vm417, %v3775
        %3815 = vst.msk [vmem:[#allocation3 + $0x128] sm:$0xff] %vm417, %v3776
        %3816 = vst.msk [vmem:[#allocation3 + $0x130] sm:$0xff] %vm417, %v3777
        %3817 = vst.msk [vmem:[#allocation3 + $0x138] sm:$0xff] %vm417, %v3778
        %v3818 = vld [vmem:[#allocation3] sm:$0xff]
        %v3819 = vld [vmem:[#allocation3 + $0x8] sm:$0xff]
        %v3820 = vld [vmem:[#allocation3 + $0x10] sm:$0xff]
        %v3821 = vld [vmem:[#allocation3 + $0x18] sm:$0xff]
        %v3822 = vld [vmem:[#allocation3 + $0x20] sm:$0xff]
        %v3823 = vld [vmem:[#allocation3 + $0x28] sm:$0xff]
        %v3824 = vld [vmem:[#allocation3 + $0x30] sm:$0xff]
        %v3825 = vld [vmem:[#allocation3 + $0x38] sm:$0xff]
        %v3826 = vld [vmem:[#allocation3 + $0x40] sm:$0xff]
        %v3827 = vld [vmem:[#allocation3 + $0x48] sm:$0xff]
        %v3828 = vld [vmem:[#allocation3 + $0x50] sm:$0xff]
        %v3829 = vld [vmem:[#allocation3 + $0x58] sm:$0xff]
        %v3830 = vld [vmem:[#allocation3 + $0x60] sm:$0xff]
        %v3831 = vld [vmem:[#allocation3 + $0x68] sm:$0xff]
        %v3832 = vld [vmem:[#allocation3 + $0x70] sm:$0xff]
        %v3833 = vld [vmem:[#allocation3 + $0x78] sm:$0xff]
        %v3834 = vld [vmem:[#allocation3 + $0x80] sm:$0xff]
        %v3835 = vld [vmem:[#allocation3 + $0x88] sm:$0xff]
        %v3836 = vld [vmem:[#allocation3 + $0x90] sm:$0xff]
        %v3837 = vld [vmem:[#allocation3 + $0x98] sm:$0xff]
        %v3838 = vld [vmem:[#allocation3 + $0xa0] sm:$0xff]
        %v3839 = vld [vmem:[#allocation3 + $0xa8] sm:$0xff]
        %v3840 = vld [vmem:[#allocation3 + $0xb0] sm:$0xff]
        %v3841 = vld [vmem:[#allocation3 + $0xb8] sm:$0xff]
        %v3842 = vld [vmem:[#allocation3 + $0xc0] sm:$0xff]
        %v3843 = vld [vmem:[#allocation3 + $0xc8] sm:$0xff]
        %v3844 = vld [vmem:[#allocation3 + $0xd0] sm:$0xff]
        %v3845 = vld [vmem:[#allocation3 + $0xd8] sm:$0xff]
        %v3846 = vld [vmem:[#allocation3 + $0xe0] sm:$0xff]
        %v3847 = vld [vmem:[#allocation3 + $0xe8] sm:$0xff]
        %v3848 = vld [vmem:[#allocation3 + $0xf0] sm:$0xff]
        %v3849 = vld [vmem:[#allocation3 + $0xf8] sm:$0xff]
        %v3850 = vld [vmem:[#allocation3 + $0x100] sm:$0xff]
        %v3851 = vld [vmem:[#allocation3 + $0x108] sm:$0xff]
        %v3852 = vld [vmem:[#allocation3 + $0x110] sm:$0xff]
        %v3853 = vld [vmem:[#allocation3 + $0x118] sm:$0xff]
        %v3854 = vld [vmem:[#allocation3 + $0x120] sm:$0xff]
        %v3855 = vld [vmem:[#allocation3 + $0x128] sm:$0xff]
        %v3856 = vld [vmem:[#allocation3 + $0x130] sm:$0xff]
        %v3857 = vld [vmem:[#allocation3 + $0x138] sm:$0xff]
        %v3858 = vld [vmem:[%s8] sm:$0xff]
        %v3859 = vld [vmem:[%s8 + $0x8] sm:$0xff]
        %v3860 = vld [vmem:[%s8 + $0x10] sm:$0xff]
        %v3861 = vld [vmem:[%s8 + $0x18] sm:$0xff]
        %v3862 = vld [vmem:[%s8 + $0x20] sm:$0xff]
        %v3863 = vld [vmem:[%s8 + $0x28] sm:$0xff]
        %v3864 = vld [vmem:[%s8 + $0x30] sm:$0xff]
        %v3865 = vld [vmem:[%s8 + $0x38] sm:$0xff]
        %v3866 = vld [vmem:[#allocation3 + $0x4] sm:$0xff]
        %v3867 = vld [vmem:[#allocation3 + $0xc] sm:$0xff]
        %v3868 = vld [vmem:[#allocation3 + $0x14] sm:$0xff]
        %v3869 = vld [vmem:[#allocation3 + $0x1c] sm:$0xff]
        %v3870 = vld [vmem:[#allocation3 + $0x24] sm:$0xff]
        %v3871 = vld [vmem:[#allocation3 + $0x2c] sm:$0xff]
        %v3872 = vld [vmem:[#allocation3 + $0x34] sm:$0xff]
        %v3873 = vld [vmem:[#allocation3 + $0x3c] sm:$0xff]
        %v3874 = vld [vmem:[#allocation3 + $0x44] sm:$0xff]
        %v3875 = vld [vmem:[#allocation3 + $0x4c] sm:$0xff]
        %v3876 = vld [vmem:[#allocation3 + $0x54] sm:$0xff]
        %v3877 = vld [vmem:[#allocation3 + $0x5c] sm:$0xff]
        %v3878 = vld [vmem:[#allocation3 + $0x64] sm:$0xff]
        %v3879 = vld [vmem:[#allocation3 + $0x6c] sm:$0xff]
        %v3880 = vld [vmem:[#allocation3 + $0x74] sm:$0xff]
        %v3881 = vld [vmem:[#allocation3 + $0x7c] sm:$0xff]
        %v3882 = vld [vmem:[#allocation3 + $0x84] sm:$0xff]
        %v3883 = vld [vmem:[#allocation3 + $0x8c] sm:$0xff]
        %v3884 = vld [vmem:[#allocation3 + $0x94] sm:$0xff]
        %v3885 = vld [vmem:[#allocation3 + $0x9c] sm:$0xff]
        %v3886 = vld [vmem:[#allocation3 + $0xa4] sm:$0xff]
        %v3887 = vld [vmem:[#allocation3 + $0xac] sm:$0xff]
        %v3888 = vld [vmem:[#allocation3 + $0xb4] sm:$0xff]
        %v3889 = vld [vmem:[#allocation3 + $0xbc] sm:$0xff]
        %v3890 = vld [vmem:[#allocation3 + $0xc4] sm:$0xff]
        %v3891 = vld [vmem:[#allocation3 + $0xcc] sm:$0xff]
        %v3892 = vld [vmem:[#allocation3 + $0xd4] sm:$0xff]
        %v3893 = vld [vmem:[#allocation3 + $0xdc] sm:$0xff]
        %v3894 = vld [vmem:[#allocation3 + $0xe4] sm:$0xff]
        %v3895 = vld [vmem:[#allocation3 + $0xec] sm:$0xff]
        %v3896 = vld [vmem:[#allocation3 + $0xf4] sm:$0xff]
        %v3897 = vld [vmem:[#allocation3 + $0xfc] sm:$0xff]
        %v3898 = vld [vmem:[#allocation3 + $0x104] sm:$0xff]
        %v3899 = vld [vmem:[#allocation3 + $0x10c] sm:$0xff]
        %v3900 = vld [vmem:[#allocation3 + $0x114] sm:$0xff]
        %v3901 = vld [vmem:[#allocation3 + $0x11c] sm:$0xff]
        %v3902 = vld [vmem:[#allocation3 + $0x124] sm:$0xff]
        %v3903 = vld [vmem:[#allocation3 + $0x12c] sm:$0xff]
        %v3904 = vld [vmem:[#allocation3 + $0x134] sm:$0xff]
        %v3905 = vld [vmem:[#allocation3 + $0x13c] sm:$0xff]
        %s3906 = scalar_lea.vmem %s8, 64
        %v3907 = vld [vmem:[%s3906] sm:$0xff]
        %v3908 = vld [vmem:[%s3906 + $0x8] sm:$0xff]
        %v3909 = vld [vmem:[%s3906 + $0x10] sm:$0xff]
        %v3910 = vld [vmem:[%s3906 + $0x18] sm:$0xff]
        %v3911 = vld [vmem:[%s3906 + $0x20] sm:$0xff]
        %v3912 = vld [vmem:[%s3906 + $0x28] sm:$0xff]
        %v3913 = vld [vmem:[%s3906 + $0x30] sm:$0xff]
        %v3914 = vld [vmem:[%s3906 + $0x38] sm:$0xff]
        %v3916 = vsel %vm417, %v3866, 0
        %v3919 = vsel %vm417, %v3867, 0
        %v3922 = vsel %vm417, %v3868, 0
        %v3925 = vsel %vm417, %v3869, 0
        %v3928 = vsel %vm417, %v3870, 0
        %v3931 = vsel %vm417, %v3871, 0
        %v3934 = vsel %vm417, %v3872, 0
        %v3937 = vsel %vm417, %v3873, 0
        %v3940 = vsel %vm417, %v3874, 0
        %v3943 = vsel %vm417, %v3875, 0
        %v3946 = vsel %vm417, %v3876, 0
        %v3949 = vsel %vm417, %v3877, 0
        %v3952 = vsel %vm417, %v3878, 0
        %v3955 = vsel %vm417, %v3879, 0
        %v3958 = vsel %vm417, %v3880, 0
        %v3961 = vsel %vm417, %v3881, 0
        %v3964 = vsel %vm417, %v3882, 0
        %v3967 = vsel %vm417, %v3883, 0
        %v3970 = vsel %vm417, %v3884, 0
        %v3973 = vsel %vm417, %v3885, 0
        %v3976 = vsel %vm417, %v3886, 0
        %v3979 = vsel %vm417, %v3887, 0
        %v3982 = vsel %vm417, %v3888, 0
        %v3985 = vsel %vm417, %v3889, 0
        %v3988 = vsel %vm417, %v3890, 0
        %v3991 = vsel %vm417, %v3891, 0
        %v3994 = vsel %vm417, %v3892, 0
        %v3997 = vsel %vm417, %v3893, 0
        %v4000 = vsel %vm417, %v3894, 0
        %v4003 = vsel %vm417, %v3895, 0
        %v4006 = vsel %vm417, %v3896, 0
        %v4009 = vsel %vm417, %v3897, 0
        %v4012 = vsel %vm417, %v3898, 0
        %v4015 = vsel %vm417, %v3899, 0
        %v4018 = vsel %vm417, %v3900, 0
        %v4021 = vsel %vm417, %v3901, 0
        %v4024 = vsel %vm417, %v3902, 0
        %v4027 = vsel %vm417, %v3903, 0
        %v4030 = vsel %vm417, %v3904, 0
        %v4033 = vsel %vm417, %v3905, 0
        %4035 = vmatprep.subr.mxu0 0.0
        %4036 = vmatpush1.msra.mxu0 %v3907
        %4037 = vmatprep.subr.mxu0 0.0
        %4038 = vmatpush1.msra.mxu0 %v3908
        %4039 = vmatprep.subr.mxu0 0.0
        %4040 = vmatpush1.msra.mxu0 %v3909
        %4041 = vmatprep.subr.mxu0 0.0
        %4042 = vmatpush1.msra.mxu0 %v3910
        %4043 = vmatprep.subr.mxu0 0.0
        %4044 = vmatpush1.msra.mxu0 %v3911
        %4045 = vmatprep.subr.mxu0 0.0
        %4046 = vmatpush1.msra.mxu0 %v3912
        %4047 = vmatprep.subr.mxu0 0.0
        %4048 = vmatpush1.msra.mxu0 %v3913
        %4049 = vmatprep.subr.mxu0 0.0
        %4050 = vmatpush1.msra.mxu0 %v3914
        %4051 = vmatprep.subr.mxu0 0.0
        %4052 = vmatpush1.msra.mxu0 0.0
        %4053 = vmatprep.subr.mxu0 0.0
        %4054 = vmatpush1.msra.mxu0 0.0
        %4055 = vmatprep.subr.mxu0 0.0
        %4056 = vmatpush1.msra.mxu0 0.0
        %4057 = vmatprep.subr.mxu0 0.0
        %4058 = vmatpush1.msra.mxu0 0.0
        %4059 = vmatprep.subr.mxu0 0.0
        %4060 = vmatpush1.msra.mxu0 0.0
        %4061 = vmatprep.subr.mxu0 0.0
        %4062 = vmatpush1.msra.mxu0 0.0
        %4063 = vmatprep.subr.mxu0 0.0
        %4064 = vmatpush1.msra.mxu0 0.0
        %4065 = vmatprep.subr.mxu0 0.0
        %4066 = vmatpush1.msra.mxu0 0.0
        %4067 = vmatprep.subr.mxu0 0.0
        %4068 = vmatpush1.msra.mxu0 0.0
        %4069 = vmatprep.subr.mxu0 0.0
        %4070 = vmatpush1.msra.mxu0 0.0
        %4071 = vmatprep.subr.mxu0 0.0
        %4072 = vmatpush1.msra.mxu0 0.0
        %4073 = vmatprep.subr.mxu0 0.0
        %4074 = vmatpush1.msra.mxu0 0.0
        %4075 = vmatprep.subr.mxu0 0.0
        %4076 = vmatpush1.msra.mxu0 0.0
        %4077 = vmatprep.subr.mxu0 0.0
        %4078 = vmatpush1.msra.mxu0 0.0
        %4079 = vmatprep.subr.mxu0 0.0
        %4080 = vmatpush1.msra.mxu0 0.0
        %4081 = vmatprep.subr.mxu0 0.0
        %4082 = vmatpush1.msra.mxu0 0.0
        %4083 = vmatprep.subr.mxu0 0.0
        %4084 = vmatpush1.msra.mxu0 0.0
        %4085 = vmatprep.subr.mxu0 0.0
        %4086 = vmatpush1.msra.mxu0 0.0
        %4087 = vmatprep.subr.mxu0 0.0
        %4088 = vmatpush1.msra.mxu0 0.0
        %4089 = vmatprep.subr.mxu0 0.0
        %4090 = vmatpush1.msra.mxu0 0.0
        %4091 = vmatprep.subr.mxu0 0.0
        %4092 = vmatpush1.msra.mxu0 0.0
        %4093 = vmatprep.subr.mxu0 0.0
        %4094 = vmatpush1.msra.mxu0 0.0
        %4095 = vmatprep.subr.mxu0 0.0
        %4096 = vmatpush1.msra.mxu0 0.0
        %4097 = vmatprep.subr.mxu0 0.0
        %4098 = vmatpush1.msra.mxu0 0.0
        %4099 = vmatprep.mubr.f32.mxu0 0.0
        %4100 = vmatmul.mubr.f32.gmra.mrb[0].mxu0 %v3916
        %v4101 = vpop.f32.mrb[0].mxu0
        %v4102 = vadd.f32 0.0, %v4101
        %v4103 = vpop.f32.mrb[0].mxu0
        %4104 = vmatprep.mubr.f32.mxu0 0.0
        %4105 = vmatmul.mubr.f32.gmra.mrb[0].mxu0 %v3919
        %v4106 = vpop.f32.mrb[0].mxu0
        %v4107 = vadd.f32 0.0, %v4106
        %v4108 = vpop.f32.mrb[0].mxu0
        %4109 = vmatprep.mubr.f32.mxu0 0.0
        %4110 = vmatmul.mubr.f32.gmra.mrb[0].mxu0 %v3922
        %v4111 = vpop.f32.mrb[0].mxu0
        %v4112 = vadd.f32 0.0, %v4111
        %v4113 = vpop.f32.mrb[0].mxu0
        %4114 = vmatprep.mubr.f32.mxu0 0.0
        %4115 = vmatmul.mubr.f32.gmra.mrb[0].mxu0 %v3925
        %v4116 = vpop.f32.mrb[0].mxu0
        %v4117 = vadd.f32 0.0, %v4116
        %v4118 = vpop.f32.mrb[0].mxu0
        %4119 = vmatprep.mubr.f32.mxu0 0.0
        %4120 = vmatmul.mubr.f32.gmra.mrb[0].mxu0 %v3928
        %v4121 = vpop.f32.mrb[0].mxu0
        %v4122 = vadd.f32 0.0, %v4121
        %v4123 = vpop.f32.mrb[0].mxu0
        %4124 = vmatprep.mubr.f32.mxu0 0.0
        %4125 = vmatmul.mubr.f32.gmra.mrb[0].mxu0 %v3931
        %v4126 = vpop.f32.mrb[0].mxu0
        %v4127 = vadd.f32 0.0, %v4126
        %v4128 = vpop.f32.mrb[0].mxu0
        %4129 = vmatprep.mubr.f32.mxu0 0.0
        %4130 = vmatmul.mubr.f32.gmra.mrb[0].mxu0 %v3934
        %v4131 = vpop.f32.mrb[0].mxu0
        %v4132 = vadd.f32 0.0, %v4131
        %v4133 = vpop.f32.mrb[0].mxu0
        %4134 = vmatprep.mubr.f32.mxu0 0.0
        %4135 = vmatmul.mubr.f32.gmra.mrb[0].mxu0 %v3937
        %v4136 = vpop.f32.mrb[0].mxu0
        %v4137 = vadd.f32 0.0, %v4136
        %v4138 = vpop.f32.mrb[0].mxu0
        %4139 = vmatprep.mubr.f32.mxu0 0.0
        %4140 = vmatmul.mubr.f32.gmra.mrb[0].mxu0 %v3940
        %v4141 = vpop.f32.mrb[0].mxu0
        %v4142 = vadd.f32 0.0, %v4141
        %v4143 = vpop.f32.mrb[0].mxu0
        %4144 = vmatprep.mubr.f32.mxu0 0.0
        %4145 = vmatmul.mubr.f32.gmra.mrb[0].mxu0 %v3943
        %v4146 = vpop.f32.mrb[0].mxu0
        %v4147 = vadd.f32 0.0, %v4146
        %v4148 = vpop.f32.mrb[0].mxu0
        %4149 = vmatprep.mubr.f32.mxu0 0.0
        %4150 = vmatmul.mubr.f32.gmra.mrb[0].mxu0 %v3946
        %v4151 = vpop.f32.mrb[0].mxu0
        %v4152 = vadd.f32 0.0, %v4151
        %v4153 = vpop.f32.mrb[0].mxu0
        %4154 = vmatprep.mubr.f32.mxu0 0.0
        %4155 = vmatmul.mubr.f32.gmra.mrb[0].mxu0 %v3949
        %v4156 = vpop.f32.mrb[0].mxu0
        %v4157 = vadd.f32 0.0, %v4156
        %v4158 = vpop.f32.mrb[0].mxu0
        %4159 = vmatprep.mubr.f32.mxu0 0.0
        %4160 = vmatmul.mubr.f32.gmra.mrb[0].mxu0 %v3952
        %v4161 = vpop.f32.mrb[0].mxu0
        %v4162 = vadd.f32 0.0, %v4161
        %v4163 = vpop.f32.mrb[0].mxu0
        %4164 = vmatprep.mubr.f32.mxu0 0.0
        %4165 = vmatmul.mubr.f32.gmra.mrb[0].mxu0 %v3955
        %v4166 = vpop.f32.mrb[0].mxu0
        %v4167 = vadd.f32 0.0, %v4166
        %v4168 = vpop.f32.mrb[0].mxu0
        %4169 = vmatprep.mubr.f32.mxu0 0.0
        %4170 = vmatmul.mubr.f32.gmra.mrb[0].mxu0 %v3958
        %v4171 = vpop.f32.mrb[0].mxu0
        %v4172 = vadd.f32 0.0, %v4171
        %v4173 = vpop.f32.mrb[0].mxu0
        %4174 = vmatprep.mubr.f32.mxu0 0.0
        %4175 = vmatmul.mubr.f32.gmra.mrb[0].mxu0 %v3961
        %v4176 = vpop.f32.mrb[0].mxu0
        %v4177 = vadd.f32 0.0, %v4176
        %v4178 = vpop.f32.mrb[0].mxu0
        %4179 = vmatprep.mubr.f32.mxu0 0.0
        %4180 = vmatmul.mubr.f32.gmra.mrb[0].mxu0 %v3964
        %v4181 = vpop.f32.mrb[0].mxu0
        %v4182 = vadd.f32 0.0, %v4181
        %v4183 = vpop.f32.mrb[0].mxu0
        %4184 = vmatprep.mubr.f32.mxu0 0.0
        %4185 = vmatmul.mubr.f32.gmra.mrb[0].mxu0 %v3967
        %v4186 = vpop.f32.mrb[0].mxu0
        %v4187 = vadd.f32 0.0, %v4186
        %v4188 = vpop.f32.mrb[0].mxu0
        %4189 = vmatprep.mubr.f32.mxu0 0.0
        %4190 = vmatmul.mubr.f32.gmra.mrb[0].mxu0 %v3970
        %v4191 = vpop.f32.mrb[0].mxu0
        %v4192 = vadd.f32 0.0, %v4191
        %v4193 = vpop.f32.mrb[0].mxu0
        %4194 = vmatprep.mubr.f32.mxu0 0.0
        %4195 = vmatmul.mubr.f32.gmra.mrb[0].mxu0 %v3973
        %v4196 = vpop.f32.mrb[0].mxu0
        %v4197 = vadd.f32 0.0, %v4196
        %v4198 = vpop.f32.mrb[0].mxu0
        %4199 = vmatprep.mubr.f32.mxu0 0.0
        %4200 = vmatmul.mubr.f32.gmra.mrb[0].mxu0 %v3976
        %v4201 = vpop.f32.mrb[0].mxu0
        %v4202 = vadd.f32 0.0, %v4201
        %v4203 = vpop.f32.mrb[0].mxu0
        %4204 = vmatprep.mubr.f32.mxu0 0.0
        %4205 = vmatmul.mubr.f32.gmra.mrb[0].mxu0 %v3979
        %v4206 = vpop.f32.mrb[0].mxu0
        %v4207 = vadd.f32 0.0, %v4206
        %v4208 = vpop.f32.mrb[0].mxu0
        %4209 = vmatprep.mubr.f32.mxu0 0.0
        %4210 = vmatmul.mubr.f32.gmra.mrb[0].mxu0 %v3982
        %v4211 = vpop.f32.mrb[0].mxu0
        %v4212 = vadd.f32 0.0, %v4211
        %v4213 = vpop.f32.mrb[0].mxu0
        %4214 = vmatprep.mubr.f32.mxu0 0.0
        %4215 = vmatmul.mubr.f32.gmra.mrb[0].mxu0 %v3985
        %v4216 = vpop.f32.mrb[0].mxu0
        %v4217 = vadd.f32 0.0, %v4216
        %v4218 = vpop.f32.mrb[0].mxu0
        %4219 = vmatprep.mubr.f32.mxu0 0.0
        %4220 = vmatmul.mubr.f32.gmra.mrb[0].mxu0 %v3988
        %v4221 = vpop.f32.mrb[0].mxu0
        %v4222 = vadd.f32 0.0, %v4221
        %v4223 = vpop.f32.mrb[0].mxu0
        %4224 = vmatprep.mubr.f32.mxu0 0.0
        %4225 = vmatmul.mubr.f32.gmra.mrb[0].mxu0 %v3991
        %v4226 = vpop.f32.mrb[0].mxu0
        %v4227 = vadd.f32 0.0, %v4226
        %v4228 = vpop.f32.mrb[0].mxu0
        %4229 = vmatprep.mubr.f32.mxu0 0.0
        %4230 = vmatmul.mubr.f32.gmra.mrb[0].mxu0 %v3994
        %v4231 = vpop.f32.mrb[0].mxu0
        %v4232 = vadd.f32 0.0, %v4231
        %v4233 = vpop.f32.mrb[0].mxu0
        %4234 = vmatprep.mubr.f32.mxu0 0.0
        %4235 = vmatmul.mubr.f32.gmra.mrb[0].mxu0 %v3997
        %v4236 = vpop.f32.mrb[0].mxu0
        %v4237 = vadd.f32 0.0, %v4236
        %v4238 = vpop.f32.mrb[0].mxu0
        %4239 = vmatprep.mubr.f32.mxu0 0.0
        %4240 = vmatmul.mubr.f32.gmra.mrb[0].mxu0 %v4000
        %v4241 = vpop.f32.mrb[0].mxu0
        %v4242 = vadd.f32 0.0, %v4241
        %v4243 = vpop.f32.mrb[0].mxu0
        %4244 = vmatprep.mubr.f32.mxu0 0.0
        %4245 = vmatmul.mubr.f32.gmra.mrb[0].mxu0 %v4003
        %v4246 = vpop.f32.mrb[0].mxu0
        %v4247 = vadd.f32 0.0, %v4246
        %v4248 = vpop.f32.mrb[0].mxu0
        %4249 = vmatprep.mubr.f32.mxu0 0.0
        %4250 = vmatmul.mubr.f32.gmra.mrb[0].mxu0 %v4006
        %v4251 = vpop.f32.mrb[0].mxu0
        %v4252 = vadd.f32 0.0, %v4251
        %v4253 = vpop.f32.mrb[0].mxu0
        %4254 = vmatprep.mubr.f32.mxu0 0.0
        %4255 = vmatmul.mubr.f32.gmra.mrb[0].mxu0 %v4009
        %v4256 = vpop.f32.mrb[0].mxu0
        %v4257 = vadd.f32 0.0, %v4256
        %v4258 = vpop.f32.mrb[0].mxu0
        %4259 = vmatprep.mubr.f32.mxu0 0.0
        %4260 = vmatmul.mubr.f32.gmra.mrb[0].mxu0 %v4012
        %v4261 = vpop.f32.mrb[0].mxu0
        %v4262 = vadd.f32 0.0, %v4261
        %v4263 = vpop.f32.mrb[0].mxu0
        %4264 = vmatprep.mubr.f32.mxu0 0.0
        %4265 = vmatmul.mubr.f32.gmra.mrb[0].mxu0 %v4015
        %v4266 = vpop.f32.mrb[0].mxu0
        %v4267 = vadd.f32 0.0, %v4266
        %v4268 = vpop.f32.mrb[0].mxu0
        %4269 = vmatprep.mubr.f32.mxu0 0.0
        %4270 = vmatmul.mubr.f32.gmra.mrb[0].mxu0 %v4018
        %v4271 = vpop.f32.mrb[0].mxu0
        %v4272 = vadd.f32 0.0, %v4271
        %v4273 = vpop.f32.mrb[0].mxu0
        %4274 = vmatprep.mubr.f32.mxu0 0.0
        %4275 = vmatmul.mubr.f32.gmra.mrb[0].mxu0 %v4021
        %v4276 = vpop.f32.mrb[0].mxu0
        %v4277 = vadd.f32 0.0, %v4276
        %v4278 = vpop.f32.mrb[0].mxu0
        %4279 = vmatprep.mubr.f32.mxu0 0.0
        %4280 = vmatmul.mubr.f32.gmra.mrb[0].mxu0 %v4024
        %v4281 = vpop.f32.mrb[0].mxu0
        %v4282 = vadd.f32 0.0, %v4281
        %v4283 = vpop.f32.mrb[0].mxu0
        %4284 = vmatprep.mubr.f32.mxu0 0.0
        %4285 = vmatmul.mubr.f32.gmra.mrb[0].mxu0 %v4027
        %v4286 = vpop.f32.mrb[0].mxu0
        %v4287 = vadd.f32 0.0, %v4286
        %v4288 = vpop.f32.mrb[0].mxu0
        %4289 = vmatprep.mubr.f32.mxu0 0.0
        %4290 = vmatmul.mubr.f32.gmra.mrb[0].mxu0 %v4030
        %v4291 = vpop.f32.mrb[0].mxu0
        %v4292 = vadd.f32 0.0, %v4291
        %v4293 = vpop.f32.mrb[0].mxu0
        %4294 = vmatprep.mubr.f32.mxu0 0.0
        %4295 = vmatmul.mubr.f32.gmra.mrb[0].mxu0 %v4033
        %v4296 = vpop.f32.mrb[0].mxu0
        %v4297 = vadd.f32 0.0, %v4296
        %v4298 = vpop.f32.mrb[0].mxu0
        %4299 = vdwg.mxu0
        %v4301 = vsel %vm417, %v3818, 0
        %v4304 = vsel %vm417, %v3819, 0
        %v4307 = vsel %vm417, %v3820, 0
        %v4310 = vsel %vm417, %v3821, 0
        %v4313 = vsel %vm417, %v3822, 0
        %v4316 = vsel %vm417, %v3823, 0
        %v4319 = vsel %vm417, %v3824, 0
        %v4322 = vsel %vm417, %v3825, 0
        %v4325 = vsel %vm417, %v3826, 0
        %v4328 = vsel %vm417, %v3827, 0
        %v4331 = vsel %vm417, %v3828, 0
        %v4334 = vsel %vm417, %v3829, 0
        %v4337 = vsel %vm417, %v3830, 0
        %v4340 = vsel %vm417, %v3831, 0
        %v4343 = vsel %vm417, %v3832, 0
        %v4346 = vsel %vm417, %v3833, 0
        %v4349 = vsel %vm417, %v3834, 0
        %v4352 = vsel %vm417, %v3835, 0
        %v4355 = vsel %vm417, %v3836, 0
        %v4358 = vsel %vm417, %v3837, 0
        %v4361 = vsel %vm417, %v3838, 0
        %v4364 = vsel %vm417, %v3839, 0
        %v4367 = vsel %vm417, %v3840, 0
        %v4370 = vsel %vm417, %v3841, 0
        %v4373 = vsel %vm417, %v3842, 0
        %v4376 = vsel %vm417, %v3843, 0
        %v4379 = vsel %vm417, %v3844, 0
        %v4382 = vsel %vm417, %v3845, 0
        %v4385 = vsel %vm417, %v3846, 0
        %v4388 = vsel %vm417, %v3847, 0
        %v4391 = vsel %vm417, %v3848, 0
        %v4394 = vsel %vm417, %v3849, 0
        %v4397 = vsel %vm417, %v3850, 0
        %v4400 = vsel %vm417, %v3851, 0
        %v4403 = vsel %vm417, %v3852, 0
        %v4406 = vsel %vm417, %v3853, 0
        %v4409 = vsel %vm417, %v3854, 0
        %v4412 = vsel %vm417, %v3855, 0
        %v4415 = vsel %vm417, %v3856, 0
        %v4418 = vsel %vm417, %v3857, 0
        %4420 = vmatprep.subr.mxu0 0.0
        %4421 = vmatpush1.msra.mxu0 %v3858
        %4422 = vmatprep.subr.mxu0 0.0
        %4423 = vmatpush1.msra.mxu0 %v3859
        %4424 = vmatprep.subr.mxu0 0.0
        %4425 = vmatpush1.msra.mxu0 %v3860
        %4426 = vmatprep.subr.mxu0 0.0
        %4427 = vmatpush1.msra.mxu0 %v3861
        %4428 = vmatprep.subr.mxu0 0.0
        %4429 = vmatpush1.msra.mxu0 %v3862
        %4430 = vmatprep.subr.mxu0 0.0
        %4431 = vmatpush1.msra.mxu0 %v3863
        %4432 = vmatprep.subr.mxu0 0.0
        %4433 = vmatpush1.msra.mxu0 %v3864
        %4434 = vmatprep.subr.mxu0 0.0
        %4435 = vmatpush1.msra.mxu0 %v3865
        %4436 = vmatprep.subr.mxu0 0.0
        %4437 = vmatpush1.msra.mxu0 0.0
        %4438 = vmatprep.subr.mxu0 0.0
        %4439 = vmatpush1.msra.mxu0 0.0
        %4440 = vmatprep.subr.mxu0 0.0
        %4441 = vmatpush1.msra.mxu0 0.0
        %4442 = vmatprep.subr.mxu0 0.0
        %4443 = vmatpush1.msra.mxu0 0.0
        %4444 = vmatprep.subr.mxu0 0.0
        %4445 = vmatpush1.msra.mxu0 0.0
        %4446 = vmatprep.subr.mxu0 0.0
        %4447 = vmatpush1.msra.mxu0 0.0
        %4448 = vmatprep.subr.mxu0 0.0
        %4449 = vmatpush1.msra.mxu0 0.0
        %4450 = vmatprep.subr.mxu0 0.0
        %4451 = vmatpush1.msra.mxu0 0.0
        %4452 = vmatprep.subr.mxu0 0.0
        %4453 = vmatpush1.msra.mxu0 0.0
        %4454 = vmatprep.subr.mxu0 0.0
        %4455 = vmatpush1.msra.mxu0 0.0
        %4456 = vmatprep.subr.mxu0 0.0
        %4457 = vmatpush1.msra.mxu0 0.0
        %4458 = vmatprep.subr.mxu0 0.0
        %4459 = vmatpush1.msra.mxu0 0.0
        %4460 = vmatprep.subr.mxu0 0.0
        %4461 = vmatpush1.msra.mxu0 0.0
        %4462 = vmatprep.subr.mxu0 0.0
        %4463 = vmatpush1.msra.mxu0 0.0
        %4464 = vmatprep.subr.mxu0 0.0
        %4465 = vmatpush1.msra.mxu0 0.0
        %4466 = vmatprep.subr.mxu0 0.0
        %4467 = vmatpush1.msra.mxu0 0.0
        %4468 = vmatprep.subr.mxu0 0.0
        %4469 = vmatpush1.msra.mxu0 0.0
        %4470 = vmatprep.subr.mxu0 0.0
        %4471 = vmatpush1.msra.mxu0 0.0
        %4472 = vmatprep.subr.mxu0 0.0
        %4473 = vmatpush1.msra.mxu0 0.0
        %4474 = vmatprep.subr.mxu0 0.0
        %4475 = vmatpush1.msra.mxu0 0.0
        %4476 = vmatprep.subr.mxu0 0.0
        %4477 = vmatpush1.msra.mxu0 0.0
        %4478 = vmatprep.subr.mxu0 0.0
        %4479 = vmatpush1.msra.mxu0 0.0
        %4480 = vmatprep.subr.mxu0 0.0
        %4481 = vmatpush1.msra.mxu0 0.0
        %4482 = vmatprep.subr.mxu0 0.0
        %4483 = vmatpush1.msra.mxu0 0.0
        %4484 = vmatprep.mubr.f32.mxu0 0.0
        %4485 = vmatmul.mubr.f32.gmra.mrb[0].mxu0 %v4301
        %v4486 = vpop.f32.mrb[0].mxu0
        %v4487 = vadd.f32 %v4102, %v4486
        %v4488 = vpop.f32.mrb[0].mxu0
        %4489 = vmatprep.mubr.f32.mxu0 0.0
        %4490 = vmatmul.mubr.f32.gmra.mrb[0].mxu0 %v4304
        %v4491 = vpop.f32.mrb[0].mxu0
        %v4492 = vadd.f32 %v4107, %v4491
        %v4493 = vpop.f32.mrb[0].mxu0
        %4494 = vmatprep.mubr.f32.mxu0 0.0
        %4495 = vmatmul.mubr.f32.gmra.mrb[0].mxu0 %v4307
        %v4496 = vpop.f32.mrb[0].mxu0
        %v4497 = vadd.f32 %v4112, %v4496
        %v4498 = vpop.f32.mrb[0].mxu0
        %4499 = vmatprep.mubr.f32.mxu0 0.0
        %4500 = vmatmul.mubr.f32.gmra.mrb[0].mxu0 %v4310
        %v4501 = vpop.f32.mrb[0].mxu0
        %v4502 = vadd.f32 %v4117, %v4501
        %v4503 = vpop.f32.mrb[0].mxu0
        %4504 = vmatprep.mubr.f32.mxu0 0.0
        %4505 = vmatmul.mubr.f32.gmra.mrb[0].mxu0 %v4313
        %v4506 = vpop.f32.mrb[0].mxu0
        %v4507 = vadd.f32 %v4122, %v4506
        %v4508 = vpop.f32.mrb[0].mxu0
        %4509 = vmatprep.mubr.f32.mxu0 0.0
        %4510 = vmatmul.mubr.f32.gmra.mrb[0].mxu0 %v4316
        %v4511 = vpop.f32.mrb[0].mxu0
        %v4512 = vadd.f32 %v4127, %v4511
        %v4513 = vpop.f32.mrb[0].mxu0
        %4514 = vmatprep.mubr.f32.mxu0 0.0
        %4515 = vmatmul.mubr.f32.gmra.mrb[0].mxu0 %v4319
        %v4516 = vpop.f32.mrb[0].mxu0
        %v4517 = vadd.f32 %v4132, %v4516
        %v4518 = vpop.f32.mrb[0].mxu0
        %4519 = vmatprep.mubr.f32.mxu0 0.0
        %4520 = vmatmul.mubr.f32.gmra.mrb[0].mxu0 %v4322
        %v4521 = vpop.f32.mrb[0].mxu0
        %v4522 = vadd.f32 %v4137, %v4521
        %v4523 = vpop.f32.mrb[0].mxu0
        %4524 = vmatprep.mubr.f32.mxu0 0.0
        %4525 = vmatmul.mubr.f32.gmra.mrb[0].mxu0 %v4325
        %v4526 = vpop.f32.mrb[0].mxu0
        %v4527 = vadd.f32 %v4142, %v4526
        %v4528 = vpop.f32.mrb[0].mxu0
        %4529 = vmatprep.mubr.f32.mxu0 0.0
        %4530 = vmatmul.mubr.f32.gmra.mrb[0].mxu0 %v4328
        %v4531 = vpop.f32.mrb[0].mxu0
        %v4532 = vadd.f32 %v4147, %v4531
        %v4533 = vpop.f32.mrb[0].mxu0
        %4534 = vmatprep.mubr.f32.mxu0 0.0
        %4535 = vmatmul.mubr.f32.gmra.mrb[0].mxu0 %v4331
        %v4536 = vpop.f32.mrb[0].mxu0
        %v4537 = vadd.f32 %v4152, %v4536
        %v4538 = vpop.f32.mrb[0].mxu0
        %4539 = vmatprep.mubr.f32.mxu0 0.0
        %4540 = vmatmul.mubr.f32.gmra.mrb[0].mxu0 %v4334
        %v4541 = vpop.f32.mrb[0].mxu0
        %v4542 = vadd.f32 %v4157, %v4541
        %v4543 = vpop.f32.mrb[0].mxu0
        %4544 = vmatprep.mubr.f32.mxu0 0.0
        %4545 = vmatmul.mubr.f32.gmra.mrb[0].mxu0 %v4337
        %v4546 = vpop.f32.mrb[0].mxu0
        %v4547 = vadd.f32 %v4162, %v4546
        %v4548 = vpop.f32.mrb[0].mxu0
        %4549 = vmatprep.mubr.f32.mxu0 0.0
        %4550 = vmatmul.mubr.f32.gmra.mrb[0].mxu0 %v4340
        %v4551 = vpop.f32.mrb[0].mxu0
        %v4552 = vadd.f32 %v4167, %v4551
        %v4553 = vpop.f32.mrb[0].mxu0
        %4554 = vmatprep.mubr.f32.mxu0 0.0
        %4555 = vmatmul.mubr.f32.gmra.mrb[0].mxu0 %v4343
        %v4556 = vpop.f32.mrb[0].mxu0
        %v4557 = vadd.f32 %v4172, %v4556
        %v4558 = vpop.f32.mrb[0].mxu0
        %4559 = vmatprep.mubr.f32.mxu0 0.0
        %4560 = vmatmul.mubr.f32.gmra.mrb[0].mxu0 %v4346
        %v4561 = vpop.f32.mrb[0].mxu0
        %v4562 = vadd.f32 %v4177, %v4561
        %v4563 = vpop.f32.mrb[0].mxu0
        %4564 = vmatprep.mubr.f32.mxu0 0.0
        %4565 = vmatmul.mubr.f32.gmra.mrb[0].mxu0 %v4349
        %v4566 = vpop.f32.mrb[0].mxu0
        %v4567 = vadd.f32 %v4182, %v4566
        %v4568 = vpop.f32.mrb[0].mxu0
        %4569 = vmatprep.mubr.f32.mxu0 0.0
        %4570 = vmatmul.mubr.f32.gmra.mrb[0].mxu0 %v4352
        %v4571 = vpop.f32.mrb[0].mxu0
        %v4572 = vadd.f32 %v4187, %v4571
        %v4573 = vpop.f32.mrb[0].mxu0
        %4574 = vmatprep.mubr.f32.mxu0 0.0
        %4575 = vmatmul.mubr.f32.gmra.mrb[0].mxu0 %v4355
        %v4576 = vpop.f32.mrb[0].mxu0
        %v4577 = vadd.f32 %v4192, %v4576
        %v4578 = vpop.f32.mrb[0].mxu0
        %4579 = vmatprep.mubr.f32.mxu0 0.0
        %4580 = vmatmul.mubr.f32.gmra.mrb[0].mxu0 %v4358
        %v4581 = vpop.f32.mrb[0].mxu0
        %v4582 = vadd.f32 %v4197, %v4581
        %v4583 = vpop.f32.mrb[0].mxu0
        %4584 = vmatprep.mubr.f32.mxu0 0.0
        %4585 = vmatmul.mubr.f32.gmra.mrb[0].mxu0 %v4361
        %v4586 = vpop.f32.mrb[0].mxu0
        %v4587 = vadd.f32 %v4202, %v4586
        %v4588 = vpop.f32.mrb[0].mxu0
        %4589 = vmatprep.mubr.f32.mxu0 0.0
        %4590 = vmatmul.mubr.f32.gmra.mrb[0].mxu0 %v4364
        %v4591 = vpop.f32.mrb[0].mxu0
        %v4592 = vadd.f32 %v4207, %v4591
        %v4593 = vpop.f32.mrb[0].mxu0
        %4594 = vmatprep.mubr.f32.mxu0 0.0
        %4595 = vmatmul.mubr.f32.gmra.mrb[0].mxu0 %v4367
        %v4596 = vpop.f32.mrb[0].mxu0
        %v4597 = vadd.f32 %v4212, %v4596
        %v4598 = vpop.f32.mrb[0].mxu0
        %4599 = vmatprep.mubr.f32.mxu0 0.0
        %4600 = vmatmul.mubr.f32.gmra.mrb[0].mxu0 %v4370
        %v4601 = vpop.f32.mrb[0].mxu0
        %v4602 = vadd.f32 %v4217, %v4601
        %v4603 = vpop.f32.mrb[0].mxu0
        %4604 = vmatprep.mubr.f32.mxu0 0.0
        %4605 = vmatmul.mubr.f32.gmra.mrb[0].mxu0 %v4373
        %v4606 = vpop.f32.mrb[0].mxu0
        %v4607 = vadd.f32 %v4222, %v4606
        %v4608 = vpop.f32.mrb[0].mxu0
        %4609 = vmatprep.mubr.f32.mxu0 0.0
        %4610 = vmatmul.mubr.f32.gmra.mrb[0].mxu0 %v4376
        %v4611 = vpop.f32.mrb[0].mxu0
        %v4612 = vadd.f32 %v4227, %v4611
        %v4613 = vpop.f32.mrb[0].mxu0
        %4614 = vmatprep.mubr.f32.mxu0 0.0
        %4615 = vmatmul.mubr.f32.gmra.mrb[0].mxu0 %v4379
        %v4616 = vpop.f32.mrb[0].mxu0
        %v4617 = vadd.f32 %v4232, %v4616
        %v4618 = vpop.f32.mrb[0].mxu0
        %4619 = vmatprep.mubr.f32.mxu0 0.0
        %4620 = vmatmul.mubr.f32.gmra.mrb[0].mxu0 %v4382
        %v4621 = vpop.f32.mrb[0].mxu0
        %v4622 = vadd.f32 %v4237, %v4621
        %v4623 = vpop.f32.mrb[0].mxu0
        %4624 = vmatprep.mubr.f32.mxu0 0.0
        %4625 = vmatmul.mubr.f32.gmra.mrb[0].mxu0 %v4385
        %v4626 = vpop.f32.mrb[0].mxu0
        %v4627 = vadd.f32 %v4242, %v4626
        %v4628 = vpop.f32.mrb[0].mxu0
        %4629 = vmatprep.mubr.f32.mxu0 0.0
        %4630 = vmatmul.mubr.f32.gmra.mrb[0].mxu0 %v4388
        %v4631 = vpop.f32.mrb[0].mxu0
        %v4632 = vadd.f32 %v4247, %v4631
        %v4633 = vpop.f32.mrb[0].mxu0
        %4634 = vmatprep.mubr.f32.mxu0 0.0
        %4635 = vmatmul.mubr.f32.gmra.mrb[0].mxu0 %v4391
        %v4636 = vpop.f32.mrb[0].mxu0
        %v4637 = vadd.f32 %v4252, %v4636
        %v4638 = vpop.f32.mrb[0].mxu0
        %4639 = vmatprep.mubr.f32.mxu0 0.0
        %4640 = vmatmul.mubr.f32.gmra.mrb[0].mxu0 %v4394
        %v4641 = vpop.f32.mrb[0].mxu0
        %v4642 = vadd.f32 %v4257, %v4641
        %v4643 = vpop.f32.mrb[0].mxu0
        %4644 = vmatprep.mubr.f32.mxu0 0.0
        %4645 = vmatmul.mubr.f32.gmra.mrb[0].mxu0 %v4397
        %v4646 = vpop.f32.mrb[0].mxu0
        %v4647 = vadd.f32 %v4262, %v4646
        %v4648 = vpop.f32.mrb[0].mxu0
        %4649 = vmatprep.mubr.f32.mxu0 0.0
        %4650 = vmatmul.mubr.f32.gmra.mrb[0].mxu0 %v4400
        %v4651 = vpop.f32.mrb[0].mxu0
        %v4652 = vadd.f32 %v4267, %v4651
        %v4653 = vpop.f32.mrb[0].mxu0
        %4654 = vmatprep.mubr.f32.mxu0 0.0
        %4655 = vmatmul.mubr.f32.gmra.mrb[0].mxu0 %v4403
        %v4656 = vpop.f32.mrb[0].mxu0
        %v4657 = vadd.f32 %v4272, %v4656
        %v4658 = vpop.f32.mrb[0].mxu0
        %4659 = vmatprep.mubr.f32.mxu0 0.0
        %4660 = vmatmul.mubr.f32.gmra.mrb[0].mxu0 %v4406
        %v4661 = vpop.f32.mrb[0].mxu0
        %v4662 = vadd.f32 %v4277, %v4661
        %v4663 = vpop.f32.mrb[0].mxu0
        %4664 = vmatprep.mubr.f32.mxu0 0.0
        %4665 = vmatmul.mubr.f32.gmra.mrb[0].mxu0 %v4409
        %v4666 = vpop.f32.mrb[0].mxu0
        %v4667 = vadd.f32 %v4282, %v4666
        %v4668 = vpop.f32.mrb[0].mxu0
        %4669 = vmatprep.mubr.f32.mxu0 0.0
        %4670 = vmatmul.mubr.f32.gmra.mrb[0].mxu0 %v4412
        %v4671 = vpop.f32.mrb[0].mxu0
        %v4672 = vadd.f32 %v4287, %v4671
        %v4673 = vpop.f32.mrb[0].mxu0
        %4674 = vmatprep.mubr.f32.mxu0 0.0
        %4675 = vmatmul.mubr.f32.gmra.mrb[0].mxu0 %v4415
        %v4676 = vpop.f32.mrb[0].mxu0
        %v4677 = vadd.f32 %v4292, %v4676
        %v4678 = vpop.f32.mrb[0].mxu0
        %4679 = vmatprep.mubr.f32.mxu0 0.0
        %4680 = vmatmul.mubr.f32.gmra.mrb[0].mxu0 %v4418
        %v4681 = vpop.f32.mrb[0].mxu0
        %v4682 = vadd.f32 %v4297, %v4681
        %v4683 = vpop.f32.mrb[0].mxu0
        %4684 = vdwg.mxu0
        %v4685 = vld [vmem:[#allocation3 + $0x8] sm:$0xff]
        %v4686 = vld [vmem:[#allocation3 + $0x10] sm:$0xff]
        %v4687 = vld [vmem:[#allocation3 + $0x18] sm:$0xff]
        %v4688 = vld [vmem:[#allocation3 + $0x20] sm:$0xff]
        %v4689 = vld [vmem:[#allocation3 + $0x28] sm:$0xff]
        %v4690 = vld [vmem:[#allocation3 + $0x30] sm:$0xff]
        %v4691 = vld [vmem:[#allocation3 + $0x38] sm:$0xff]
        %v4692 = vld [vmem:[#allocation3 + $0x40] sm:$0xff]
        %v4693 = vld [vmem:[#allocation3 + $0x48] sm:$0xff]
        %v4694 = vld [vmem:[#allocation3 + $0x50] sm:$0xff]
        %v4695 = vld [vmem:[#allocation3 + $0x58] sm:$0xff]
        %v4696 = vld [vmem:[#allocation3 + $0x60] sm:$0xff]
        %v4697 = vld [vmem:[#allocation3 + $0x68] sm:$0xff]
        %v4698 = vld [vmem:[#allocation3 + $0x70] sm:$0xff]
        %v4699 = vld [vmem:[#allocation3 + $0x78] sm:$0xff]
        %v4700 = vld [vmem:[#allocation3 + $0x80] sm:$0xff]
        %v4701 = vld [vmem:[#allocation3 + $0x88] sm:$0xff]
        %v4702 = vld [vmem:[#allocation3 + $0x90] sm:$0xff]
        %v4703 = vld [vmem:[#allocation3 + $0x98] sm:$0xff]
        %v4704 = vld [vmem:[#allocation3 + $0xa0] sm:$0xff]
        %v4705 = vld [vmem:[#allocation3 + $0xa8] sm:$0xff]
        %v4706 = vld [vmem:[#allocation3 + $0xb0] sm:$0xff]
        %v4707 = vld [vmem:[#allocation3 + $0xb8] sm:$0xff]
        %v4708 = vld [vmem:[#allocation3 + $0xc0] sm:$0xff]
        %v4709 = vld [vmem:[#allocation3 + $0xc8] sm:$0xff]
        %v4710 = vld [vmem:[#allocation3 + $0xd0] sm:$0xff]
        %v4711 = vld [vmem:[#allocation3 + $0xd8] sm:$0xff]
        %v4712 = vld [vmem:[#allocation3 + $0xe0] sm:$0xff]
        %v4713 = vld [vmem:[#allocation3 + $0xe8] sm:$0xff]
        %v4714 = vld [vmem:[#allocation3 + $0xf0] sm:$0xff]
        %v4715 = vld [vmem:[#allocation3 + $0xf8] sm:$0xff]
        %v4716 = vld [vmem:[#allocation3 + $0x100] sm:$0xff]
        %v4717 = vld [vmem:[#allocation3 + $0x108] sm:$0xff]
        %v4718 = vld [vmem:[#allocation3 + $0x110] sm:$0xff]
        %v4719 = vld [vmem:[#allocation3 + $0x118] sm:$0xff]
        %v4720 = vld [vmem:[#allocation3 + $0x120] sm:$0xff]
        %v4721 = vld [vmem:[#allocation3 + $0x128] sm:$0xff]
        %v4722 = vld [vmem:[#allocation3 + $0x130] sm:$0xff]
        %v4723 = vld [vmem:[#allocation3 + $0x138] sm:$0xff]
        %v4724 = vld [vmem:[#allocation3 + $0x140] sm:$0xff]
        %s4725 = scalar_lea.vmem %s8, 128
        %v4726 = vld [vmem:[%s4725] sm:$0xff]
        %v4727 = vld [vmem:[%s4725 + $0x8] sm:$0xff]
        %v4728 = vld [vmem:[%s4725 + $0x10] sm:$0xff]
        %v4729 = vld [vmem:[%s4725 + $0x18] sm:$0xff]
        %v4730 = vld [vmem:[%s4725 + $0x20] sm:$0xff]
        %v4731 = vld [vmem:[%s4725 + $0x28] sm:$0xff]
        %v4732 = vld [vmem:[%s4725 + $0x30] sm:$0xff]
        %v4733 = vld [vmem:[%s4725 + $0x38] sm:$0xff]
        %v4735 = vsel %vm417, %v4685, 0
        %v4738 = vsel %vm417, %v4686, 0
        %v4741 = vsel %vm417, %v4687, 0
        %v4744 = vsel %vm417, %v4688, 0
        %v4747 = vsel %vm417, %v4689, 0
        %v4750 = vsel %vm417, %v4690, 0
        %v4753 = vsel %vm417, %v4691, 0
        %v4756 = vsel %vm417, %v4692, 0
        %v4759 = vsel %vm417, %v4693, 0
        %v4762 = vsel %vm417, %v4694, 0
        %v4765 = vsel %vm417, %v4695, 0
        %v4768 = vsel %vm417, %v4696, 0
        %v4771 = vsel %vm417, %v4697, 0
        %v4774 = vsel %vm417, %v4698, 0
        %v4777 = vsel %vm417, %v4699, 0
        %v4780 = vsel %vm417, %v4700, 0
        %v4783 = vsel %vm417, %v4701, 0
        %v4786 = vsel %vm417, %v4702, 0
        %v4789 = vsel %vm417, %v4703, 0
        %v4792 = vsel %vm417, %v4704, 0
        %v4795 = vsel %vm417, %v4705, 0
        %v4798 = vsel %vm417, %v4706, 0
        %v4801 = vsel %vm417, %v4707, 0
        %v4804 = vsel %vm417, %v4708, 0
        %v4807 = vsel %vm417, %v4709, 0
        %v4810 = vsel %vm417, %v4710, 0
        %v4813 = vsel %vm417, %v4711, 0
        %v4816 = vsel %vm417, %v4712, 0
        %v4819 = vsel %vm417, %v4713, 0
        %v4822 = vsel %vm417, %v4714, 0
        %v4825 = vsel %vm417, %v4715, 0
        %v4828 = vsel %vm417, %v4716, 0
        %v4831 = vsel %vm417, %v4717, 0
        %v4834 = vsel %vm417, %v4718, 0
        %v4837 = vsel %vm417, %v4719, 0
        %v4840 = vsel %vm417, %v4720, 0
        %v4843 = vsel %vm417, %v4721, 0
        %v4846 = vsel %vm417, %v4722, 0
        %v4849 = vsel %vm417, %v4723, 0
        %v4852 = vsel %vm417, %v4724, 0
        %4854 = vmatprep.subr.mxu0 0.0
        %4855 = vmatpush1.msra.mxu0 %v4726
        %4856 = vmatprep.subr.mxu0 0.0
        %4857 = vmatpush1.msra.mxu0 %v4727
        %4858 = vmatprep.subr.mxu0 0.0
        %4859 = vmatpush1.msra.mxu0 %v4728
        %4860 = vmatprep.subr.mxu0 0.0
        %4861 = vmatpush1.msra.mxu0 %v4729
        %4862 = vmatprep.subr.mxu0 0.0
        %4863 = vmatpush1.msra.mxu0 %v4730
        %4864 = vmatprep.subr.mxu0 0.0
        %4865 = vmatpush1.msra.mxu0 %v4731
        %4866 = vmatprep.subr.mxu0 0.0
        %4867 = vmatpush1.msra.mxu0 %v4732
        %4868 = vmatprep.subr.mxu0 0.0
        %4869 = vmatpush1.msra.mxu0 %v4733
        %4870 = vmatprep.subr.mxu0 0.0
        %4871 = vmatpush1.msra.mxu0 0.0
        %4872 = vmatprep.subr.mxu0 0.0
        %4873 = vmatpush1.msra.mxu0 0.0
        %4874 = vmatprep.subr.mxu0 0.0
        %4875 = vmatpush1.msra.mxu0 0.0
        %4876 = vmatprep.subr.mxu0 0.0
        %4877 = vmatpush1.msra.mxu0 0.0
        %4878 = vmatprep.subr.mxu0 0.0
        %4879 = vmatpush1.msra.mxu0 0.0
        %4880 = vmatprep.subr.mxu0 0.0
        %4881 = vmatpush1.msra.mxu0 0.0
        %4882 = vmatprep.subr.mxu0 0.0
        %4883 = vmatpush1.msra.mxu0 0.0
        %4884 = vmatprep.subr.mxu0 0.0
        %4885 = vmatpush1.msra.mxu0 0.0
        %4886 = vmatprep.subr.mxu0 0.0
        %4887 = vmatpush1.msra.mxu0 0.0
        %4888 = vmatprep.subr.mxu0 0.0
        %4889 = vmatpush1.msra.mxu0 0.0
        %4890 = vmatprep.subr.mxu0 0.0
        %4891 = vmatpush1.msra.mxu0 0.0
        %4892 = vmatprep.subr.mxu0 0.0
        %4893 = vmatpush1.msra.mxu0 0.0
        %4894 = vmatprep.subr.mxu0 0.0
        %4895 = vmatpush1.msra.mxu0 0.0
        %4896 = vmatprep.subr.mxu0 0.0
        %4897 = vmatpush1.msra.mxu0 0.0
        %4898 = vmatprep.subr.mxu0 0.0
        %4899 = vmatpush1.msra.mxu0 0.0
        %4900 = vmatprep.subr.mxu0 0.0
        %4901 = vmatpush1.msra.mxu0 0.0
        %4902 = vmatprep.subr.mxu0 0.0
        %4903 = vmatpush1.msra.mxu0 0.0
        %4904 = vmatprep.subr.mxu0 0.0
        %4905 = vmatpush1.msra.mxu0 0.0
        %4906 = vmatprep.subr.mxu0 0.0
        %4907 = vmatpush1.msra.mxu0 0.0
        %4908 = vmatprep.subr.mxu0 0.0
        %4909 = vmatpush1.msra.mxu0 0.0
        %4910 = vmatprep.subr.mxu0 0.0
        %4911 = vmatpush1.msra.mxu0 0.0
        %4912 = vmatprep.subr.mxu0 0.0
        %4913 = vmatpush1.msra.mxu0 0.0
        %4914 = vmatprep.subr.mxu0 0.0
        %4915 = vmatpush1.msra.mxu0 0.0
        %4916 = vmatprep.subr.mxu0 0.0
        %4917 = vmatpush1.msra.mxu0 0.0
        %4918 = vmatprep.mubr.f32.mxu0 0.0
        %4919 = vmatmul.mubr.f32.gmra.mrb[0].mxu0 %v4735
        %v4920 = vpop.f32.mrb[0].mxu0
        %v4921 = vadd.f32 0.0, %v4920
        %v4922 = vpop.f32.mrb[0].mxu0
        %4923 = vmatprep.mubr.f32.mxu0 0.0
        %4924 = vmatmul.mubr.f32.gmra.mrb[0].mxu0 %v4738
        %v4925 = vpop.f32.mrb[0].mxu0
        %v4926 = vadd.f32 0.0, %v4925
        %v4927 = vpop.f32.mrb[0].mxu0
        %4928 = vmatprep.mubr.f32.mxu0 0.0
        %4929 = vmatmul.mubr.f32.gmra.mrb[0].mxu0 %v4741
        %v4930 = vpop.f32.mrb[0].mxu0
        %v4931 = vadd.f32 0.0, %v4930
        %v4932 = vpop.f32.mrb[0].mxu0
        %4933 = vmatprep.mubr.f32.mxu0 0.0
        %4934 = vmatmul.mubr.f32.gmra.mrb[0].mxu0 %v4744
        %v4935 = vpop.f32.mrb[0].mxu0
        %v4936 = vadd.f32 0.0, %v4935
        %v4937 = vpop.f32.mrb[0].mxu0
        %4938 = vmatprep.mubr.f32.mxu0 0.0
        %4939 = vmatmul.mubr.f32.gmra.mrb[0].mxu0 %v4747
        %v4940 = vpop.f32.mrb[0].mxu0
        %v4941 = vadd.f32 0.0, %v4940
        %v4942 = vpop.f32.mrb[0].mxu0
        %4943 = vmatprep.mubr.f32.mxu0 0.0
        %4944 = vmatmul.mubr.f32.gmra.mrb[0].mxu0 %v4750
        %v4945 = vpop.f32.mrb[0].mxu0
        %v4946 = vadd.f32 0.0, %v4945
        %v4947 = vpop.f32.mrb[0].mxu0
        %4948 = vmatprep.mubr.f32.mxu0 0.0
        %4949 = vmatmul.mubr.f32.gmra.mrb[0].mxu0 %v4753
        %v4950 = vpop.f32.mrb[0].mxu0
        %v4951 = vadd.f32 0.0, %v4950
        %v4952 = vpop.f32.mrb[0].mxu0
        %4953 = vmatprep.mubr.f32.mxu0 0.0
        %4954 = vmatmul.mubr.f32.gmra.mrb[0].mxu0 %v4756
        %v4955 = vpop.f32.mrb[0].mxu0
        %v4956 = vadd.f32 0.0, %v4955
        %v4957 = vpop.f32.mrb[0].mxu0
        %4958 = vmatprep.mubr.f32.mxu0 0.0
        %4959 = vmatmul.mubr.f32.gmra.mrb[0].mxu0 %v4759
        %v4960 = vpop.f32.mrb[0].mxu0
        %v4961 = vadd.f32 0.0, %v4960
        %v4962 = vpop.f32.mrb[0].mxu0
        %4963 = vmatprep.mubr.f32.mxu0 0.0
        %4964 = vmatmul.mubr.f32.gmra.mrb[0].mxu0 %v4762
        %v4965 = vpop.f32.mrb[0].mxu0
        %v4966 = vadd.f32 0.0, %v4965
        %v4967 = vpop.f32.mrb[0].mxu0
        %4968 = vmatprep.mubr.f32.mxu0 0.0
        %4969 = vmatmul.mubr.f32.gmra.mrb[0].mxu0 %v4765
        %v4970 = vpop.f32.mrb[0].mxu0
        %v4971 = vadd.f32 0.0, %v4970
        %v4972 = vpop.f32.mrb[0].mxu0
        %4973 = vmatprep.mubr.f32.mxu0 0.0
        %4974 = vmatmul.mubr.f32.gmra.mrb[0].mxu0 %v4768
        %v4975 = vpop.f32.mrb[0].mxu0
        %v4976 = vadd.f32 0.0, %v4975
        %v4977 = vpop.f32.mrb[0].mxu0
        %4978 = vmatprep.mubr.f32.mxu0 0.0
        %4979 = vmatmul.mubr.f32.gmra.mrb[0].mxu0 %v4771
        %v4980 = vpop.f32.mrb[0].mxu0
        %v4981 = vadd.f32 0.0, %v4980
        %v4982 = vpop.f32.mrb[0].mxu0
        %4983 = vmatprep.mubr.f32.mxu0 0.0
        %4984 = vmatmul.mubr.f32.gmra.mrb[0].mxu0 %v4774
        %v4985 = vpop.f32.mrb[0].mxu0
        %v4986 = vadd.f32 0.0, %v4985
        %v4987 = vpop.f32.mrb[0].mxu0
        %4988 = vmatprep.mubr.f32.mxu0 0.0
        %4989 = vmatmul.mubr.f32.gmra.mrb[0].mxu0 %v4777
        %v4990 = vpop.f32.mrb[0].mxu0
        %v4991 = vadd.f32 0.0, %v4990
        %v4992 = vpop.f32.mrb[0].mxu0
        %4993 = vmatprep.mubr.f32.mxu0 0.0
        %4994 = vmatmul.mubr.f32.gmra.mrb[0].mxu0 %v4780
        %v4995 = vpop.f32.mrb[0].mxu0
        %v4996 = vadd.f32 0.0, %v4995
        %v4997 = vpop.f32.mrb[0].mxu0
        %4998 = vmatprep.mubr.f32.mxu0 0.0
        %4999 = vmatmul.mubr.f32.gmra.mrb[0].mxu0 %v4783
        %v5000 = vpop.f32.mrb[0].mxu0
        %v5001 = vadd.f32 0.0, %v5000
        %v5002 = vpop.f32.mrb[0].mxu0
        %5003 = vmatprep.mubr.f32.mxu0 0.0
        %5004 = vmatmul.mubr.f32.gmra.mrb[0].mxu0 %v4786
        %v5005 = vpop.f32.mrb[0].mxu0
        %v5006 = vadd.f32 0.0, %v5005
        %v5007 = vpop.f32.mrb[0].mxu0
        %5008 = vmatprep.mubr.f32.mxu0 0.0
        %5009 = vmatmul.mubr.f32.gmra.mrb[0].mxu0 %v4789
        %v5010 = vpop.f32.mrb[0].mxu0
        %v5011 = vadd.f32 0.0, %v5010
        %v5012 = vpop.f32.mrb[0].mxu0
        %5013 = vmatprep.mubr.f32.mxu0 0.0
        %5014 = vmatmul.mubr.f32.gmra.mrb[0].mxu0 %v4792
        %v5015 = vpop.f32.mrb[0].mxu0
        %v5016 = vadd.f32 0.0, %v5015
        %v5017 = vpop.f32.mrb[0].mxu0
        %5018 = vmatprep.mubr.f32.mxu0 0.0
        %5019 = vmatmul.mubr.f32.gmra.mrb[0].mxu0 %v4795
        %v5020 = vpop.f32.mrb[0].mxu0
        %v5021 = vadd.f32 0.0, %v5020
        %v5022 = vpop.f32.mrb[0].mxu0
        %5023 = vmatprep.mubr.f32.mxu0 0.0
        %5024 = vmatmul.mubr.f32.gmra.mrb[0].mxu0 %v4798
        %v5025 = vpop.f32.mrb[0].mxu0
        %v5026 = vadd.f32 0.0, %v5025
        %v5027 = vpop.f32.mrb[0].mxu0
        %5028 = vmatprep.mubr.f32.mxu0 0.0
        %5029 = vmatmul.mubr.f32.gmra.mrb[0].mxu0 %v4801
        %v5030 = vpop.f32.mrb[0].mxu0
        %v5031 = vadd.f32 0.0, %v5030
        %v5032 = vpop.f32.mrb[0].mxu0
        %5033 = vmatprep.mubr.f32.mxu0 0.0
        %5034 = vmatmul.mubr.f32.gmra.mrb[0].mxu0 %v4804
        %v5035 = vpop.f32.mrb[0].mxu0
        %v5036 = vadd.f32 0.0, %v5035
        %v5037 = vpop.f32.mrb[0].mxu0
        %5038 = vmatprep.mubr.f32.mxu0 0.0
        %5039 = vmatmul.mubr.f32.gmra.mrb[0].mxu0 %v4807
        %v5040 = vpop.f32.mrb[0].mxu0
        %v5041 = vadd.f32 0.0, %v5040
        %v5042 = vpop.f32.mrb[0].mxu0
        %5043 = vmatprep.mubr.f32.mxu0 0.0
        %5044 = vmatmul.mubr.f32.gmra.mrb[0].mxu0 %v4810
        %v5045 = vpop.f32.mrb[0].mxu0
        %v5046 = vadd.f32 0.0, %v5045
        %v5047 = vpop.f32.mrb[0].mxu0
        %5048 = vmatprep.mubr.f32.mxu0 0.0
        %5049 = vmatmul.mubr.f32.gmra.mrb[0].mxu0 %v4813
        %v5050 = vpop.f32.mrb[0].mxu0
        %v5051 = vadd.f32 0.0, %v5050
        %v5052 = vpop.f32.mrb[0].mxu0
        %5053 = vmatprep.mubr.f32.mxu0 0.0
        %5054 = vmatmul.mubr.f32.gmra.mrb[0].mxu0 %v4816
        %v5055 = vpop.f32.mrb[0].mxu0
        %v5056 = vadd.f32 0.0, %v5055
        %v5057 = vpop.f32.mrb[0].mxu0
        %5058 = vmatprep.mubr.f32.mxu0 0.0
        %5059 = vmatmul.mubr.f32.gmra.mrb[0].mxu0 %v4819
        %v5060 = vpop.f32.mrb[0].mxu0
        %v5061 = vadd.f32 0.0, %v5060
        %v5062 = vpop.f32.mrb[0].mxu0
        %5063 = vmatprep.mubr.f32.mxu0 0.0
        %5064 = vmatmul.mubr.f32.gmra.mrb[0].mxu0 %v4822
        %v5065 = vpop.f32.mrb[0].mxu0
        %v5066 = vadd.f32 0.0, %v5065
        %v5067 = vpop.f32.mrb[0].mxu0
        %5068 = vmatprep.mubr.f32.mxu0 0.0
        %5069 = vmatmul.mubr.f32.gmra.mrb[0].mxu0 %v4825
        %v5070 = vpop.f32.mrb[0].mxu0
        %v5071 = vadd.f32 0.0, %v5070
        %v5072 = vpop.f32.mrb[0].mxu0
        %5073 = vmatprep.mubr.f32.mxu0 0.0
        %5074 = vmatmul.mubr.f32.gmra.mrb[0].mxu0 %v4828
        %v5075 = vpop.f32.mrb[0].mxu0
        %v5076 = vadd.f32 0.0, %v5075
        %v5077 = vpop.f32.mrb[0].mxu0
        %5078 = vmatprep.mubr.f32.mxu0 0.0
        %5079 = vmatmul.mubr.f32.gmra.mrb[0].mxu0 %v4831
        %v5080 = vpop.f32.mrb[0].mxu0
        %v5081 = vadd.f32 0.0, %v5080
        %v5082 = vpop.f32.mrb[0].mxu0
        %5083 = vmatprep.mubr.f32.mxu0 0.0
        %5084 = vmatmul.mubr.f32.gmra.mrb[0].mxu0 %v4834
        %v5085 = vpop.f32.mrb[0].mxu0
        %v5086 = vadd.f32 0.0, %v5085
        %v5087 = vpop.f32.mrb[0].mxu0
        %5088 = vmatprep.mubr.f32.mxu0 0.0
        %5089 = vmatmul.mubr.f32.gmra.mrb[0].mxu0 %v4837
        %v5090 = vpop.f32.mrb[0].mxu0
        %v5091 = vadd.f32 0.0, %v5090
        %v5092 = vpop.f32.mrb[0].mxu0
        %5093 = vmatprep.mubr.f32.mxu0 0.0
        %5094 = vmatmul.mubr.f32.gmra.mrb[0].mxu0 %v4840
        %v5095 = vpop.f32.mrb[0].mxu0
        %v5096 = vadd.f32 0.0, %v5095
        %v5097 = vpop.f32.mrb[0].mxu0
        %5098 = vmatprep.mubr.f32.mxu0 0.0
        %5099 = vmatmul.mubr.f32.gmra.mrb[0].mxu0 %v4843
        %v5100 = vpop.f32.mrb[0].mxu0
        %v5101 = vadd.f32 0.0, %v5100
        %v5102 = vpop.f32.mrb[0].mxu0
        %5103 = vmatprep.mubr.f32.mxu0 0.0
        %5104 = vmatmul.mubr.f32.gmra.mrb[0].mxu0 %v4846
        %v5105 = vpop.f32.mrb[0].mxu0
        %v5106 = vadd.f32 0.0, %v5105
        %v5107 = vpop.f32.mrb[0].mxu0
        %5108 = vmatprep.mubr.f32.mxu0 0.0
        %5109 = vmatmul.mubr.f32.gmra.mrb[0].mxu0 %v4849
        %v5110 = vpop.f32.mrb[0].mxu0
        %v5111 = vadd.f32 0.0, %v5110
        %v5112 = vpop.f32.mrb[0].mxu0
        %5113 = vmatprep.mubr.f32.mxu0 0.0
        %5114 = vmatmul.mubr.f32.gmra.mrb[0].mxu0 %v4852
        %v5115 = vpop.f32.mrb[0].mxu0
        %v5116 = vadd.f32 0.0, %v5115
        %v5117 = vpop.f32.mrb[0].mxu0
        %5118 = vdwg.mxu0
        %v5119 = vadd.f32 %v4487, %v4921
        %v5120 = vadd.f32 %v4492, %v4926
        %v5121 = vadd.f32 %v4497, %v4931
        %v5122 = vadd.f32 %v4502, %v4936
        %v5123 = vadd.f32 %v4507, %v4941
        %v5124 = vadd.f32 %v4512, %v4946
        %v5125 = vadd.f32 %v4517, %v4951
        %v5126 = vadd.f32 %v4522, %v4956
        %v5127 = vadd.f32 %v4527, %v4961
        %v5128 = vadd.f32 %v4532, %v4966
        %v5129 = vadd.f32 %v4537, %v4971
        %v5130 = vadd.f32 %v4542, %v4976
        %v5131 = vadd.f32 %v4547, %v4981
        %v5132 = vadd.f32 %v4552, %v4986
        %v5133 = vadd.f32 %v4557, %v4991
        %v5134 = vadd.f32 %v4562, %v4996
        %v5135 = vadd.f32 %v4567, %v5001
        %v5136 = vadd.f32 %v4572, %v5006
        %v5137 = vadd.f32 %v4577, %v5011
        %v5138 = vadd.f32 %v4582, %v5016
        %v5139 = vadd.f32 %v4587, %v5021
        %v5140 = vadd.f32 %v4592, %v5026
        %v5141 = vadd.f32 %v4597, %v5031
        %v5142 = vadd.f32 %v4602, %v5036
        %v5143 = vadd.f32 %v4607, %v5041
        %v5144 = vadd.f32 %v4612, %v5046
        %v5145 = vadd.f32 %v4617, %v5051
        %v5146 = vadd.f32 %v4622, %v5056
        %v5147 = vadd.f32 %v4627, %v5061
        %v5148 = vadd.f32 %v4632, %v5066
        %v5149 = vadd.f32 %v4637, %v5071
        %v5150 = vadd.f32 %v4642, %v5076
        %v5151 = vadd.f32 %v4647, %v5081
        %v5152 = vadd.f32 %v4652, %v5086
        %v5153 = vadd.f32 %v4657, %v5091
        %v5154 = vadd.f32 %v4662, %v5096
        %v5155 = vadd.f32 %v4667, %v5101
        %v5156 = vadd.f32 %v4672, %v5106
        %v5157 = vadd.f32 %v4677, %v5111
        %v5158 = vadd.f32 %v4682, %v5116
        %v5159 = vld [vmem:[%s9] sm:$0x1]
        %v5161 = vlaneseq
        %v5162 = vshrl.u32 %v5161, 7
        %v5163 = vsub.s32 0, %v5162
        %v5164 = vrot.slane %v5159, %v5163
        %v5166 = vadd.f32 %v5119, %v5164
        %v5167 = vadd.f32 %v5120, %v5164
        %v5168 = vadd.f32 %v5121, %v5164
        %v5169 = vadd.f32 %v5122, %v5164
        %v5170 = vadd.f32 %v5123, %v5164
        %v5171 = vadd.f32 %v5124, %v5164
        %v5172 = vadd.f32 %v5125, %v5164
        %v5173 = vadd.f32 %v5126, %v5164
        %v5174 = vadd.f32 %v5127, %v5164
        %v5175 = vadd.f32 %v5128, %v5164
        %v5176 = vadd.f32 %v5129, %v5164
        %v5177 = vadd.f32 %v5130, %v5164
        %v5178 = vadd.f32 %v5131, %v5164
        %v5179 = vadd.f32 %v5132, %v5164
        %v5180 = vadd.f32 %v5133, %v5164
        %v5181 = vadd.f32 %v5134, %v5164
        %v5182 = vadd.f32 %v5135, %v5164
        %v5183 = vadd.f32 %v5136, %v5164
        %v5184 = vadd.f32 %v5137, %v5164
        %v5185 = vadd.f32 %v5138, %v5164
        %v5186 = vadd.f32 %v5139, %v5164
        %v5187 = vadd.f32 %v5140, %v5164
        %v5188 = vadd.f32 %v5141, %v5164
        %v5189 = vadd.f32 %v5142, %v5164
        %v5190 = vadd.f32 %v5143, %v5164
        %v5191 = vadd.f32 %v5144, %v5164
        %v5192 = vadd.f32 %v5145, %v5164
        %v5193 = vadd.f32 %v5146, %v5164
        %v5194 = vadd.f32 %v5147, %v5164
        %v5195 = vadd.f32 %v5148, %v5164
        %v5196 = vadd.f32 %v5149, %v5164
        %v5197 = vadd.f32 %v5150, %v5164
        %v5198 = vadd.f32 %v5151, %v5164
        %v5199 = vadd.f32 %v5152, %v5164
        %v5200 = vadd.f32 %v5153, %v5164
        %v5201 = vadd.f32 %v5154, %v5164
        %v5202 = vadd.f32 %v5155, %v5164
        %v5203 = vadd.f32 %v5156, %v5164
        %v5204 = vadd.f32 %v5157, %v5164
        %v5205 = vadd.f32 %v5158, %v5164
        %v5206 = vmax.f32 %v5166, 0.0
        %v5207 = vmax.f32 %v5167, 0.0
        %v5208 = vmax.f32 %v5168, 0.0
        %v5209 = vmax.f32 %v5169, 0.0
        %v5210 = vmax.f32 %v5170, 0.0
        %v5211 = vmax.f32 %v5171, 0.0
        %v5212 = vmax.f32 %v5172, 0.0
        %v5213 = vmax.f32 %v5173, 0.0
        %v5214 = vmax.f32 %v5174, 0.0
        %v5215 = vmax.f32 %v5175, 0.0
        %v5216 = vmax.f32 %v5176, 0.0
        %v5217 = vmax.f32 %v5177, 0.0
        %v5218 = vmax.f32 %v5178, 0.0
        %v5219 = vmax.f32 %v5179, 0.0
        %v5220 = vmax.f32 %v5180, 0.0
        %v5221 = vmax.f32 %v5181, 0.0
        %v5222 = vmax.f32 %v5182, 0.0
        %v5223 = vmax.f32 %v5183, 0.0
        %v5224 = vmax.f32 %v5184, 0.0
        %v5225 = vmax.f32 %v5185, 0.0
        %v5226 = vmax.f32 %v5186, 0.0
        %v5227 = vmax.f32 %v5187, 0.0
        %v5228 = vmax.f32 %v5188, 0.0
        %v5229 = vmax.f32 %v5189, 0.0
        %v5230 = vmax.f32 %v5190, 0.0
        %v5231 = vmax.f32 %v5191, 0.0
        %v5232 = vmax.f32 %v5192, 0.0
        %v5233 = vmax.f32 %v5193, 0.0
        %v5234 = vmax.f32 %v5194, 0.0
        %v5235 = vmax.f32 %v5195, 0.0
        %v5236 = vmax.f32 %v5196, 0.0
        %v5237 = vmax.f32 %v5197, 0.0
        %v5238 = vmax.f32 %v5198, 0.0
        %v5239 = vmax.f32 %v5199, 0.0
        %v5240 = vmax.f32 %v5200, 0.0
        %v5241 = vmax.f32 %v5201, 0.0
        %v5242 = vmax.f32 %v5202, 0.0
        %v5243 = vmax.f32 %v5203, 0.0
        %v5244 = vmax.f32 %v5204, 0.0
        %v5245 = vmax.f32 %v5205, 0.0
        %v5246 = vld [vmem:[%s3] sm:$0xff]
        %v5247 = vld [vmem:[%s3 + $0x8] sm:$0xff]
        %v5248 = vld [vmem:[%s3 + $0x10] sm:$0xff]
        %v5249 = vld [vmem:[%s3 + $0x18] sm:$0xff]
        %v5250 = vld [vmem:[%s3 + $0x20] sm:$0xff]
        %v5251 = vld [vmem:[%s3 + $0x28] sm:$0xff]
        %v5252 = vld [vmem:[%s3 + $0x30] sm:$0xff]
        %v5253 = vld [vmem:[%s3 + $0x38] sm:$0xff]
        %v5254 = vld [vmem:[%s3 + $0x40] sm:$0xff]
        %v5255 = vld [vmem:[%s3 + $0x48] sm:$0xff]
        %v5256 = vld [vmem:[%s3 + $0x50] sm:$0xff]
        %v5257 = vld [vmem:[%s3 + $0x58] sm:$0xff]
        %v5258 = vld [vmem:[%s3 + $0x60] sm:$0xff]
        %v5259 = vld [vmem:[%s3 + $0x68] sm:$0xff]
        %v5260 = vld [vmem:[%s3 + $0x70] sm:$0xff]
        %v5261 = vld [vmem:[%s3 + $0x78] sm:$0xff]
        %v5262 = vld [vmem:[%s3 + $0x80] sm:$0xff]
        %v5263 = vld [vmem:[%s3 + $0x88] sm:$0xff]
        %v5264 = vld [vmem:[%s3 + $0x90] sm:$0xff]
        %v5265 = vld [vmem:[%s3 + $0x98] sm:$0xff]
        %v5266 = vld [vmem:[%s3 + $0xa0] sm:$0xff]
        %v5267 = vld [vmem:[%s3 + $0xa8] sm:$0xff]
        %v5268 = vld [vmem:[%s3 + $0xb0] sm:$0xff]
        %v5269 = vld [vmem:[%s3 + $0xb8] sm:$0xff]
        %v5270 = vld [vmem:[%s3 + $0xc0] sm:$0xff]
        %v5271 = vld [vmem:[%s3 + $0xc8] sm:$0xff]
        %v5272 = vld [vmem:[%s3 + $0xd0] sm:$0xff]
        %v5273 = vld [vmem:[%s3 + $0xd8] sm:$0xff]
        %v5274 = vld [vmem:[%s3 + $0xe0] sm:$0xff]
        %v5275 = vld [vmem:[%s3 + $0xe8] sm:$0xff]
        %v5276 = vld [vmem:[%s3 + $0xf0] sm:$0xff]
        %v5277 = vld [vmem:[%s3 + $0xf8] sm:$0xff]
        %v5278 = vld [vmem:[%s3 + $0x100] sm:$0xff]
        %v5279 = vld [vmem:[%s3 + $0x108] sm:$0xff]
        %v5280 = vld [vmem:[%s3 + $0x110] sm:$0xff]
        %v5281 = vld [vmem:[%s3 + $0x118] sm:$0xff]
        %v5282 = vld [vmem:[%s3 + $0x120] sm:$0xff]
        %v5283 = vld [vmem:[%s3 + $0x128] sm:$0xff]
        %v5284 = vld [vmem:[%s3 + $0x130] sm:$0xff]
        %v5285 = vld [vmem:[%s3 + $0x138] sm:$0xff]
        %5287 = vset.pattern.permute.xlu0 0
        %5288 = vperm.xlu0 %5287, %v5246
        %v5289 = vpop.permute.xlu0 %5288
        %5292 = vset.pattern.permute.xlu0 0
        %5293 = vperm.xlu0 %5292, %v5247
        %v5294 = vpop.permute.xlu0 %5293
        %5297 = vset.pattern.permute.xlu0 0
        %5298 = vperm.xlu0 %5297, %v5248
        %v5299 = vpop.permute.xlu0 %5298
        %5302 = vset.pattern.permute.xlu0 0
        %5303 = vperm.xlu0 %5302, %v5249
        %v5304 = vpop.permute.xlu0 %5303
        %5307 = vset.pattern.permute.xlu0 0
        %5308 = vperm.xlu0 %5307, %v5250
        %v5309 = vpop.permute.xlu0 %5308
        %5312 = vset.pattern.permute.xlu0 0
        %5313 = vperm.xlu0 %5312, %v5251
        %v5314 = vpop.permute.xlu0 %5313
        %5317 = vset.pattern.permute.xlu0 0
        %5318 = vperm.xlu0 %5317, %v5252
        %v5319 = vpop.permute.xlu0 %5318
        %5322 = vset.pattern.permute.xlu0 0
        %5323 = vperm.xlu0 %5322, %v5253
        %v5324 = vpop.permute.xlu0 %5323
        %5327 = vset.pattern.permute.xlu0 0
        %5328 = vperm.xlu0 %5327, %v5254
        %v5329 = vpop.permute.xlu0 %5328
        %5332 = vset.pattern.permute.xlu0 0
        %5333 = vperm.xlu0 %5332, %v5255
        %v5334 = vpop.permute.xlu0 %5333
        %5337 = vset.pattern.permute.xlu0 0
        %5338 = vperm.xlu0 %5337, %v5256
        %v5339 = vpop.permute.xlu0 %5338
        %5342 = vset.pattern.permute.xlu0 0
        %5343 = vperm.xlu0 %5342, %v5257
        %v5344 = vpop.permute.xlu0 %5343
        %5347 = vset.pattern.permute.xlu0 0
        %5348 = vperm.xlu0 %5347, %v5258
        %v5349 = vpop.permute.xlu0 %5348
        %5352 = vset.pattern.permute.xlu0 0
        %5353 = vperm.xlu0 %5352, %v5259
        %v5354 = vpop.permute.xlu0 %5353
        %5357 = vset.pattern.permute.xlu0 0
        %5358 = vperm.xlu0 %5357, %v5260
        %v5359 = vpop.permute.xlu0 %5358
        %5362 = vset.pattern.permute.xlu0 0
        %5363 = vperm.xlu0 %5362, %v5261
        %v5364 = vpop.permute.xlu0 %5363
        %5367 = vset.pattern.permute.xlu0 0
        %5368 = vperm.xlu0 %5367, %v5262
        %v5369 = vpop.permute.xlu0 %5368
        %5372 = vset.pattern.permute.xlu0 0
        %5373 = vperm.xlu0 %5372, %v5263
        %v5374 = vpop.permute.xlu0 %5373
        %5377 = vset.pattern.permute.xlu0 0
        %5378 = vperm.xlu0 %5377, %v5264
        %v5379 = vpop.permute.xlu0 %5378
        %5382 = vset.pattern.permute.xlu0 0
        %5383 = vperm.xlu0 %5382, %v5265
        %v5384 = vpop.permute.xlu0 %5383
        %5387 = vset.pattern.permute.xlu0 0
        %5388 = vperm.xlu0 %5387, %v5266
        %v5389 = vpop.permute.xlu0 %5388
        %5392 = vset.pattern.permute.xlu0 0
        %5393 = vperm.xlu0 %5392, %v5267
        %v5394 = vpop.permute.xlu0 %5393
        %5397 = vset.pattern.permute.xlu0 0
        %5398 = vperm.xlu0 %5397, %v5268
        %v5399 = vpop.permute.xlu0 %5398
        %5402 = vset.pattern.permute.xlu0 0
        %5403 = vperm.xlu0 %5402, %v5269
        %v5404 = vpop.permute.xlu0 %5403
        %5407 = vset.pattern.permute.xlu0 0
        %5408 = vperm.xlu0 %5407, %v5270
        %v5409 = vpop.permute.xlu0 %5408
        %5412 = vset.pattern.permute.xlu0 0
        %5413 = vperm.xlu0 %5412, %v5271
        %v5414 = vpop.permute.xlu0 %5413
        %5417 = vset.pattern.permute.xlu0 0
        %5418 = vperm.xlu0 %5417, %v5272
        %v5419 = vpop.permute.xlu0 %5418
        %5422 = vset.pattern.permute.xlu0 0
        %5423 = vperm.xlu0 %5422, %v5273
        %v5424 = vpop.permute.xlu0 %5423
        %5427 = vset.pattern.permute.xlu0 0
        %5428 = vperm.xlu0 %5427, %v5274
        %v5429 = vpop.permute.xlu0 %5428
        %5432 = vset.pattern.permute.xlu0 0
        %5433 = vperm.xlu0 %5432, %v5275
        %v5434 = vpop.permute.xlu0 %5433
        %5437 = vset.pattern.permute.xlu0 0
        %5438 = vperm.xlu0 %5437, %v5276
        %v5439 = vpop.permute.xlu0 %5438
        %5442 = vset.pattern.permute.xlu0 0
        %5443 = vperm.xlu0 %5442, %v5277
        %v5444 = vpop.permute.xlu0 %5443
        %5447 = vset.pattern.permute.xlu0 0
        %5448 = vperm.xlu0 %5447, %v5278
        %v5449 = vpop.permute.xlu0 %5448
        %5452 = vset.pattern.permute.xlu0 0
        %5453 = vperm.xlu0 %5452, %v5279
        %v5454 = vpop.permute.xlu0 %5453
        %5457 = vset.pattern.permute.xlu0 0
        %5458 = vperm.xlu0 %5457, %v5280
        %v5459 = vpop.permute.xlu0 %5458
        %5462 = vset.pattern.permute.xlu0 0
        %5463 = vperm.xlu0 %5462, %v5281
        %v5464 = vpop.permute.xlu0 %5463
        %5467 = vset.pattern.permute.xlu0 0
        %5468 = vperm.xlu0 %5467, %v5282
        %v5469 = vpop.permute.xlu0 %5468
        %5472 = vset.pattern.permute.xlu0 0
        %5473 = vperm.xlu0 %5472, %v5283
        %v5474 = vpop.permute.xlu0 %5473
        %5477 = vset.pattern.permute.xlu0 0
        %5478 = vperm.xlu0 %5477, %v5284
        %v5479 = vpop.permute.xlu0 %5478
        %5482 = vset.pattern.permute.xlu0 0
        %5483 = vperm.xlu0 %5482, %v5285
        %v5484 = vpop.permute.xlu0 %5483
        %v5486 = vmul.f32 %v5206, %v5289
        %v5487 = vmul.f32 %v5207, %v5294
        %v5488 = vmul.f32 %v5208, %v5299
        %v5489 = vmul.f32 %v5209, %v5304
        %v5490 = vmul.f32 %v5210, %v5309
        %v5491 = vmul.f32 %v5211, %v5314
        %v5492 = vmul.f32 %v5212, %v5319
        %v5493 = vmul.f32 %v5213, %v5324
        %v5494 = vmul.f32 %v5214, %v5329
        %v5495 = vmul.f32 %v5215, %v5334
        %v5496 = vmul.f32 %v5216, %v5339
        %v5497 = vmul.f32 %v5217, %v5344
        %v5498 = vmul.f32 %v5218, %v5349
        %v5499 = vmul.f32 %v5219, %v5354
        %v5500 = vmul.f32 %v5220, %v5359
        %v5501 = vmul.f32 %v5221, %v5364
        %v5502 = vmul.f32 %v5222, %v5369
        %v5503 = vmul.f32 %v5223, %v5374
        %v5504 = vmul.f32 %v5224, %v5379
        %v5505 = vmul.f32 %v5225, %v5384
        %v5506 = vmul.f32 %v5226, %v5389
        %v5507 = vmul.f32 %v5227, %v5394
        %v5508 = vmul.f32 %v5228, %v5399
        %v5509 = vmul.f32 %v5229, %v5404
        %v5510 = vmul.f32 %v5230, %v5409
        %v5511 = vmul.f32 %v5231, %v5414
        %v5512 = vmul.f32 %v5232, %v5419
        %v5513 = vmul.f32 %v5233, %v5424
        %v5514 = vmul.f32 %v5234, %v5429
        %v5515 = vmul.f32 %v5235, %v5434
        %v5516 = vmul.f32 %v5236, %v5439
        %v5517 = vmul.f32 %v5237, %v5444
        %v5518 = vmul.f32 %v5238, %v5449
        %v5519 = vmul.f32 %v5239, %v5454
        %v5520 = vmul.f32 %v5240, %v5459
        %v5521 = vmul.f32 %v5241, %v5464
        %v5522 = vmul.f32 %v5242, %v5469
        %v5523 = vmul.f32 %v5243, %v5474
        %v5524 = vmul.f32 %v5244, %v5479
        %v5525 = vmul.f32 %v5245, %v5484
        %v5526 = vmax.f32 %v5486, %v5487
        %v5527 = vmax.f32 %v5526, %v5488
        %v5528 = vmax.f32 %v5527, %v5489
        %v5529 = vmax.f32 %v5528, %v5490
        %v5530 = vrot.slane %v5529, 4
        %v5531 = vmax.f32 %v5529, %v5530
        %v5532 = vrot.slane %v5531, 2
        %v5533 = vmax.f32 %v5531, %v5532
        %v5534 = vrot.slane %v5533, 1
        %v5535 = vmax.f32 %v5533, %v5534
        %v5536 = vmax.f32 %v5491, %v5492
        %v5537 = vmax.f32 %v5536, %v5493
        %v5538 = vmax.f32 %v5537, %v5494
        %v5539 = vmax.f32 %v5538, %v5495
        %v5540 = vrot.slane %v5539, 4
        %v5541 = vmax.f32 %v5539, %v5540
        %v5542 = vrot.slane %v5541, 2
        %v5543 = vmax.f32 %v5541, %v5542
        %v5544 = vrot.slane %v5543, 1
        %v5545 = vmax.f32 %v5543, %v5544
        %v5546 = vmax.f32 %v5496, %v5497
        %v5547 = vmax.f32 %v5546, %v5498
        %v5548 = vmax.f32 %v5547, %v5499
        %v5549 = vmax.f32 %v5548, %v5500
        %v5550 = vrot.slane %v5549, 4
        %v5551 = vmax.f32 %v5549, %v5550
        %v5552 = vrot.slane %v5551, 2
        %v5553 = vmax.f32 %v5551, %v5552
        %v5554 = vrot.slane %v5553, 1
        %v5555 = vmax.f32 %v5553, %v5554
        %v5556 = vmax.f32 %v5501, %v5502
        %v5557 = vmax.f32 %v5556, %v5503
        %v5558 = vmax.f32 %v5557, %v5504
        %v5559 = vmax.f32 %v5558, %v5505
        %v5560 = vrot.slane %v5559, 4
        %v5561 = vmax.f32 %v5559, %v5560
        %v5562 = vrot.slane %v5561, 2
        %v5563 = vmax.f32 %v5561, %v5562
        %v5564 = vrot.slane %v5563, 1
        %v5565 = vmax.f32 %v5563, %v5564
        %v5566 = vmax.f32 %v5506, %v5507
        %v5567 = vmax.f32 %v5566, %v5508
        %v5568 = vmax.f32 %v5567, %v5509
        %v5569 = vmax.f32 %v5568, %v5510
        %v5570 = vrot.slane %v5569, 4
        %v5571 = vmax.f32 %v5569, %v5570
        %v5572 = vrot.slane %v5571, 2
        %v5573 = vmax.f32 %v5571, %v5572
        %v5574 = vrot.slane %v5573, 1
        %v5575 = vmax.f32 %v5573, %v5574
        %v5576 = vmax.f32 %v5511, %v5512
        %v5577 = vmax.f32 %v5576, %v5513
        %v5578 = vmax.f32 %v5577, %v5514
        %v5579 = vmax.f32 %v5578, %v5515
        %v5580 = vrot.slane %v5579, 4
        %v5581 = vmax.f32 %v5579, %v5580
        %v5582 = vrot.slane %v5581, 2
        %v5583 = vmax.f32 %v5581, %v5582
        %v5584 = vrot.slane %v5583, 1
        %v5585 = vmax.f32 %v5583, %v5584
        %v5586 = vmax.f32 %v5516, %v5517
        %v5587 = vmax.f32 %v5586, %v5518
        %v5588 = vmax.f32 %v5587, %v5519
        %v5589 = vmax.f32 %v5588, %v5520
        %v5590 = vrot.slane %v5589, 4
        %v5591 = vmax.f32 %v5589, %v5590
        %v5592 = vrot.slane %v5591, 2
        %v5593 = vmax.f32 %v5591, %v5592
        %v5594 = vrot.slane %v5593, 1
        %v5595 = vmax.f32 %v5593, %v5594
        %v5596 = vmax.f32 %v5521, %v5522
        %v5597 = vmax.f32 %v5596, %v5523
        %v5598 = vmax.f32 %v5597, %v5524
        %v5599 = vmax.f32 %v5598, %v5525
        %v5600 = vrot.slane %v5599, 4
        %v5601 = vmax.f32 %v5599, %v5600
        %v5602 = vrot.slane %v5601, 2
        %v5603 = vmax.f32 %v5601, %v5602
        %v5604 = vrot.slane %v5603, 1
        %v5605 = vmax.f32 %v5603, %v5604
        %v5606 = vmul.f32 %v5535, %v5535
        %v5607 = vmul.f32 %v5545, %v5545
        %v5608 = vmul.f32 %v5555, %v5555
        %v5609 = vmul.f32 %v5565, %v5565
        %v5610 = vmul.f32 %v5575, %v5575
        %v5611 = vmul.f32 %v5585, %v5585
        %v5612 = vmul.f32 %v5595, %v5595
        %v5613 = vmul.f32 %v5605, %v5605
        %vm5622 = vcmask 1041409
        %v5623 = vsel %vm5622, %v5607, %v5606
        %vm5624 = vcmask 1042434
        %v5625 = vsel %vm5624, %v5608, %v5623
        %vm5626 = vcmask 1043459
        %v5627 = vsel %vm5626, %v5609, %v5625
        %vm5628 = vcmask 1044484
        %v5629 = vsel %vm5628, %v5610, %v5627
        %vm5630 = vcmask 1045509
        %v5631 = vsel %vm5630, %v5611, %v5629
        %vm5632 = vcmask 1046534
        %v5633 = vsel %vm5632, %v5612, %v5631
        %vm5634 = vcmask 1047559
        %v5635 = vsel %vm5634, %v5613, %v5633
        %5637 = vadd.xlane.f32.xlu0 %v5635
        %v5638 = vpop.xlane.xlu0 %5637
        %v5639 = vmax.f32 %v5638, 1e-24
        %v5640 = vrsqrt.pop %v5639
        %v5642 = vrot.slane %v5640, 1
        %v5643 = vrot.slane %v5640, 2
        %v5644 = vrot.slane %v5640, 3
        %v5645 = vrot.slane %v5640, 4
        %v5646 = vrot.slane %v5640, 5
        %v5647 = vrot.slane %v5640, 6
        %v5648 = vrot.slane %v5640, 7
        %v5657 = vmul.f32 %v5535, %v5640
        %v5658 = vmul.f32 %v5545, %v5642
        %v5659 = vmul.f32 %v5555, %v5643
        %v5660 = vmul.f32 %v5565, %v5644
        %v5661 = vmul.f32 %v5575, %v5645
        %v5662 = vmul.f32 %v5585, %v5646
        %v5663 = vmul.f32 %v5595, %v5647
        %v5664 = vmul.f32 %v5605, %v5648
        %v5665 = vld [vmem:[%s10] sm:$0xff]
        %v5666 = vld [vmem:[%s10 + $0x8] sm:$0xff]
        %v5667 = vld [vmem:[%s10 + $0x10] sm:$0xff]
        %v5668 = vld [vmem:[%s10 + $0x18] sm:$0xff]
        %v5669 = vld [vmem:[%s10 + $0x20] sm:$0xff]
        %v5670 = vld [vmem:[%s10 + $0x28] sm:$0xff]
        %v5671 = vld [vmem:[%s10 + $0x30] sm:$0xff]
        %v5672 = vld [vmem:[%s10 + $0x38] sm:$0xff]
        %v5673 = vld [vmem:[%s10 + $0x40] sm:$0xff]
        %v5674 = vld [vmem:[%s10 + $0x48] sm:$0xff]
        %v5675 = vld [vmem:[%s10 + $0x50] sm:$0xff]
        %v5676 = vld [vmem:[%s10 + $0x58] sm:$0xff]
        %v5677 = vld [vmem:[%s10 + $0x60] sm:$0xff]
        %v5678 = vld [vmem:[%s10 + $0x68] sm:$0xff]
        %v5679 = vld [vmem:[%s10 + $0x70] sm:$0xff]
        %v5680 = vld [vmem:[%s10 + $0x78] sm:$0xff]
        %v5681 = vld [vmem:[%s11] sm:$0x1]
        %v5683 = vlaneseq
        %v5684 = vshrl.u32 %v5683, 7
        %v5685 = vsub.s32 0, %v5684
        %v5686 = vrot.slane %v5681, %v5685
        %v5696 = vrot.slane %v5658, 7
        %v5697 = vsel %vm5622, %v5696, %v5657
        %v5698 = vrot.slane %v5659, 6
        %v5699 = vsel %vm5624, %v5698, %v5697
        %v5700 = vrot.slane %v5660, 5
        %v5701 = vsel %vm5626, %v5700, %v5699
        %v5702 = vrot.slane %v5661, 4
        %v5703 = vsel %vm5628, %v5702, %v5701
        %v5704 = vrot.slane %v5662, 3
        %v5705 = vsel %vm5630, %v5704, %v5703
        %v5706 = vrot.slane %v5663, 2
        %v5707 = vsel %vm5632, %v5706, %v5705
        %v5708 = vrot.slane %v5664, 1
        %v5709 = vsel %vm5634, %v5708, %v5707
        %5711 = vmatprep.subr.mxu0 0.0
        %5712 = vmatpush1.msra.mxu0 %v5665
        %5713 = vmatprep.subr.mxu0 0.0
        %5714 = vmatpush1.msra.mxu0 %v5666
        %5715 = vmatprep.subr.mxu0 0.0
        %5716 = vmatpush1.msra.mxu0 %v5667
        %5717 = vmatprep.subr.mxu0 0.0
        %5718 = vmatpush1.msra.mxu0 %v5668
        %5719 = vmatprep.subr.mxu0 0.0
        %5720 = vmatpush1.msra.mxu0 %v5669
        %5721 = vmatprep.subr.mxu0 0.0
        %5722 = vmatpush1.msra.mxu0 %v5670
        %5723 = vmatprep.subr.mxu0 0.0
        %5724 = vmatpush1.msra.mxu0 %v5671
        %5725 = vmatprep.subr.mxu0 0.0
        %5726 = vmatpush1.msra.mxu0 %v5672
        %5727 = vmatprep.subr.mxu0 0.0
        %5728 = vmatpush1.msra.mxu0 %v5673
        %5729 = vmatprep.subr.mxu0 0.0
        %5730 = vmatpush1.msra.mxu0 %v5674
        %5731 = vmatprep.subr.mxu0 0.0
        %5732 = vmatpush1.msra.mxu0 %v5675
        %5733 = vmatprep.subr.mxu0 0.0
        %5734 = vmatpush1.msra.mxu0 %v5676
        %5735 = vmatprep.subr.mxu0 0.0
        %5736 = vmatpush1.msra.mxu0 %v5677
        %5737 = vmatprep.subr.mxu0 0.0
        %5738 = vmatpush1.msra.mxu0 %v5678
        %5739 = vmatprep.subr.mxu0 0.0
        %5740 = vmatpush1.msra.mxu0 %v5679
        %5741 = vmatprep.subr.mxu0 0.0
        %5742 = vmatpush1.msra.mxu0 %v5680
        %5743 = vmatprep.subr.mxu0 0.0
        %5744 = vmatpush1.msra.mxu0 0.0
        %5745 = vmatprep.subr.mxu0 0.0
        %5746 = vmatpush1.msra.mxu0 0.0
        %5747 = vmatprep.subr.mxu0 0.0
        %5748 = vmatpush1.msra.mxu0 0.0
        %5749 = vmatprep.subr.mxu0 0.0
        %5750 = vmatpush1.msra.mxu0 0.0
        %5751 = vmatprep.subr.mxu0 0.0
        %5752 = vmatpush1.msra.mxu0 0.0
        %5753 = vmatprep.subr.mxu0 0.0
        %5754 = vmatpush1.msra.mxu0 0.0
        %5755 = vmatprep.subr.mxu0 0.0
        %5756 = vmatpush1.msra.mxu0 0.0
        %5757 = vmatprep.subr.mxu0 0.0
        %5758 = vmatpush1.msra.mxu0 0.0
        %5759 = vmatprep.subr.mxu0 0.0
        %5760 = vmatpush1.msra.mxu0 0.0
        %5761 = vmatprep.subr.mxu0 0.0
        %5762 = vmatpush1.msra.mxu0 0.0
        %5763 = vmatprep.subr.mxu0 0.0
        %5764 = vmatpush1.msra.mxu0 0.0
        %5765 = vmatprep.subr.mxu0 0.0
        %5766 = vmatpush1.msra.mxu0 0.0
        %5767 = vmatprep.subr.mxu0 0.0
        %5768 = vmatpush1.msra.mxu0 0.0
        %5769 = vmatprep.subr.mxu0 0.0
        %5770 = vmatpush1.msra.mxu0 0.0
        %5771 = vmatprep.subr.mxu0 0.0
        %5772 = vmatpush1.msra.mxu0 0.0
        %5773 = vmatprep.subr.mxu0 0.0
        %5774 = vmatpush1.msra.mxu0 0.0
        %5775 = vmatprep.mubr.f32.mxu0 0.0
        %5776 = vmatmul.mubr.f32.gmra.mrb[0].mxu0 %v5709
        %v5777 = vpop.f32.mrb[0].mxu0
        %v5778 = vadd.f32 %v5686, %v5777
        %v5779 = vpop.f32.mrb[0].mxu0
        %5780 = vdwg.mxu0
        %5781 = vst [vmem:[%s407] sm:$0xff] %v5778
        %s5782 = sand.u32 %s291, 1
        %s5783 = scalar_lea.sflag [#allocation5], %s5782
        %s5784 = sand.u32 %s291, 1
        %s5785 = smul.addr %s5784, 8
        %s5786 = scalar_lea.vmem [#allocation4], %s5785
        // Predicated region
        $region69: #{tpu_custom_call.1} parent=67 // pred_check
          %p5787 = pneg %p301
        $region70: #{tpu_custom_call.1} parent=67 // pred_check_branch
          %5789 = sbr.rel (%p5787) target = $region72
        $region71: #{tpu_custom_call.1} parent=67 // pred_region
          %s5791 = ssub.s32 128, 128
          %5792 = vsyncadd %s5783, %s5791
          %s5793 = smul.addr %s26, 128
          %s5794 = scalar_lea.hbm %s12, %s5793
          %s5796 = sshll.u32 %s5786, 4
          %s5797 = int_to_ptr.vmem [resolvable:$true] %s5796
          %5799 = dma.vmem_to_hbm [thread:$0]  %s5797, 128, %s5794, %s5783
        $region72: #{tpu_custom_call.1} parent=67 // pred_fallthru
          _
      $region68: #{tpu_custom_call.1} parent=5 // pred_fallthru
        _
      %p5800 = scmp.le.s32.totalorder 2, %s21
      // Predicated region
      $region73: #{tpu_custom_call.1} parent=5 // pred_check
        %p5801 = pneg %p5800
      $region74: #{tpu_custom_call.1} parent=5 // pred_check_branch
        %5803 = sbr.rel (%p5801) target = $region76
      $region75: #{tpu_custom_call.1} parent=5 // pred_region
        %s5804 = ssub.s32 %s21, 2
        // Predicated region
        $region77: #{tpu_custom_call.1} parent=75 // pred_check
          %p5805 = pneg %p307
        $region78: #{tpu_custom_call.1} parent=75 // pred_check_branch
          %5807 = sbr.rel (%p5805) target = $region80
        $region79: #{tpu_custom_call.1} parent=75 // pred_region
          %s5808 = sand.u32 %s292, 1
          %s5809 = scalar_lea.sflag [#allocation5], %s5808
          %s5810 = sand.u32 %s292, 1
          %s5811 = smul.addr %s5810, 8
          %s5812 = scalar_lea.vmem [#allocation4], %s5811
          %5813 = dma.done %s5809, 128
        $region80: #{tpu_custom_call.1} parent=75 // pred_fallthru
          _
      $region76: #{tpu_custom_call.1} parent=5 // pred_fallthru
        _
    $region6: #{tpu_custom_call.1} parent=1 // loop_footer
      %s25 = sadd.s32 1, %s21
    $region7: #{tpu_custom_call.1} parent=1 // loop_footer_branch
      %20 = sbr.rel target = $region3
    $region8: #{tpu_custom_call.1} parent=1 // loop_exit
      _
    %5814 = vsyncpa [#allocation5], 1
    %s5815 = scalar_lea.sflag [#allocation5], 1
    %5816 = vsyncpa %s5815, 1

</llo_original>
